<compile_context>
chip_gen: v7x
topology: tpu7x:2x2x1
jax: 0.10.0
libtpu: 0.0.40
codegen_flags: <defaults>
</compile_context>

<pallas_src>
import functools

import jax
import jax.numpy as jnp
import numpy as np
from jax.experimental import pallas as pl
from jax.experimental.pallas import tpu as pltpu


def _lstm_direction(xp_ref, w_hh_t, lens, out_ref, *, T, B, H, reverse):
    """Run one LSTM direction over T steps.

    xp_ref : VMEM ref (T*B, 4H) holding x @ W_ih^T + (b_ih + b_hh), time-major rows.
    w_hh_t : (H, 4H) recurrent weight (already transposed), closed over as a value.
    lens   : (B, 1) int32 sequence lengths (packed-sequence masking).
    out_ref: VMEM ref (T*B, H) for the per-step hidden outputs (zero past lens).
    Returns the final (h, c), each (B, H), i.e. the state at each sequence's last valid step.
    """

    def step(t, carry):
        h, c = carry
        row = pl.multiple_of(t * B, B)
        gates = xp_ref[pl.ds(row, B), :] + jnp.dot(
            h, w_hh_t, preferred_element_type=jnp.float32)          # (B, 4H)
        # Single EUP pass over the whole 4H gate tile; slice i/f/o out of it.
        sig = jax.nn.sigmoid(gates)
        i_g = sig[:, 0 * H:1 * H]
        f_g = sig[:, 1 * H:2 * H]
        o_g = sig[:, 3 * H:4 * H]
        g_g = jnp.tanh(gates[:, 2 * H:3 * H])
        c_new = f_g * c + i_g * g_g
        h_new = o_g * jnp.tanh(c_new)
        valid = t < lens                                             # (B, 1) mask
        out_ref[pl.ds(row, B), :] = jnp.where(valid, h_new, 0.0)
        # Freeze the state outside each sequence's valid range (packed semantics).
        return jnp.where(valid, h_new, h), jnp.where(valid, c_new, c)

    def body(s, carry):
        t = (T - 1 - s) if reverse else s
        return step(t, carry)

    zero = jnp.zeros((B, H), jnp.float32)
    return jax.lax.fori_loop(0, T, body, (zero, zero), unroll=True)


def _encoder_kernel_bidi(x_ref, lens_ref,
                         w_ih_f_ref, w_hh_f_ref, b_f_ref,
                         w_ih_b_ref, w_hh_b_ref, b_b_ref,
                         w_hr_f_ref, w_hr_b_ref, b_hr_ref,
                         w_cr_f_ref, w_cr_b_ref, b_cr_ref,
                         out_f_ref, out_b_ref, h_ref, c_ref,
                         xp_f_ref, xp_b_ref, *, T, B, H):
    lens = lens_ref[...]                                             # (B, 1) int32
    x = x_ref[...]                                                   # (T*B, I)

    # Hoisted input projections: one MXU matmul per direction, done once.
    xp_f_ref[...] = jnp.dot(x, w_ih_f_ref[...],
                            preferred_element_type=jnp.float32) + b_f_ref[...]
    xp_b_ref[...] = jnp.dot(x, w_ih_b_ref[...],
                            preferred_element_type=jnp.float32) + b_b_ref[...]

    h_f, c_f = _lstm_direction(xp_f_ref, w_hh_f_ref[...], lens, out_f_ref,
                               T=T, B=B, H=H, reverse=False)
    h_b, c_b = _lstm_direction(xp_b_ref, w_hh_b_ref[...], lens, out_b_ref,
                               T=T, B=B, H=H, reverse=True)

    # reduce_h_W / reduce_c_W with the concat folded into a split projection (no lane shuffles).
    h_ref[...] = (jnp.dot(h_f, w_hr_f_ref[...], preferred_element_type=jnp.float32)
                  + jnp.dot(h_b, w_hr_b_ref[...], preferred_element_type=jnp.float32)
                  + b_hr_ref[...])
    c_ref[...] = (jnp.dot(c_f, w_cr_f_ref[...], preferred_element_type=jnp.float32)
                  + jnp.dot(c_b, w_cr_b_ref[...], preferred_element_type=jnp.float32)
                  + b_cr_ref[...])


def _encoder_kernel_uni(x_ref, lens_ref, w_ih_ref, w_hh_ref, b_ref,
                        out_ref, h_ref, c_ref, xp_ref, *, T, B, H):
    lens = lens_ref[...]
    xp_ref[...] = jnp.dot(x_ref[...], w_ih_ref[...],
                          preferred_element_type=jnp.float32) + b_ref[...]
    h_f, c_f = _lstm_direction(xp_ref, w_hh_ref[...], lens, out_ref,
                               T=T, B=B, H=H, reverse=False)
    h_ref[...] = h_f
    c_ref[...] = c_f


def rnn_encoder(embedded_words, input_lens, params, *, bidirect=True):
    """embedded_words: (B, T, I), input_lens: (B,) int. Returns (output, (h, c)) like the module.

    output is (max(input_lens), B, H*dirs) time-major, zero-padded past each sequence's length.
    """
    B, T, I = embedded_words.shape
    H = params["w_hh_f"].shape[1]

    # Time-major flat layout: row t*B + b  ->  embedded_words[b, t].
    x = jnp.transpose(embedded_words, (1, 0, 2)).reshape(T * B, I)
    lens = jnp.asarray(input_lens, jnp.int32).reshape(B, 1)

    vmem = pl.BlockSpec(memory_space=pltpu.MemorySpace.VMEM)

    # Pre-transpose / pre-combine weights in the wrapper so no .T is materialized in VMEM.
    w_ih_f_t = params["w_ih_f"].T                                    # (I, 4H)
    w_hh_f_t = params["w_hh_f"].T                                    # (H, 4H)
    b_f = (params["b_ih_f"] + params["b_hh_f"]).reshape(1, 4 * H)

    if bidirect:
        w_ih_b_t = params["w_ih_b"].T
        w_hh_b_t = params["w_hh_b"].T
        b_b = (params["b_ih_b"] + params["b_hh_b"]).reshape(1, 4 * H)
        # Split reduce weights: cat(h_f, h_b) @ W^T == h_f @ W[:, :H]^T + h_b @ W[:, H:]^T
        w_hr_f = params["w_hr"][:, :H].T                             # (H, H)
        w_hr_b = params["w_hr"][:, H:].T
        w_cr_f = params["w_cr"][:, :H].T
        w_cr_b = params["w_cr"][:, H:].T
        b_hr = params["b_hr"].reshape(1, H)
        b_cr = params["b_cr"].reshape(1, H)

        kernel = functools.partial(_encoder_kernel_bidi, T=T, B=B, H=H)
        out_shape = (jax.ShapeDtypeStruct((T * B, H), jnp.float32),
                     jax.ShapeDtypeStruct((T * B, H), jnp.float32),
                     jax.ShapeDtypeStruct((B, H), jnp.float32),
                     jax.ShapeDtypeStruct((B, H), jnp.float32))
        out_f, out_b, h_n, c_n = pl.pallas_call(
            kernel,
            out_shape=out_shape,
            in_specs=[vmem] * 14,
            out_specs=(vmem, vmem, vmem, vmem),
            scratch_shapes=[pltpu.VMEM((T * B, 4 * H), jnp.float32),
                            pltpu.VMEM((T * B, 4 * H), jnp.float32)],
        )(x, lens,
          w_ih_f_t, w_hh_f_t, b_f,
          w_ih_b_t, w_hh_b_t, b_b,
          w_hr_f, w_hr_b, b_hr,
          w_cr_f, w_cr_b, b_cr)
        output = jnp.concatenate([out_f.reshape(T, B, H), out_b.reshape(T, B, H)], axis=-1)
    else:
        kernel = functools.partial(_encoder_kernel_uni, T=T, B=B, H=H)
        out_shape = (jax.ShapeDtypeStruct((T * B, H), jnp.float32),
                     jax.ShapeDtypeStruct((B, H), jnp.float32),
                     jax.ShapeDtypeStruct((B, H), jnp.float32))
        out_f, h_n, c_n = pl.pallas_call(
            kernel,
            out_shape=out_shape,
            in_specs=[vmem] * 5,
            out_specs=(vmem, vmem, vmem),
            scratch_shapes=[pltpu.VMEM((T * B, 4 * H), jnp.float32)],
        )(x, lens, w_ih_f_t, w_hh_f_t, b_f)
        output = out_f.reshape(T, B, H)

    # pad_packed_sequence truncates the time axis to max(input_lens); host-side static slice.
    t_out = int(jnp.max(jnp.asarray(input_lens)))
    output = output[:t_out]
    return output, (h_n, c_n)


def _reference(embedded_words, input_lens, params, bidirect):
    """Pure-numpy reference mirroring the PyTorch forward (packed LSTM semantics)."""
    x = np.asarray(embedded_words, np.float32)
    lens = np.asarray(input_lens, np.int64)
    B, T, _ = x.shape
    H = params["w_hh_f"].shape[1]

    def sig(v):
        return 1.0 / (1.0 + np.exp(-v))

    def run_dir(w_ih, w_hh, b_ih, b_hh, reverse):
        w_ih = np.asarray(w_ih); w_hh = np.asarray(w_hh)
        b = np.asarray(b_ih) + np.asarray(b_hh)
        outs = np.zeros((T, B, H), np.float32)
        h_n = np.zeros((B, H), np.float32)
        c_n = np.zeros((B, H), np.float32)
        for bi in range(B):
            h = np.zeros(H, np.float32)
            c = np.zeros(H, np.float32)
            rng = range(int(lens[bi]) - 1, -1, -1) if reverse else range(int(lens[bi]))
            for t in rng:
                g = w_ih @ x[bi, t] + w_hh @ h + b
                i = sig(g[:H]); f = sig(g[H:2 * H])
                gg = np.tanh(g[2 * H:3 * H]); o = sig(g[3 * H:])
                c = f * c + i * gg
                h = o * np.tanh(c)
                outs[t, bi] = h
            h_n[bi] = h
            c_n[bi] = c
        return outs, h_n, c_n

    out_f, hf, cf = run_dir(params["w_ih_f"], params["w_hh_f"],
                            params["b_ih_f"], params["b_hh_f"], reverse=False)
    t_out = int(lens.max())
    if not bidirect:
        return out_f[:t_out], hf, cf
    out_b, hb, cb = run_dir(params["w_ih_b"], params["w_hh_b"],
                            params["b_ih_b"], params["b_hh_b"], reverse=True)
    out = np.concatenate([out_f, out_b], axis=-1)[:t_out]
    h_cat = np.concatenate([hf, hb], axis=1)
    c_cat = np.concatenate([cf, cb], axis=1)
    new_h = h_cat @ np.asarray(params["w_hr"]).T + np.asarray(params["b_hr"])
    new_c = c_cat @ np.asarray(params["w_cr"]).T + np.asarray(params["b_cr"])
    return out, new_h, new_c


if __name__ == "__main__":
    # Small shapes consistent with the module: batch=2, seq=8, input=32, hidden=32 (4H = 128).
    B, T, I, H = 2, 8, 32, 32

    key = jax.random.PRNGKey(0)
    ks = jax.random.split(key, 12)

    def xavier(k, shape):
        bound = float(np.sqrt(6.0 / (shape[0] + shape[1])))
        return jax.random.uniform(k, shape, jnp.float32, -bound, bound)

    lin_b = 1.0 / np.sqrt(2 * H)   # nn.Linear default init bound for the reduce heads
    params = {
        # LSTM weights (Xavier), biases zero -- matches RNNEncoder.init_weight().
        "w_ih_f": xavier(ks[0], (4 * H, I)),
        "w_hh_f": xavier(ks[1], (4 * H, H)),
        "b_ih_f": jnp.zeros((4 * H,), jnp.float32),
        "b_hh_f": jnp.zeros((4 * H,), jnp.float32),
        "w_ih_b": xavier(ks[2], (4 * H, I)),
        "w_hh_b": xavier(ks[3], (4 * H, H)),
        "b_ih_b": jnp.zeros((4 * H,), jnp.float32),
        "b_hh_b": jnp.zeros((4 * H,), jnp.float32),
        # reduce_h_W / reduce_c_W (nn.Linear(2H, H))
        "w_hr": jax.random.uniform(ks[4], (H, 2 * H), jnp.float32, -lin_b, lin_b),
        "b_hr": jax.random.uniform(ks[5], (H,), jnp.float32, -lin_b, lin_b),
        "w_cr": jax.random.uniform(ks[6], (H, 2 * H), jnp.float32, -lin_b, lin_b),
        "b_cr": jax.random.uniform(ks[7], (H,), jnp.float32, -lin_b, lin_b),
    }

    embedded_words = jax.random.normal(ks[8], (B, T, I), jnp.float32)
    input_lens = jnp.array([T, 5], dtype=jnp.int32)   # first sequence is the longest

    # Bidirectional path (exercises the reduce_h_W / reduce_c_W heads).
    out_bi, (h_bi, c_bi) = rnn_encoder(embedded_words, input_lens, params, bidirect=True)
    jax.block_until_ready((out_bi, h_bi, c_bi))
    ref_out, ref_h, ref_c = _reference(embedded_words, input_lens, params, bidirect=True)
    np.testing.assert_allclose(np.asarray(out_bi), ref_out, rtol=1e-4, atol=1e-4)
    np.testing.assert_allclose(np.asarray(h_bi), ref_h, rtol=1e-4, atol=1e-4)
    np.testing.assert_allclose(np.asarray(c_bi), ref_c, rtol=1e-4, atol=1e-4)

    # Unidirectional path (h_t is the raw final LSTM state).
    out_u, (h_u, c_u) = rnn_encoder(embedded_words, input_lens, params, bidirect=False)
    jax.block_until_ready((out_u, h_u, c_u))
    ref_out_u, ref_h_u, ref_c_u = _reference(embedded_words, input_lens, params, bidirect=False)
    np.testing.assert_allclose(np.asarray(out_u), ref_out_u, rtol=1e-4, atol=1e-4)
    np.testing.assert_allclose(np.asarray(h_u), ref_h_u, rtol=1e-4, atol=1e-4)
    np.testing.assert_allclose(np.asarray(c_u), ref_c_u, rtol=1e-4, atol=1e-4)

    print("KERNEL_OK")
</pallas_src>

<mosaic_0001>
module attributes {stable_mosaic.version = 11 : i64} {
  func.func @_encoder_kernel_bidi(%arg0: memref<16x32xf32, #tpu.memory_space<vmem>>, %arg1: memref<2x1xi32, #tpu.memory_space<vmem>>, %arg2: memref<32x128xf32, #tpu.memory_space<vmem>>, %arg3: memref<32x128xf32, #tpu.memory_space<vmem>>, %arg4: memref<1x128xf32, #tpu.memory_space<vmem>>, %arg5: memref<32x128xf32, #tpu.memory_space<vmem>>, %arg6: memref<32x128xf32, #tpu.memory_space<vmem>>, %arg7: memref<1x128xf32, #tpu.memory_space<vmem>>, %arg8: memref<32x32xf32, #tpu.memory_space<vmem>>, %arg9: memref<32x32xf32, #tpu.memory_space<vmem>>, %arg10: memref<1x32xf32, #tpu.memory_space<vmem>>, %arg11: memref<32x32xf32, #tpu.memory_space<vmem>>, %arg12: memref<32x32xf32, #tpu.memory_space<vmem>>, %arg13: memref<1x32xf32, #tpu.memory_space<vmem>>, %arg14: memref<16x32xf32, #tpu.memory_space<vmem>>, %arg15: memref<16x32xf32, #tpu.memory_space<vmem>>, %arg16: memref<2x32xf32, #tpu.memory_space<vmem>>, %arg17: memref<2x32xf32, #tpu.memory_space<vmem>>, %arg18: memref<16x128xf32, #tpu.memory_space<vmem>>, %arg19: memref<16x128xf32, #tpu.memory_space<vmem>>) attributes {dimension_semantics = [], scalar_prefetch = 0 : i64, scratch_operands = 2 : i64, tpu.core_type = #tpu.core_type<tc>} {
    %c0 = arith.constant 0 : index
    %c0_0 = arith.constant 0 : index
    %0 = vector.load %arg1[%c0, %c0_0] : memref<2x1xi32, #tpu.memory_space<vmem>>, vector<2x1xi32>
    %c0_1 = arith.constant 0 : index
    %c0_2 = arith.constant 0 : index
    %1 = vector.load %arg0[%c0_1, %c0_2] : memref<16x32xf32, #tpu.memory_space<vmem>>, vector<16x32xf32>
    %c0_3 = arith.constant 0 : index
    %c0_4 = arith.constant 0 : index
    %2 = vector.load %arg2[%c0_3, %c0_4] : memref<32x128xf32, #tpu.memory_space<vmem>>, vector<32x128xf32>
    %cst = arith.constant dense<0.000000e+00> : vector<16x128xf32>
    %3 = tpu.matmul %1, %2, %cst {dimension_numbers = #tpu.dot_dimension_numbers<[1], [0], [0], [1], [0, 0, 1, 1], [], []>} : vector<16x32xf32>, vector<32x128xf32>, vector<16x128xf32> -> vector<16x128xf32>
    %c0_5 = arith.constant 0 : index
    %c0_6 = arith.constant 0 : index
    %4 = vector.load %arg4[%c0_5, %c0_6] : memref<1x128xf32, #tpu.memory_space<vmem>>, vector<1x128xf32>
    %5 = vector.broadcast %4 : vector<1x128xf32> to vector<16x128xf32>
    %6 = arith.addf %3, %5 : vector<16x128xf32>
    %c0_7 = arith.constant 0 : index
    %c0_8 = arith.constant 0 : index
    %7 = vector.load %arg18[%c0_7, %c0_8] : memref<16x128xf32, #tpu.memory_space<vmem>>, vector<16x128xf32>
    tpu.vector_store %arg18[%c0_7, %c0_8], %6 {strides = array<i32>} : memref<16x128xf32, #tpu.memory_space<vmem>>, vector<16x128xf32>,
    %c0_9 = arith.constant 0 : index
    %c0_10 = arith.constant 0 : index
    %8 = vector.load %arg5[%c0_9, %c0_10] : memref<32x128xf32, #tpu.memory_space<vmem>>, vector<32x128xf32>
    %cst_11 = arith.constant dense<0.000000e+00> : vector<16x128xf32>
    %9 = tpu.matmul %1, %8, %cst_11 {dimension_numbers = #tpu.dot_dimension_numbers<[1], [0], [0], [1], [0, 0, 1, 1], [], []>} : vector<16x32xf32>, vector<32x128xf32>, vector<16x128xf32> -> vector<16x128xf32>
    %c0_12 = arith.constant 0 : index
    %c0_13 = arith.constant 0 : index
    %10 = vector.load %arg7[%c0_12, %c0_13] : memref<1x128xf32, #tpu.memory_space<vmem>>, vector<1x128xf32>
    %11 = vector.broadcast %10 : vector<1x128xf32> to vector<16x128xf32>
    %12 = arith.addf %9, %11 : vector<16x128xf32>
    %c0_14 = arith.constant 0 : index
    %c0_15 = arith.constant 0 : index
    %13 = vector.load %arg19[%c0_14, %c0_15] : memref<16x128xf32, #tpu.memory_space<vmem>>, vector<16x128xf32>
    tpu.vector_store %arg19[%c0_14, %c0_15], %12 {strides = array<i32>} : memref<16x128xf32, #tpu.memory_space<vmem>>, vector<16x128xf32>,
    %c0_16 = arith.constant 0 : index
    %c0_17 = arith.constant 0 : index
    %14 = vector.load %arg3[%c0_16, %c0_17] : memref<32x128xf32, #tpu.memory_space<vmem>>, vector<32x128xf32>
    %cst_18 = arith.constant 0.000000e+00 : f32
    %15 = vector.broadcast %cst_18 : f32 to vector<2x32xf32>
    %c0_i32 = arith.constant 0 : i32
    %c2_i32 = arith.constant 2 : i32
    %16 = arith.muli %c0_i32, %c2_i32 : i32
    %17 = tpu.assume_multiple %16, 2 : i32
    %18 = arith.index_cast %17 : i32 to index
    %c0_19 = arith.constant 0 : index
    %19 = vector.load %arg18[%18, %c0_19] : memref<16x128xf32, #tpu.memory_space<vmem>>, vector<2x128xf32>
    %cst_20 = arith.constant dense<0.000000e+00> : vector<2x128xf32>
    %20 = tpu.matmul %15, %14, %cst_20 {dimension_numbers = #tpu.dot_dimension_numbers<[1], [0], [0], [1], [0, 0, 1, 1], [], []>} : vector<2x32xf32>, vector<32x128xf32>, vector<2x128xf32> -> vector<2x128xf32>
    %21 = arith.addf %19, %20 : vector<2x128xf32>
    %22 = arith.negf %21 : vector<2x128xf32>
    %23 = math.exp %22 : vector<2x128xf32>
    %cst_21 = arith.constant 1.000000e+00 : f32
    %24 = vector.broadcast %cst_21 : f32 to vector<2x128xf32>
    %25 = arith.addf %24, %23 : vector<2x128xf32>
    %26 = arith.divf %24, %25 : vector<2x128xf32>
    %27 = vector.extract_strided_slice %26 {offsets = [0, 0], sizes = [2, 32], strides = [1, 1]} : vector<2x128xf32> to vector<2x32xf32>
    %28 = vector.extract_strided_slice %26 {offsets = [0, 32], sizes = [2, 32], strides = [1, 1]} : vector<2x128xf32> to vector<2x32xf32>
    %29 = vector.extract_strided_slice %26 {offsets = [0, 96], sizes = [2, 32], strides = [1, 1]} : vector<2x128xf32> to vector<2x32xf32>
    %30 = vector.extract_strided_slice %21 {offsets = [0, 64], sizes = [2, 32], strides = [1, 1]} : vector<2x128xf32> to vector<2x32xf32>
    %31 = math.tanh %30 : vector<2x32xf32>
    %32 = arith.mulf %28, %15 : vector<2x32xf32>
    %33 = arith.mulf %27, %31 : vector<2x32xf32>
    %34 = arith.addf %32, %33 : vector<2x32xf32>
    %35 = math.tanh %34 : vector<2x32xf32>
    %36 = arith.mulf %29, %35 : vector<2x32xf32>
    %37 = vector.broadcast %c0_i32 : i32 to vector<2x1xi32>
    %38 = arith.cmpi slt, %37, %0 : vector<2x1xi32>
    %cst_22 = arith.constant 0.000000e+00 : f32
    %39 = vector.shape_cast %38 : vector<2x1xi1> to vector<2x1xi1>
    %40 = vector.broadcast %39 : vector<2x1xi1> to vector<2x32xi1>
    %41 = vector.broadcast %cst_22 : f32 to vector<2x32xf32>
    %42 = arith.select %40, %36, %41 : vector<2x32xi1>, vector<2x32xf32>
    %43 = arith.index_cast %17 : i32 to index
    %c0_23 = arith.constant 0 : index
    %44 = vector.load %arg14[%43, %c0_23] : memref<16x32xf32, #tpu.memory_space<vmem>>, vector<2x32xf32>
    tpu.vector_store %arg14[%43, %c0_23], %42 {strides = array<i32>} : memref<16x32xf32, #tpu.memory_space<vmem>>, vector<2x32xf32>,
    %45 = vector.shape_cast %38 : vector<2x1xi1> to vector<2x1xi1>
    %46 = vector.broadcast %45 : vector<2x1xi1> to vector<2x32xi1>
    %47 = arith.select %46, %36, %15 : vector<2x32xi1>, vector<2x32xf32>
    %48 = vector.shape_cast %38 : vector<2x1xi1> to vector<2x1xi1>
    %49 = vector.broadcast %48 : vector<2x1xi1> to vector<2x32xi1>
    %50 = arith.select %49, %34, %15 : vector<2x32xi1>, vector<2x32xf32>
    %c1_i32 = arith.constant 1 : i32
    %c2_i32_24 = arith.constant 2 : i32
    %51 = arith.muli %c1_i32, %c2_i32_24 : i32
    %52 = tpu.assume_multiple %51, 2 : i32
    %53 = arith.index_cast %52 : i32 to index
    %c0_25 = arith.constant 0 : index
    %54 = vector.load %arg18[%53, %c0_25] : memref<16x128xf32, #tpu.memory_space<vmem>>, vector<2x128xf32>
    %cst_26 = arith.constant dense<0.000000e+00> : vector<2x128xf32>
    %55 = tpu.matmul %47, %14, %cst_26 {dimension_numbers = #tpu.dot_dimension_numbers<[1], [0], [0], [1], [0, 0, 1, 1], [], []>} : vector<2x32xf32>, vector<32x128xf32>, vector<2x128xf32> -> vector<2x128xf32>
    %56 = arith.addf %54, %55 : vector<2x128xf32>
    %57 = arith.negf %56 : vector<2x128xf32>
    %58 = math.exp %57 : vector<2x128xf32>
    %cst_27 = arith.constant 1.000000e+00 : f32
    %59 = vector.broadcast %cst_27 : f32 to vector<2x128xf32>
    %60 = arith.addf %59, %58 : vector<2x128xf32>
    %61 = arith.divf %59, %60 : vector<2x128xf32>
    %62 = vector.extract_strided_slice %61 {offsets = [0, 0], sizes = [2, 32], strides = [1, 1]} : vector<2x128xf32> to vector<2x32xf32>
    %63 = vector.extract_strided_slice %61 {offsets = [0, 32], sizes = [2, 32], strides = [1, 1]} : vector<2x128xf32> to vector<2x32xf32>
    %64 = vector.extract_strided_slice %61 {offsets = [0, 96], sizes = [2, 32], strides = [1, 1]} : vector<2x128xf32> to vector<2x32xf32>
    %65 = vector.extract_strided_slice %56 {offsets = [0, 64], sizes = [2, 32], strides = [1, 1]} : vector<2x128xf32> to vector<2x32xf32>
    %66 = math.tanh %65 : vector<2x32xf32>
    %67 = arith.mulf %63, %50 : vector<2x32xf32>
    %68 = arith.mulf %62, %66 : vector<2x32xf32>
    %69 = arith.addf %67, %68 : vector<2x32xf32>
    %70 = math.tanh %69 : vector<2x32xf32>
    %71 = arith.mulf %64, %70 : vector<2x32xf32>
    %72 = vector.broadcast %c1_i32 : i32 to vector<2x1xi32>
    %73 = arith.cmpi slt, %72, %0 : vector<2x1xi32>
    %cst_28 = arith.constant 0.000000e+00 : f32
    %74 = vector.shape_cast %73 : vector<2x1xi1> to vector<2x1xi1>
    %75 = vector.broadcast %74 : vector<2x1xi1> to vector<2x32xi1>
    %76 = vector.broadcast %cst_28 : f32 to vector<2x32xf32>
    %77 = arith.select %75, %71, %76 : vector<2x32xi1>, vector<2x32xf32>
    %78 = arith.index_cast %52 : i32 to index
    %c0_29 = arith.constant 0 : index
    %79 = vector.load %arg14[%78, %c0_29] : memref<16x32xf32, #tpu.memory_space<vmem>>, vector<2x32xf32>
    tpu.vector_store %arg14[%78, %c0_29], %77 {strides = array<i32>} : memref<16x32xf32, #tpu.memory_space<vmem>>, vector<2x32xf32>,
    %80 = vector.shape_cast %73 : vector<2x1xi1> to vector<2x1xi1>
    %81 = vector.broadcast %80 : vector<2x1xi1> to vector<2x32xi1>
    %82 = arith.select %81, %71, %47 : vector<2x32xi1>, vector<2x32xf32>
    %83 = vector.shape_cast %73 : vector<2x1xi1> to vector<2x1xi1>
    %84 = vector.broadcast %83 : vector<2x1xi1> to vector<2x32xi1>
    %85 = arith.select %84, %69, %50 : vector<2x32xi1>, vector<2x32xf32>
    %c2_i32_30 = arith.constant 2 : i32
    %c2_i32_31 = arith.constant 2 : i32
    %86 = arith.muli %c2_i32_30, %c2_i32_31 : i32
    %87 = tpu.assume_multiple %86, 2 : i32
    %88 = arith.index_cast %87 : i32 to index
    %c0_32 = arith.constant 0 : index
    %89 = vector.load %arg18[%88, %c0_32] : memref<16x128xf32, #tpu.memory_space<vmem>>, vector<2x128xf32>
    %cst_33 = arith.constant dense<0.000000e+00> : vector<2x128xf32>
    %90 = tpu.matmul %82, %14, %cst_33 {dimension_numbers = #tpu.dot_dimension_numbers<[1], [0], [0], [1], [0, 0, 1, 1], [], []>} : vector<2x32xf32>, vector<32x128xf32>, vector<2x128xf32> -> vector<2x128xf32>
    %91 = arith.addf %89, %90 : vector<2x128xf32>
    %92 = arith.negf %91 : vector<2x128xf32>
    %93 = math.exp %92 : vector<2x128xf32>
    %cst_34 = arith.constant 1.000000e+00 : f32
    %94 = vector.broadcast %cst_34 : f32 to vector<2x128xf32>
    %95 = arith.addf %94, %93 : vector<2x128xf32>
    %96 = arith.divf %94, %95 : vector<2x128xf32>
    %97 = vector.extract_strided_slice %96 {offsets = [0, 0], sizes = [2, 32], strides = [1, 1]} : vector<2x128xf32> to vector<2x32xf32>
    %98 = vector.extract_strided_slice %96 {offsets = [0, 32], sizes = [2, 32], strides = [1, 1]} : vector<2x128xf32> to vector<2x32xf32>
    %99 = vector.extract_strided_slice %96 {offsets = [0, 96], sizes = [2, 32], strides = [1, 1]} : vector<2x128xf32> to vector<2x32xf32>
    %100 = vector.extract_strided_slice %91 {offsets = [0, 64], sizes = [2, 32], strides = [1, 1]} : vector<2x128xf32> to vector<2x32xf32>
    %101 = math.tanh %100 : vector<2x32xf32>
    %102 = arith.mulf %98, %85 : vector<2x32xf32>
    %103 = arith.mulf %97, %101 : vector<2x32xf32>
    %104 = arith.addf %102, %103 : vector<2x32xf32>
    %105 = math.tanh %104 : vector<2x32xf32>
    %106 = arith.mulf %99, %105 : vector<2x32xf32>
    %107 = vector.broadcast %c2_i32_30 : i32 to vector<2x1xi32>
    %108 = arith.cmpi slt, %107, %0 : vector<2x1xi32>
    %cst_35 = arith.constant 0.000000e+00 : f32
    %109 = vector.shape_cast %108 : vector<2x1xi1> to vector<2x1xi1>
    %110 = vector.broadcast %109 : vector<2x1xi1> to vector<2x32xi1>
    %111 = vector.broadcast %cst_35 : f32 to vector<2x32xf32>
    %112 = arith.select %110, %106, %111 : vector<2x32xi1>, vector<2x32xf32>
    %113 = arith.index_cast %87 : i32 to index
    %c0_36 = arith.constant 0 : index
    %114 = vector.load %arg14[%113, %c0_36] : memref<16x32xf32, #tpu.memory_space<vmem>>, vector<2x32xf32>
    tpu.vector_store %arg14[%113, %c0_36], %112 {strides = array<i32>} : memref<16x32xf32, #tpu.memory_space<vmem>>, vector<2x32xf32>,
    %115 = vector.shape_cast %108 : vector<2x1xi1> to vector<2x1xi1>
    %116 = vector.broadcast %115 : vector<2x1xi1> to vector<2x32xi1>
    %117 = arith.select %116, %106, %82 : vector<2x32xi1>, vector<2x32xf32>
    %118 = vector.shape_cast %108 : vector<2x1xi1> to vector<2x1xi1>
    %119 = vector.broadcast %118 : vector<2x1xi1> to vector<2x32xi1>
    %120 = arith.select %119, %104, %85 : vector<2x32xi1>, vector<2x32xf32>
    %c3_i32 = arith.constant 3 : i32
    %c2_i32_37 = arith.constant 2 : i32
    %121 = arith.muli %c3_i32, %c2_i32_37 : i32
    %122 = tpu.assume_multiple %121, 2 : i32
    %123 = arith.index_cast %122 : i32 to index
    %c0_38 = arith.constant 0 : index
    %124 = vector.load %arg18[%123, %c0_38] : memref<16x128xf32, #tpu.memory_space<vmem>>, vector<2x128xf32>
    %cst_39 = arith.constant dense<0.000000e+00> : vector<2x128xf32>
    %125 = tpu.matmul %117, %14, %cst_39 {dimension_numbers = #tpu.dot_dimension_numbers<[1], [0], [0], [1], [0, 0, 1, 1], [], []>} : vector<2x32xf32>, vector<32x128xf32>, vector<2x128xf32> -> vector<2x128xf32>
    %126 = arith.addf %124, %125 : vector<2x128xf32>
    %127 = arith.negf %126 : vector<2x128xf32>
    %128 = math.exp %127 : vector<2x128xf32>
    %cst_40 = arith.constant 1.000000e+00 : f32
    %129 = vector.broadcast %cst_40 : f32 to vector<2x128xf32>
    %130 = arith.addf %129, %128 : vector<2x128xf32>
    %131 = arith.divf %129, %130 : vector<2x128xf32>
    %132 = vector.extract_strided_slice %131 {offsets = [0, 0], sizes = [2, 32], strides = [1, 1]} : vector<2x128xf32> to vector<2x32xf32>
    %133 = vector.extract_strided_slice %131 {offsets = [0, 32], sizes = [2, 32], strides = [1, 1]} : vector<2x128xf32> to vector<2x32xf32>
    %134 = vector.extract_strided_slice %131 {offsets = [0, 96], sizes = [2, 32], strides = [1, 1]} : vector<2x128xf32> to vector<2x32xf32>
    %135 = vector.extract_strided_slice %126 {offsets = [0, 64], sizes = [2, 32], strides = [1, 1]} : vector<2x128xf32> to vector<2x32xf32>
    %136 = math.tanh %135 : vector<2x32xf32>
    %137 = arith.mulf %133, %120 : vector<2x32xf32>
    %138 = arith.mulf %132, %136 : vector<2x32xf32>
    %139 = arith.addf %137, %138 : vector<2x32xf32>
    %140 = math.tanh %139 : vector<2x32xf32>
    %141 = arith.mulf %134, %140 : vector<2x32xf32>
    %142 = vector.broadcast %c3_i32 : i32 to vector<2x1xi32>
    %143 = arith.cmpi slt, %142, %0 : vector<2x1xi32>
    %cst_41 = arith.constant 0.000000e+00 : f32
    %144 = vector.shape_cast %143 : vector<2x1xi1> to vector<2x1xi1>
    %145 = vector.broadcast %144 : vector<2x1xi1> to vector<2x32xi1>
    %146 = vector.broadcast %cst_41 : f32 to vector<2x32xf32>
    %147 = arith.select %145, %141, %146 : vector<2x32xi1>, vector<2x32xf32>
    %148 = arith.index_cast %122 : i32 to index
    %c0_42 = arith.constant 0 : index
    %149 = vector.load %arg14[%148, %c0_42] : memref<16x32xf32, #tpu.memory_space<vmem>>, vector<2x32xf32>
    tpu.vector_store %arg14[%148, %c0_42], %147 {strides = array<i32>} : memref<16x32xf32, #tpu.memory_space<vmem>>, vector<2x32xf32>,
    %150 = vector.shape_cast %143 : vector<2x1xi1> to vector<2x1xi1>
    %151 = vector.broadcast %150 : vector<2x1xi1> to vector<2x32xi1>
    %152 = arith.select %151, %141, %117 : vector<2x32xi1>, vector<2x32xf32>
    %153 = vector.shape_cast %143 : vector<2x1xi1> to vector<2x1xi1>
    %154 = vector.broadcast %153 : vector<2x1xi1> to vector<2x32xi1>
    %155 = arith.select %154, %139, %120 : vector<2x32xi1>, vector<2x32xf32>
    %c4_i32 = arith.constant 4 : i32
    %c2_i32_43 = arith.constant 2 : i32
    %156 = arith.muli %c4_i32, %c2_i32_43 : i32
    %157 = tpu.assume_multiple %156, 2 : i32
    %158 = arith.index_cast %157 : i32 to index
    %c0_44 = arith.constant 0 : index
    %159 = vector.load %arg18[%158, %c0_44] : memref<16x128xf32, #tpu.memory_space<vmem>>, vector<2x128xf32>
    %cst_45 = arith.constant dense<0.000000e+00> : vector<2x128xf32>
    %160 = tpu.matmul %152, %14, %cst_45 {dimension_numbers = #tpu.dot_dimension_numbers<[1], [0], [0], [1], [0, 0, 1, 1], [], []>} : vector<2x32xf32>, vector<32x128xf32>, vector<2x128xf32> -> vector<2x128xf32>
    %161 = arith.addf %159, %160 : vector<2x128xf32>
    %162 = arith.negf %161 : vector<2x128xf32>
    %163 = math.exp %162 : vector<2x128xf32>
    %cst_46 = arith.constant 1.000000e+00 : f32
    %164 = vector.broadcast %cst_46 : f32 to vector<2x128xf32>
    %165 = arith.addf %164, %163 : vector<2x128xf32>
    %166 = arith.divf %164, %165 : vector<2x128xf32>
    %167 = vector.extract_strided_slice %166 {offsets = [0, 0], sizes = [2, 32], strides = [1, 1]} : vector<2x128xf32> to vector<2x32xf32>
    %168 = vector.extract_strided_slice %166 {offsets = [0, 32], sizes = [2, 32], strides = [1, 1]} : vector<2x128xf32> to vector<2x32xf32>
    %169 = vector.extract_strided_slice %166 {offsets = [0, 96], sizes = [2, 32], strides = [1, 1]} : vector<2x128xf32> to vector<2x32xf32>
    %170 = vector.extract_strided_slice %161 {offsets = [0, 64], sizes = [2, 32], strides = [1, 1]} : vector<2x128xf32> to vector<2x32xf32>
    %171 = math.tanh %170 : vector<2x32xf32>
    %172 = arith.mulf %168, %155 : vector<2x32xf32>
    %173 = arith.mulf %167, %171 : vector<2x32xf32>
    %174 = arith.addf %172, %173 : vector<2x32xf32>
    %175 = math.tanh %174 : vector<2x32xf32>
    %176 = arith.mulf %169, %175 : vector<2x32xf32>
    %177 = vector.broadcast %c4_i32 : i32 to vector<2x1xi32>
    %178 = arith.cmpi slt, %177, %0 : vector<2x1xi32>
    %cst_47 = arith.constant 0.000000e+00 : f32
    %179 = vector.shape_cast %178 : vector<2x1xi1> to vector<2x1xi1>
    %180 = vector.broadcast %179 : vector<2x1xi1> to vector<2x32xi1>
    %181 = vector.broadcast %cst_47 : f32 to vector<2x32xf32>
    %182 = arith.select %180, %176, %181 : vector<2x32xi1>, vector<2x32xf32>
    %183 = arith.index_cast %157 : i32 to index
    %c0_48 = arith.constant 0 : index
    %184 = vector.load %arg14[%183, %c0_48] : memref<16x32xf32, #tpu.memory_space<vmem>>, vector<2x32xf32>
    tpu.vector_store %arg14[%183, %c0_48], %182 {strides = array<i32>} : memref<16x32xf32, #tpu.memory_space<vmem>>, vector<2x32xf32>,
    %185 = vector.shape_cast %178 : vector<2x1xi1> to vector<2x1xi1>
    %186 = vector.broadcast %185 : vector<2x1xi1> to vector<2x32xi1>
    %187 = arith.select %186, %176, %152 : vector<2x32xi1>, vector<2x32xf32>
    %188 = vector.shape_cast %178 : vector<2x1xi1> to vector<2x1xi1>
    %189 = vector.broadcast %188 : vector<2x1xi1> to vector<2x32xi1>
    %190 = arith.select %189, %174, %155 : vector<2x32xi1>, vector<2x32xf32>
    %c5_i32 = arith.constant 5 : i32
    %c2_i32_49 = arith.constant 2 : i32
    %191 = arith.muli %c5_i32, %c2_i32_49 : i32
    %192 = tpu.assume_multiple %191, 2 : i32
    %193 = arith.index_cast %192 : i32 to index
    %c0_50 = arith.constant 0 : index
    %194 = vector.load %arg18[%193, %c0_50] : memref<16x128xf32, #tpu.memory_space<vmem>>, vector<2x128xf32>
    %cst_51 = arith.constant dense<0.000000e+00> : vector<2x128xf32>
    %195 = tpu.matmul %187, %14, %cst_51 {dimension_numbers = #tpu.dot_dimension_numbers<[1], [0], [0], [1], [0, 0, 1, 1], [], []>} : vector<2x32xf32>, vector<32x128xf32>, vector<2x128xf32> -> vector<2x128xf32>
    %196 = arith.addf %194, %195 : vector<2x128xf32>
    %197 = arith.negf %196 : vector<2x128xf32>
    %198 = math.exp %197 : vector<2x128xf32>
    %cst_52 = arith.constant 1.000000e+00 : f32
    %199 = vector.broadcast %cst_52 : f32 to vector<2x128xf32>
    %200 = arith.addf %199, %198 : vector<2x128xf32>
    %201 = arith.divf %199, %200 : vector<2x128xf32>
    %202 = vector.extract_strided_slice %201 {offsets = [0, 0], sizes = [2, 32], strides = [1, 1]} : vector<2x128xf32> to vector<2x32xf32>
    %203 = vector.extract_strided_slice %201 {offsets = [0, 32], sizes = [2, 32], strides = [1, 1]} : vector<2x128xf32> to vector<2x32xf32>
    %204 = vector.extract_strided_slice %201 {offsets = [0, 96], sizes = [2, 32], strides = [1, 1]} : vector<2x128xf32> to vector<2x32xf32>
    %205 = vector.extract_strided_slice %196 {offsets = [0, 64], sizes = [2, 32], strides = [1, 1]} : vector<2x128xf32> to vector<2x32xf32>
    %206 = math.tanh %205 : vector<2x32xf32>
    %207 = arith.mulf %203, %190 : vector<2x32xf32>
    %208 = arith.mulf %202, %206 : vector<2x32xf32>
    %209 = arith.addf %207, %208 : vector<2x32xf32>
    %210 = math.tanh %209 : vector<2x32xf32>
    %211 = arith.mulf %204, %210 : vector<2x32xf32>
    %212 = vector.broadcast %c5_i32 : i32 to vector<2x1xi32>
    %213 = arith.cmpi slt, %212, %0 : vector<2x1xi32>
    %cst_53 = arith.constant 0.000000e+00 : f32
    %214 = vector.shape_cast %213 : vector<2x1xi1> to vector<2x1xi1>
    %215 = vector.broadcast %214 : vector<2x1xi1> to vector<2x32xi1>
    %216 = vector.broadcast %cst_53 : f32 to vector<2x32xf32>
    %217 = arith.select %215, %211, %216 : vector<2x32xi1>, vector<2x32xf32>
    %218 = arith.index_cast %192 : i32 to index
    %c0_54 = arith.constant 0 : index
    %219 = vector.load %arg14[%218, %c0_54] : memref<16x32xf32, #tpu.memory_space<vmem>>, vector<2x32xf32>
    tpu.vector_store %arg14[%218, %c0_54], %217 {strides = array<i32>} : memref<16x32xf32, #tpu.memory_space<vmem>>, vector<2x32xf32>,
    %220 = vector.shape_cast %213 : vector<2x1xi1> to vector<2x1xi1>
    %221 = vector.broadcast %220 : vector<2x1xi1> to vector<2x32xi1>
    %222 = arith.select %221, %211, %187 : vector<2x32xi1>, vector<2x32xf32>
    %223 = vector.shape_cast %213 : vector<2x1xi1> to vector<2x1xi1>
    %224 = vector.broadcast %223 : vector<2x1xi1> to vector<2x32xi1>
    %225 = arith.select %224, %209, %190 : vector<2x32xi1>, vector<2x32xf32>
    %c6_i32 = arith.constant 6 : i32
    %c2_i32_55 = arith.constant 2 : i32
    %226 = arith.muli %c6_i32, %c2_i32_55 : i32
    %227 = tpu.assume_multiple %226, 2 : i32
    %228 = arith.index_cast %227 : i32 to index
    %c0_56 = arith.constant 0 : index
    %229 = vector.load %arg18[%228, %c0_56] : memref<16x128xf32, #tpu.memory_space<vmem>>, vector<2x128xf32>
    %cst_57 = arith.constant dense<0.000000e+00> : vector<2x128xf32>
    %230 = tpu.matmul %222, %14, %cst_57 {dimension_numbers = #tpu.dot_dimension_numbers<[1], [0], [0], [1], [0, 0, 1, 1], [], []>} : vector<2x32xf32>, vector<32x128xf32>, vector<2x128xf32> -> vector<2x128xf32>
    %231 = arith.addf %229, %230 : vector<2x128xf32>
    %232 = arith.negf %231 : vector<2x128xf32>
    %233 = math.exp %232 : vector<2x128xf32>
    %cst_58 = arith.constant 1.000000e+00 : f32
    %234 = vector.broadcast %cst_58 : f32 to vector<2x128xf32>
    %235 = arith.addf %234, %233 : vector<2x128xf32>
    %236 = arith.divf %234, %235 : vector<2x128xf32>
    %237 = vector.extract_strided_slice %236 {offsets = [0, 0], sizes = [2, 32], strides = [1, 1]} : vector<2x128xf32> to vector<2x32xf32>
    %238 = vector.extract_strided_slice %236 {offsets = [0, 32], sizes = [2, 32], strides = [1, 1]} : vector<2x128xf32> to vector<2x32xf32>
    %239 = vector.extract_strided_slice %236 {offsets = [0, 96], sizes = [2, 32], strides = [1, 1]} : vector<2x128xf32> to vector<2x32xf32>
    %240 = vector.extract_strided_slice %231 {offsets = [0, 64], sizes = [2, 32], strides = [1, 1]} : vector<2x128xf32> to vector<2x32xf32>
    %241 = math.tanh %240 : vector<2x32xf32>
    %242 = arith.mulf %238, %225 : vector<2x32xf32>
    %243 = arith.mulf %237, %241 : vector<2x32xf32>
    %244 = arith.addf %242, %243 : vector<2x32xf32>
    %245 = math.tanh %244 : vector<2x32xf32>
    %246 = arith.mulf %239, %245 : vector<2x32xf32>
    %247 = vector.broadcast %c6_i32 : i32 to vector<2x1xi32>
    %248 = arith.cmpi slt, %247, %0 : vector<2x1xi32>
    %cst_59 = arith.constant 0.000000e+00 : f32
    %249 = vector.shape_cast %248 : vector<2x1xi1> to vector<2x1xi1>
    %250 = vector.broadcast %249 : vector<2x1xi1> to vector<2x32xi1>
    %251 = vector.broadcast %cst_59 : f32 to vector<2x32xf32>
    %252 = arith.select %250, %246, %251 : vector<2x32xi1>, vector<2x32xf32>
    %253 = arith.index_cast %227 : i32 to index
    %c0_60 = arith.constant 0 : index
    %254 = vector.load %arg14[%253, %c0_60] : memref<16x32xf32, #tpu.memory_space<vmem>>, vector<2x32xf32>
    tpu.vector_store %arg14[%253, %c0_60], %252 {strides = array<i32>} : memref<16x32xf32, #tpu.memory_space<vmem>>, vector<2x32xf32>,
    %255 = vector.shape_cast %248 : vector<2x1xi1> to vector<2x1xi1>
    %256 = vector.broadcast %255 : vector<2x1xi1> to vector<2x32xi1>
    %257 = arith.select %256, %246, %222 : vector<2x32xi1>, vector<2x32xf32>
    %258 = vector.shape_cast %248 : vector<2x1xi1> to vector<2x1xi1>
    %259 = vector.broadcast %258 : vector<2x1xi1> to vector<2x32xi1>
    %260 = arith.select %259, %244, %225 : vector<2x32xi1>, vector<2x32xf32>
    %c7_i32 = arith.constant 7 : i32
    %c2_i32_61 = arith.constant 2 : i32
    %261 = arith.muli %c7_i32, %c2_i32_61 : i32
    %262 = tpu.assume_multiple %261, 2 : i32
    %263 = arith.index_cast %262 : i32 to index
    %c0_62 = arith.constant 0 : index
    %264 = vector.load %arg18[%263, %c0_62] : memref<16x128xf32, #tpu.memory_space<vmem>>, vector<2x128xf32>
    %cst_63 = arith.constant dense<0.000000e+00> : vector<2x128xf32>
    %265 = tpu.matmul %257, %14, %cst_63 {dimension_numbers = #tpu.dot_dimension_numbers<[1], [0], [0], [1], [0, 0, 1, 1], [], []>} : vector<2x32xf32>, vector<32x128xf32>, vector<2x128xf32> -> vector<2x128xf32>
    %266 = arith.addf %264, %265 : vector<2x128xf32>
    %267 = arith.negf %266 : vector<2x128xf32>
    %268 = math.exp %267 : vector<2x128xf32>
    %cst_64 = arith.constant 1.000000e+00 : f32
    %269 = vector.broadcast %cst_64 : f32 to vector<2x128xf32>
    %270 = arith.addf %269, %268 : vector<2x128xf32>
    %271 = arith.divf %269, %270 : vector<2x128xf32>
    %272 = vector.extract_strided_slice %271 {offsets = [0, 0], sizes = [2, 32], strides = [1, 1]} : vector<2x128xf32> to vector<2x32xf32>
    %273 = vector.extract_strided_slice %271 {offsets = [0, 32], sizes = [2, 32], strides = [1, 1]} : vector<2x128xf32> to vector<2x32xf32>
    %274 = vector.extract_strided_slice %271 {offsets = [0, 96], sizes = [2, 32], strides = [1, 1]} : vector<2x128xf32> to vector<2x32xf32>
    %275 = vector.extract_strided_slice %266 {offsets = [0, 64], sizes = [2, 32], strides = [1, 1]} : vector<2x128xf32> to vector<2x32xf32>
    %276 = math.tanh %275 : vector<2x32xf32>
    %277 = arith.mulf %273, %260 : vector<2x32xf32>
    %278 = arith.mulf %272, %276 : vector<2x32xf32>
    %279 = arith.addf %277, %278 : vector<2x32xf32>
    %280 = math.tanh %279 : vector<2x32xf32>
    %281 = arith.mulf %274, %280 : vector<2x32xf32>
    %282 = vector.broadcast %c7_i32 : i32 to vector<2x1xi32>
    %283 = arith.cmpi slt, %282, %0 : vector<2x1xi32>
    %cst_65 = arith.constant 0.000000e+00 : f32
    %284 = vector.shape_cast %283 : vector<2x1xi1> to vector<2x1xi1>
    %285 = vector.broadcast %284 : vector<2x1xi1> to vector<2x32xi1>
    %286 = vector.broadcast %cst_65 : f32 to vector<2x32xf32>
    %287 = arith.select %285, %281, %286 : vector<2x32xi1>, vector<2x32xf32>
    %288 = arith.index_cast %262 : i32 to index
    %c0_66 = arith.constant 0 : index
    %289 = vector.load %arg14[%288, %c0_66] : memref<16x32xf32, #tpu.memory_space<vmem>>, vector<2x32xf32>
    tpu.vector_store %arg14[%288, %c0_66], %287 {strides = array<i32>} : memref<16x32xf32, #tpu.memory_space<vmem>>, vector<2x32xf32>,
    %290 = vector.shape_cast %283 : vector<2x1xi1> to vector<2x1xi1>
    %291 = vector.broadcast %290 : vector<2x1xi1> to vector<2x32xi1>
    %292 = arith.select %291, %281, %257 : vector<2x32xi1>, vector<2x32xf32>
    %293 = vector.shape_cast %283 : vector<2x1xi1> to vector<2x1xi1>
    %294 = vector.broadcast %293 : vector<2x1xi1> to vector<2x32xi1>
    %295 = arith.select %294, %279, %260 : vector<2x32xi1>, vector<2x32xf32>
    %c8_i32 = arith.constant 8 : i32
    %c0_67 = arith.constant 0 : index
    %c0_68 = arith.constant 0 : index
    %296 = vector.load %arg6[%c0_67, %c0_68] : memref<32x128xf32, #tpu.memory_space<vmem>>, vector<32x128xf32>
    %cst_69 = arith.constant 0.000000e+00 : f32
    %297 = vector.broadcast %cst_69 : f32 to vector<2x32xf32>
    %c0_i32_70 = arith.constant 0 : i32
    %c7_i32_71 = arith.constant 7 : i32
    %298 = arith.subi %c7_i32_71, %c0_i32_70 : i32
    %c2_i32_72 = arith.constant 2 : i32
    %299 = arith.muli %298, %c2_i32_72 : i32
    %300 = tpu.assume_multiple %299, 2 : i32
    %301 = arith.index_cast %300 : i32 to index
    %c0_73 = arith.constant 0 : index
    %302 = vector.load %arg19[%301, %c0_73] : memref<16x128xf32, #tpu.memory_space<vmem>>, vector<2x128xf32>
    %cst_74 = arith.constant dense<0.000000e+00> : vector<2x128xf32>
    %303 = tpu.matmul %297, %296, %cst_74 {dimension_numbers = #tpu.dot_dimension_numbers<[1], [0], [0], [1], [0, 0, 1, 1], [], []>} : vector<2x32xf32>, vector<32x128xf32>, vector<2x128xf32> -> vector<2x128xf32>
    %304 = arith.addf %302, %303 : vector<2x128xf32>
    %305 = arith.negf %304 : vector<2x128xf32>
    %306 = math.exp %305 : vector<2x128xf32>
    %cst_75 = arith.constant 1.000000e+00 : f32
    %307 = vector.broadcast %cst_75 : f32 to vector<2x128xf32>
    %308 = arith.addf %307, %306 : vector<2x128xf32>
    %309 = arith.divf %307, %308 : vector<2x128xf32>
    %310 = vector.extract_strided_slice %309 {offsets = [0, 0], sizes = [2, 32], strides = [1, 1]} : vector<2x128xf32> to vector<2x32xf32>
    %311 = vector.extract_strided_slice %309 {offsets = [0, 32], sizes = [2, 32], strides = [1, 1]} : vector<2x128xf32> to vector<2x32xf32>
    %312 = vector.extract_strided_slice %309 {offsets = [0, 96], sizes = [2, 32], strides = [1, 1]} : vector<2x128xf32> to vector<2x32xf32>
    %313 = vector.extract_strided_slice %304 {offsets = [0, 64], sizes = [2, 32], strides = [1, 1]} : vector<2x128xf32> to vector<2x32xf32>
    %314 = math.tanh %313 : vector<2x32xf32>
    %315 = arith.mulf %311, %297 : vector<2x32xf32>
    %316 = arith.mulf %310, %314 : vector<2x32xf32>
    %317 = arith.addf %315, %316 : vector<2x32xf32>
    %318 = math.tanh %317 : vector<2x32xf32>
    %319 = arith.mulf %312, %318 : vector<2x32xf32>
    %320 = vector.broadcast %298 : i32 to vector<2x1xi32>
    %321 = arith.cmpi slt, %320, %0 : vector<2x1xi32>
    %cst_76 = arith.constant 0.000000e+00 : f32
    %322 = vector.shape_cast %321 : vector<2x1xi1> to vector<2x1xi1>
    %323 = vector.broadcast %322 : vector<2x1xi1> to vector<2x32xi1>
    %324 = vector.broadcast %cst_76 : f32 to vector<2x32xf32>
    %325 = arith.select %323, %319, %324 : vector<2x32xi1>, vector<2x32xf32>
    %326 = arith.index_cast %300 : i32 to index
    %c0_77 = arith.constant 0 : index
    %327 = vector.load %arg15[%326, %c0_77] : memref<16x32xf32, #tpu.memory_space<vmem>>, vector<2x32xf32>
    tpu.vector_store %arg15[%326, %c0_77], %325 {strides = array<i32>} : memref<16x32xf32, #tpu.memory_space<vmem>>, vector<2x32xf32>,
    %328 = vector.shape_cast %321 : vector<2x1xi1> to vector<2x1xi1>
    %329 = vector.broadcast %328 : vector<2x1xi1> to vector<2x32xi1>
    %330 = arith.select %329, %319, %297 : vector<2x32xi1>, vector<2x32xf32>
    %331 = vector.shape_cast %321 : vector<2x1xi1> to vector<2x1xi1>
    %332 = vector.broadcast %331 : vector<2x1xi1> to vector<2x32xi1>
    %333 = arith.select %332, %317, %297 : vector<2x32xi1>, vector<2x32xf32>
    %c1_i32_78 = arith.constant 1 : i32
    %c7_i32_79 = arith.constant 7 : i32
    %334 = arith.subi %c7_i32_79, %c1_i32_78 : i32
    %c2_i32_80 = arith.constant 2 : i32
    %335 = arith.muli %334, %c2_i32_80 : i32
    %336 = tpu.assume_multiple %335, 2 : i32
    %337 = arith.index_cast %336 : i32 to index
    %c0_81 = arith.constant 0 : index
    %338 = vector.load %arg19[%337, %c0_81] : memref<16x128xf32, #tpu.memory_space<vmem>>, vector<2x128xf32>
    %cst_82 = arith.constant dense<0.000000e+00> : vector<2x128xf32>
    %339 = tpu.matmul %330, %296, %cst_82 {dimension_numbers = #tpu.dot_dimension_numbers<[1], [0], [0], [1], [0, 0, 1, 1], [], []>} : vector<2x32xf32>, vector<32x128xf32>, vector<2x128xf32> -> vector<2x128xf32>
    %340 = arith.addf %338, %339 : vector<2x128xf32>
    %341 = arith.negf %340 : vector<2x128xf32>
    %342 = math.exp %341 : vector<2x128xf32>
    %cst_83 = arith.constant 1.000000e+00 : f32
    %343 = vector.broadcast %cst_83 : f32 to vector<2x128xf32>
    %344 = arith.addf %343, %342 : vector<2x128xf32>
    %345 = arith.divf %343, %344 : vector<2x128xf32>
    %346 = vector.extract_strided_slice %345 {offsets = [0, 0], sizes = [2, 32], strides = [1, 1]} : vector<2x128xf32> to vector<2x32xf32>
    %347 = vector.extract_strided_slice %345 {offsets = [0, 32], sizes = [2, 32], strides = [1, 1]} : vector<2x128xf32> to vector<2x32xf32>
    %348 = vector.extract_strided_slice %345 {offsets = [0, 96], sizes = [2, 32], strides = [1, 1]} : vector<2x128xf32> to vector<2x32xf32>
    %349 = vector.extract_strided_slice %340 {offsets = [0, 64], sizes = [2, 32], strides = [1, 1]} : vector<2x128xf32> to vector<2x32xf32>
    %350 = math.tanh %349 : vector<2x32xf32>
    %351 = arith.mulf %347, %333 : vector<2x32xf32>
    %352 = arith.mulf %346, %350 : vector<2x32xf32>
    %353 = arith.addf %351, %352 : vector<2x32xf32>
    %354 = math.tanh %353 : vector<2x32xf32>
    %355 = arith.mulf %348, %354 : vector<2x32xf32>
    %356 = vector.broadcast %334 : i32 to vector<2x1xi32>
    %357 = arith.cmpi slt, %356, %0 : vector<2x1xi32>
    %cst_84 = arith.constant 0.000000e+00 : f32
    %358 = vector.shape_cast %357 : vector<2x1xi1> to vector<2x1xi1>
    %359 = vector.broadcast %358 : vector<2x1xi1> to vector<2x32xi1>
    %360 = vector.broadcast %cst_84 : f32 to vector<2x32xf32>
    %361 = arith.select %359, %355, %360 : vector<2x32xi1>, vector<2x32xf32>
    %362 = arith.index_cast %336 : i32 to index
    %c0_85 = arith.constant 0 : index
    %363 = vector.load %arg15[%362, %c0_85] : memref<16x32xf32, #tpu.memory_space<vmem>>, vector<2x32xf32>
    tpu.vector_store %arg15[%362, %c0_85], %361 {strides = array<i32>} : memref<16x32xf32, #tpu.memory_space<vmem>>, vector<2x32xf32>,
    %364 = vector.shape_cast %357 : vector<2x1xi1> to vector<2x1xi1>
    %365 = vector.broadcast %364 : vector<2x1xi1> to vector<2x32xi1>
    %366 = arith.select %365, %355, %330 : vector<2x32xi1>, vector<2x32xf32>
    %367 = vector.shape_cast %357 : vector<2x1xi1> to vector<2x1xi1>
    %368 = vector.broadcast %367 : vector<2x1xi1> to vector<2x32xi1>
    %369 = arith.select %368, %353, %333 : vector<2x32xi1>, vector<2x32xf32>
    %c2_i32_86 = arith.constant 2 : i32
    %c7_i32_87 = arith.constant 7 : i32
    %370 = arith.subi %c7_i32_87, %c2_i32_86 : i32
    %c2_i32_88 = arith.constant 2 : i32
    %371 = arith.muli %370, %c2_i32_88 : i32
    %372 = tpu.assume_multiple %371, 2 : i32
    %373 = arith.index_cast %372 : i32 to index
    %c0_89 = arith.constant 0 : index
    %374 = vector.load %arg19[%373, %c0_89] : memref<16x128xf32, #tpu.memory_space<vmem>>, vector<2x128xf32>
    %cst_90 = arith.constant dense<0.000000e+00> : vector<2x128xf32>
    %375 = tpu.matmul %366, %296, %cst_90 {dimension_numbers = #tpu.dot_dimension_numbers<[1], [0], [0], [1], [0, 0, 1, 1], [], []>} : vector<2x32xf32>, vector<32x128xf32>, vector<2x128xf32> -> vector<2x128xf32>
    %376 = arith.addf %374, %375 : vector<2x128xf32>
    %377 = arith.negf %376 : vector<2x128xf32>
    %378 = math.exp %377 : vector<2x128xf32>
    %cst_91 = arith.constant 1.000000e+00 : f32
    %379 = vector.broadcast %cst_91 : f32 to vector<2x128xf32>
    %380 = arith.addf %379, %378 : vector<2x128xf32>
    %381 = arith.divf %379, %380 : vector<2x128xf32>
    %382 = vector.extract_strided_slice %381 {offsets = [0, 0], sizes = [2, 32], strides = [1, 1]} : vector<2x128xf32> to vector<2x32xf32>
    %383 = vector.extract_strided_slice %381 {offsets = [0, 32], sizes = [2, 32], strides = [1, 1]} : vector<2x128xf32> to vector<2x32xf32>
    %384 = vector.extract_strided_slice %381 {offsets = [0, 96], sizes = [2, 32], strides = [1, 1]} : vector<2x128xf32> to vector<2x32xf32>
    %385 = vector.extract_strided_slice %376 {offsets = [0, 64], sizes = [2, 32], strides = [1, 1]} : vector<2x128xf32> to vector<2x32xf32>
    %386 = math.tanh %385 : vector<2x32xf32>
    %387 = arith.mulf %383, %369 : vector<2x32xf32>
    %388 = arith.mulf %382, %386 : vector<2x32xf32>
    %389 = arith.addf %387, %388 : vector<2x32xf32>
    %390 = math.tanh %389 : vector<2x32xf32>
    %391 = arith.mulf %384, %390 : vector<2x32xf32>
    %392 = vector.broadcast %370 : i32 to vector<2x1xi32>
    %393 = arith.cmpi slt, %392, %0 : vector<2x1xi32>
    %cst_92 = arith.constant 0.000000e+00 : f32
    %394 = vector.shape_cast %393 : vector<2x1xi1> to vector<2x1xi1>
    %395 = vector.broadcast %394 : vector<2x1xi1> to vector<2x32xi1>
    %396 = vector.broadcast %cst_92 : f32 to vector<2x32xf32>
    %397 = arith.select %395, %391, %396 : vector<2x32xi1>, vector<2x32xf32>
    %398 = arith.index_cast %372 : i32 to index
    %c0_93 = arith.constant 0 : index
    %399 = vector.load %arg15[%398, %c0_93] : memref<16x32xf32, #tpu.memory_space<vmem>>, vector<2x32xf32>
    tpu.vector_store %arg15[%398, %c0_93], %397 {strides = array<i32>} : memref<16x32xf32, #tpu.memory_space<vmem>>, vector<2x32xf32>,
    %400 = vector.shape_cast %393 : vector<2x1xi1> to vector<2x1xi1>
    %401 = vector.broadcast %400 : vector<2x1xi1> to vector<2x32xi1>
    %402 = arith.select %401, %391, %366 : vector<2x32xi1>, vector<2x32xf32>
    %403 = vector.shape_cast %393 : vector<2x1xi1> to vector<2x1xi1>
    %404 = vector.broadcast %403 : vector<2x1xi1> to vector<2x32xi1>
    %405 = arith.select %404, %389, %369 : vector<2x32xi1>, vector<2x32xf32>
    %c3_i32_94 = arith.constant 3 : i32
    %c7_i32_95 = arith.constant 7 : i32
    %406 = arith.subi %c7_i32_95, %c3_i32_94 : i32
    %c2_i32_96 = arith.constant 2 : i32
    %407 = arith.muli %406, %c2_i32_96 : i32
    %408 = tpu.assume_multiple %407, 2 : i32
    %409 = arith.index_cast %408 : i32 to index
    %c0_97 = arith.constant 0 : index
    %410 = vector.load %arg19[%409, %c0_97] : memref<16x128xf32, #tpu.memory_space<vmem>>, vector<2x128xf32>
    %cst_98 = arith.constant dense<0.000000e+00> : vector<2x128xf32>
    %411 = tpu.matmul %402, %296, %cst_98 {dimension_numbers = #tpu.dot_dimension_numbers<[1], [0], [0], [1], [0, 0, 1, 1], [], []>} : vector<2x32xf32>, vector<32x128xf32>, vector<2x128xf32> -> vector<2x128xf32>
    %412 = arith.addf %410, %411 : vector<2x128xf32>
    %413 = arith.negf %412 : vector<2x128xf32>
    %414 = math.exp %413 : vector<2x128xf32>
    %cst_99 = arith.constant 1.000000e+00 : f32
    %415 = vector.broadcast %cst_99 : f32 to vector<2x128xf32>
    %416 = arith.addf %415, %414 : vector<2x128xf32>
    %417 = arith.divf %415, %416 : vector<2x128xf32>
    %418 = vector.extract_strided_slice %417 {offsets = [0, 0], sizes = [2, 32], strides = [1, 1]} : vector<2x128xf32> to vector<2x32xf32>
    %419 = vector.extract_strided_slice %417 {offsets = [0, 32], sizes = [2, 32], strides = [1, 1]} : vector<2x128xf32> to vector<2x32xf32>
    %420 = vector.extract_strided_slice %417 {offsets = [0, 96], sizes = [2, 32], strides = [1, 1]} : vector<2x128xf32> to vector<2x32xf32>
    %421 = vector.extract_strided_slice %412 {offsets = [0, 64], sizes = [2, 32], strides = [1, 1]} : vector<2x128xf32> to vector<2x32xf32>
    %422 = math.tanh %421 : vector<2x32xf32>
    %423 = arith.mulf %419, %405 : vector<2x32xf32>
    %424 = arith.mulf %418, %422 : vector<2x32xf32>
    %425 = arith.addf %423, %424 : vector<2x32xf32>
    %426 = math.tanh %425 : vector<2x32xf32>
    %427 = arith.mulf %420, %426 : vector<2x32xf32>
    %428 = vector.broadcast %406 : i32 to vector<2x1xi32>
    %429 = arith.cmpi slt, %428, %0 : vector<2x1xi32>
    %cst_100 = arith.constant 0.000000e+00 : f32
    %430 = vector.shape_cast %429 : vector<2x1xi1> to vector<2x1xi1>
    %431 = vector.broadcast %430 : vector<2x1xi1> to vector<2x32xi1>
    %432 = vector.broadcast %cst_100 : f32 to vector<2x32xf32>
    %433 = arith.select %431, %427, %432 : vector<2x32xi1>, vector<2x32xf32>
    %434 = arith.index_cast %408 : i32 to index
    %c0_101 = arith.constant 0 : index
    %435 = vector.load %arg15[%434, %c0_101] : memref<16x32xf32, #tpu.memory_space<vmem>>, vector<2x32xf32>
    tpu.vector_store %arg15[%434, %c0_101], %433 {strides = array<i32>} : memref<16x32xf32, #tpu.memory_space<vmem>>, vector<2x32xf32>,
    %436 = vector.shape_cast %429 : vector<2x1xi1> to vector<2x1xi1>
    %437 = vector.broadcast %436 : vector<2x1xi1> to vector<2x32xi1>
    %438 = arith.select %437, %427, %402 : vector<2x32xi1>, vector<2x32xf32>
    %439 = vector.shape_cast %429 : vector<2x1xi1> to vector<2x1xi1>
    %440 = vector.broadcast %439 : vector<2x1xi1> to vector<2x32xi1>
    %441 = arith.select %440, %425, %405 : vector<2x32xi1>, vector<2x32xf32>
    %c4_i32_102 = arith.constant 4 : i32
    %c7_i32_103 = arith.constant 7 : i32
    %442 = arith.subi %c7_i32_103, %c4_i32_102 : i32
    %c2_i32_104 = arith.constant 2 : i32
    %443 = arith.muli %442, %c2_i32_104 : i32
    %444 = tpu.assume_multiple %443, 2 : i32
    %445 = arith.index_cast %444 : i32 to index
    %c0_105 = arith.constant 0 : index
    %446 = vector.load %arg19[%445, %c0_105] : memref<16x128xf32, #tpu.memory_space<vmem>>, vector<2x128xf32>
    %cst_106 = arith.constant dense<0.000000e+00> : vector<2x128xf32>
    %447 = tpu.matmul %438, %296, %cst_106 {dimension_numbers = #tpu.dot_dimension_numbers<[1], [0], [0], [1], [0, 0, 1, 1], [], []>} : vector<2x32xf32>, vector<32x128xf32>, vector<2x128xf32> -> vector<2x128xf32>
    %448 = arith.addf %446, %447 : vector<2x128xf32>
    %449 = arith.negf %448 : vector<2x128xf32>
    %450 = math.exp %449 : vector<2x128xf32>
    %cst_107 = arith.constant 1.000000e+00 : f32
    %451 = vector.broadcast %cst_107 : f32 to vector<2x128xf32>
    %452 = arith.addf %451, %450 : vector<2x128xf32>
    %453 = arith.divf %451, %452 : vector<2x128xf32>
    %454 = vector.extract_strided_slice %453 {offsets = [0, 0], sizes = [2, 32], strides = [1, 1]} : vector<2x128xf32> to vector<2x32xf32>
    %455 = vector.extract_strided_slice %453 {offsets = [0, 32], sizes = [2, 32], strides = [1, 1]} : vector<2x128xf32> to vector<2x32xf32>
    %456 = vector.extract_strided_slice %453 {offsets = [0, 96], sizes = [2, 32], strides = [1, 1]} : vector<2x128xf32> to vector<2x32xf32>
    %457 = vector.extract_strided_slice %448 {offsets = [0, 64], sizes = [2, 32], strides = [1, 1]} : vector<2x128xf32> to vector<2x32xf32>
    %458 = math.tanh %457 : vector<2x32xf32>
    %459 = arith.mulf %455, %441 : vector<2x32xf32>
    %460 = arith.mulf %454, %458 : vector<2x32xf32>
    %461 = arith.addf %459, %460 : vector<2x32xf32>
    %462 = math.tanh %461 : vector<2x32xf32>
    %463 = arith.mulf %456, %462 : vector<2x32xf32>
    %464 = vector.broadcast %442 : i32 to vector<2x1xi32>
    %465 = arith.cmpi slt, %464, %0 : vector<2x1xi32>
    %cst_108 = arith.constant 0.000000e+00 : f32
    %466 = vector.shape_cast %465 : vector<2x1xi1> to vector<2x1xi1>
    %467 = vector.broadcast %466 : vector<2x1xi1> to vector<2x32xi1>
    %468 = vector.broadcast %cst_108 : f32 to vector<2x32xf32>
    %469 = arith.select %467, %463, %468 : vector<2x32xi1>, vector<2x32xf32>
    %470 = arith.index_cast %444 : i32 to index
    %c0_109 = arith.constant 0 : index
    %471 = vector.load %arg15[%470, %c0_109] : memref<16x32xf32, #tpu.memory_space<vmem>>, vector<2x32xf32>
    tpu.vector_store %arg15[%470, %c0_109], %469 {strides = array<i32>} : memref<16x32xf32, #tpu.memory_space<vmem>>, vector<2x32xf32>,
    %472 = vector.shape_cast %465 : vector<2x1xi1> to vector<2x1xi1>
    %473 = vector.broadcast %472 : vector<2x1xi1> to vector<2x32xi1>
    %474 = arith.select %473, %463, %438 : vector<2x32xi1>, vector<2x32xf32>
    %475 = vector.shape_cast %465 : vector<2x1xi1> to vector<2x1xi1>
    %476 = vector.broadcast %475 : vector<2x1xi1> to vector<2x32xi1>
    %477 = arith.select %476, %461, %441 : vector<2x32xi1>, vector<2x32xf32>
    %c5_i32_110 = arith.constant 5 : i32
    %c7_i32_111 = arith.constant 7 : i32
    %478 = arith.subi %c7_i32_111, %c5_i32_110 : i32
    %c2_i32_112 = arith.constant 2 : i32
    %479 = arith.muli %478, %c2_i32_112 : i32
    %480 = tpu.assume_multiple %479, 2 : i32
    %481 = arith.index_cast %480 : i32 to index
    %c0_113 = arith.constant 0 : index
    %482 = vector.load %arg19[%481, %c0_113] : memref<16x128xf32, #tpu.memory_space<vmem>>, vector<2x128xf32>
    %cst_114 = arith.constant dense<0.000000e+00> : vector<2x128xf32>
    %483 = tpu.matmul %474, %296, %cst_114 {dimension_numbers = #tpu.dot_dimension_numbers<[1], [0], [0], [1], [0, 0, 1, 1], [], []>} : vector<2x32xf32>, vector<32x128xf32>, vector<2x128xf32> -> vector<2x128xf32>
    %484 = arith.addf %482, %483 : vector<2x128xf32>
    %485 = arith.negf %484 : vector<2x128xf32>
    %486 = math.exp %485 : vector<2x128xf32>
    %cst_115 = arith.constant 1.000000e+00 : f32
    %487 = vector.broadcast %cst_115 : f32 to vector<2x128xf32>
    %488 = arith.addf %487, %486 : vector<2x128xf32>
    %489 = arith.divf %487, %488 : vector<2x128xf32>
    %490 = vector.extract_strided_slice %489 {offsets = [0, 0], sizes = [2, 32], strides = [1, 1]} : vector<2x128xf32> to vector<2x32xf32>
    %491 = vector.extract_strided_slice %489 {offsets = [0, 32], sizes = [2, 32], strides = [1, 1]} : vector<2x128xf32> to vector<2x32xf32>
    %492 = vector.extract_strided_slice %489 {offsets = [0, 96], sizes = [2, 32], strides = [1, 1]} : vector<2x128xf32> to vector<2x32xf32>
    %493 = vector.extract_strided_slice %484 {offsets = [0, 64], sizes = [2, 32], strides = [1, 1]} : vector<2x128xf32> to vector<2x32xf32>
    %494 = math.tanh %493 : vector<2x32xf32>
    %495 = arith.mulf %491, %477 : vector<2x32xf32>
    %496 = arith.mulf %490, %494 : vector<2x32xf32>
    %497 = arith.addf %495, %496 : vector<2x32xf32>
    %498 = math.tanh %497 : vector<2x32xf32>
    %499 = arith.mulf %492, %498 : vector<2x32xf32>
    %500 = vector.broadcast %478 : i32 to vector<2x1xi32>
    %501 = arith.cmpi slt, %500, %0 : vector<2x1xi32>
    %cst_116 = arith.constant 0.000000e+00 : f32
    %502 = vector.shape_cast %501 : vector<2x1xi1> to vector<2x1xi1>
    %503 = vector.broadcast %502 : vector<2x1xi1> to vector<2x32xi1>
    %504 = vector.broadcast %cst_116 : f32 to vector<2x32xf32>
    %505 = arith.select %503, %499, %504 : vector<2x32xi1>, vector<2x32xf32>
    %506 = arith.index_cast %480 : i32 to index
    %c0_117 = arith.constant 0 : index
    %507 = vector.load %arg15[%506, %c0_117] : memref<16x32xf32, #tpu.memory_space<vmem>>, vector<2x32xf32>
    tpu.vector_store %arg15[%506, %c0_117], %505 {strides = array<i32>} : memref<16x32xf32, #tpu.memory_space<vmem>>, vector<2x32xf32>,
    %508 = vector.shape_cast %501 : vector<2x1xi1> to vector<2x1xi1>
    %509 = vector.broadcast %508 : vector<2x1xi1> to vector<2x32xi1>
    %510 = arith.select %509, %499, %474 : vector<2x32xi1>, vector<2x32xf32>
    %511 = vector.shape_cast %501 : vector<2x1xi1> to vector<2x1xi1>
    %512 = vector.broadcast %511 : vector<2x1xi1> to vector<2x32xi1>
    %513 = arith.select %512, %497, %477 : vector<2x32xi1>, vector<2x32xf32>
    %c6_i32_118 = arith.constant 6 : i32
    %c7_i32_119 = arith.constant 7 : i32
    %514 = arith.subi %c7_i32_119, %c6_i32_118 : i32
    %c2_i32_120 = arith.constant 2 : i32
    %515 = arith.muli %514, %c2_i32_120 : i32
    %516 = tpu.assume_multiple %515, 2 : i32
    %517 = arith.index_cast %516 : i32 to index
    %c0_121 = arith.constant 0 : index
    %518 = vector.load %arg19[%517, %c0_121] : memref<16x128xf32, #tpu.memory_space<vmem>>, vector<2x128xf32>
    %cst_122 = arith.constant dense<0.000000e+00> : vector<2x128xf32>
    %519 = tpu.matmul %510, %296, %cst_122 {dimension_numbers = #tpu.dot_dimension_numbers<[1], [0], [0], [1], [0, 0, 1, 1], [], []>} : vector<2x32xf32>, vector<32x128xf32>, vector<2x128xf32> -> vector<2x128xf32>
    %520 = arith.addf %518, %519 : vector<2x128xf32>
    %521 = arith.negf %520 : vector<2x128xf32>
    %522 = math.exp %521 : vector<2x128xf32>
    %cst_123 = arith.constant 1.000000e+00 : f32
    %523 = vector.broadcast %cst_123 : f32 to vector<2x128xf32>
    %524 = arith.addf %523, %522 : vector<2x128xf32>
    %525 = arith.divf %523, %524 : vector<2x128xf32>
    %526 = vector.extract_strided_slice %525 {offsets = [0, 0], sizes = [2, 32], strides = [1, 1]} : vector<2x128xf32> to vector<2x32xf32>
    %527 = vector.extract_strided_slice %525 {offsets = [0, 32], sizes = [2, 32], strides = [1, 1]} : vector<2x128xf32> to vector<2x32xf32>
    %528 = vector.extract_strided_slice %525 {offsets = [0, 96], sizes = [2, 32], strides = [1, 1]} : vector<2x128xf32> to vector<2x32xf32>
    %529 = vector.extract_strided_slice %520 {offsets = [0, 64], sizes = [2, 32], strides = [1, 1]} : vector<2x128xf32> to vector<2x32xf32>
    %530 = math.tanh %529 : vector<2x32xf32>
    %531 = arith.mulf %527, %513 : vector<2x32xf32>
    %532 = arith.mulf %526, %530 : vector<2x32xf32>
    %533 = arith.addf %531, %532 : vector<2x32xf32>
    %534 = math.tanh %533 : vector<2x32xf32>
    %535 = arith.mulf %528, %534 : vector<2x32xf32>
    %536 = vector.broadcast %514 : i32 to vector<2x1xi32>
    %537 = arith.cmpi slt, %536, %0 : vector<2x1xi32>
    %cst_124 = arith.constant 0.000000e+00 : f32
    %538 = vector.shape_cast %537 : vector<2x1xi1> to vector<2x1xi1>
    %539 = vector.broadcast %538 : vector<2x1xi1> to vector<2x32xi1>
    %540 = vector.broadcast %cst_124 : f32 to vector<2x32xf32>
    %541 = arith.select %539, %535, %540 : vector<2x32xi1>, vector<2x32xf32>
    %542 = arith.index_cast %516 : i32 to index
    %c0_125 = arith.constant 0 : index
    %543 = vector.load %arg15[%542, %c0_125] : memref<16x32xf32, #tpu.memory_space<vmem>>, vector<2x32xf32>
    tpu.vector_store %arg15[%542, %c0_125], %541 {strides = array<i32>} : memref<16x32xf32, #tpu.memory_space<vmem>>, vector<2x32xf32>,
    %544 = vector.shape_cast %537 : vector<2x1xi1> to vector<2x1xi1>
    %545 = vector.broadcast %544 : vector<2x1xi1> to vector<2x32xi1>
    %546 = arith.select %545, %535, %510 : vector<2x32xi1>, vector<2x32xf32>
    %547 = vector.shape_cast %537 : vector<2x1xi1> to vector<2x1xi1>
    %548 = vector.broadcast %547 : vector<2x1xi1> to vector<2x32xi1>
    %549 = arith.select %548, %533, %513 : vector<2x32xi1>, vector<2x32xf32>
    %c7_i32_126 = arith.constant 7 : i32
    %c7_i32_127 = arith.constant 7 : i32
    %550 = arith.subi %c7_i32_127, %c7_i32_126 : i32
    %c2_i32_128 = arith.constant 2 : i32
    %551 = arith.muli %550, %c2_i32_128 : i32
    %552 = tpu.assume_multiple %551, 2 : i32
    %553 = arith.index_cast %552 : i32 to index
    %c0_129 = arith.constant 0 : index
    %554 = vector.load %arg19[%553, %c0_129] : memref<16x128xf32, #tpu.memory_space<vmem>>, vector<2x128xf32>
    %cst_130 = arith.constant dense<0.000000e+00> : vector<2x128xf32>
    %555 = tpu.matmul %546, %296, %cst_130 {dimension_numbers = #tpu.dot_dimension_numbers<[1], [0], [0], [1], [0, 0, 1, 1], [], []>} : vector<2x32xf32>, vector<32x128xf32>, vector<2x128xf32> -> vector<2x128xf32>
    %556 = arith.addf %554, %555 : vector<2x128xf32>
    %557 = arith.negf %556 : vector<2x128xf32>
    %558 = math.exp %557 : vector<2x128xf32>
    %cst_131 = arith.constant 1.000000e+00 : f32
    %559 = vector.broadcast %cst_131 : f32 to vector<2x128xf32>
    %560 = arith.addf %559, %558 : vector<2x128xf32>
    %561 = arith.divf %559, %560 : vector<2x128xf32>
    %562 = vector.extract_strided_slice %561 {offsets = [0, 0], sizes = [2, 32], strides = [1, 1]} : vector<2x128xf32> to vector<2x32xf32>
    %563 = vector.extract_strided_slice %561 {offsets = [0, 32], sizes = [2, 32], strides = [1, 1]} : vector<2x128xf32> to vector<2x32xf32>
    %564 = vector.extract_strided_slice %561 {offsets = [0, 96], sizes = [2, 32], strides = [1, 1]} : vector<2x128xf32> to vector<2x32xf32>
    %565 = vector.extract_strided_slice %556 {offsets = [0, 64], sizes = [2, 32], strides = [1, 1]} : vector<2x128xf32> to vector<2x32xf32>
    %566 = math.tanh %565 : vector<2x32xf32>
    %567 = arith.mulf %563, %549 : vector<2x32xf32>
    %568 = arith.mulf %562, %566 : vector<2x32xf32>
    %569 = arith.addf %567, %568 : vector<2x32xf32>
    %570 = math.tanh %569 : vector<2x32xf32>
    %571 = arith.mulf %564, %570 : vector<2x32xf32>
    %572 = vector.broadcast %550 : i32 to vector<2x1xi32>
    %573 = arith.cmpi slt, %572, %0 : vector<2x1xi32>
    %cst_132 = arith.constant 0.000000e+00 : f32
    %574 = vector.shape_cast %573 : vector<2x1xi1> to vector<2x1xi1>
    %575 = vector.broadcast %574 : vector<2x1xi1> to vector<2x32xi1>
    %576 = vector.broadcast %cst_132 : f32 to vector<2x32xf32>
    %577 = arith.select %575, %571, %576 : vector<2x32xi1>, vector<2x32xf32>
    %578 = arith.index_cast %552 : i32 to index
    %c0_133 = arith.constant 0 : index
    %579 = vector.load %arg15[%578, %c0_133] : memref<16x32xf32, #tpu.memory_space<vmem>>, vector<2x32xf32>
    tpu.vector_store %arg15[%578, %c0_133], %577 {strides = array<i32>} : memref<16x32xf32, #tpu.memory_space<vmem>>, vector<2x32xf32>,
    %580 = vector.shape_cast %573 : vector<2x1xi1> to vector<2x1xi1>
    %581 = vector.broadcast %580 : vector<2x1xi1> to vector<2x32xi1>
    %582 = arith.select %581, %571, %546 : vector<2x32xi1>, vector<2x32xf32>
    %583 = vector.shape_cast %573 : vector<2x1xi1> to vector<2x1xi1>
    %584 = vector.broadcast %583 : vector<2x1xi1> to vector<2x32xi1>
    %585 = arith.select %584, %569, %549 : vector<2x32xi1>, vector<2x32xf32>
    %c8_i32_134 = arith.constant 8 : i32
    %c0_135 = arith.constant 0 : index
    %c0_136 = arith.constant 0 : index
    %586 = vector.load %arg8[%c0_135, %c0_136] : memref<32x32xf32, #tpu.memory_space<vmem>>, vector<32x32xf32>
    %cst_137 = arith.constant dense<0.000000e+00> : vector<2x32xf32>
    %587 = tpu.matmul %292, %586, %cst_137 {dimension_numbers = #tpu.dot_dimension_numbers<[1], [0], [0], [1], [0, 0, 1, 1], [], []>} : vector<2x32xf32>, vector<32x32xf32>, vector<2x32xf32> -> vector<2x32xf32>
    %c0_138 = arith.constant 0 : index
    %c0_139 = arith.constant 0 : index
    %588 = vector.load %arg9[%c0_138, %c0_139] : memref<32x32xf32, #tpu.memory_space<vmem>>, vector<32x32xf32>
    %cst_140 = arith.constant dense<0.000000e+00> : vector<2x32xf32>
    %589 = tpu.matmul %582, %588, %cst_140 {dimension_numbers = #tpu.dot_dimension_numbers<[1], [0], [0], [1], [0, 0, 1, 1], [], []>} : vector<2x32xf32>, vector<32x32xf32>, vector<2x32xf32> -> vector<2x32xf32>
    %590 = arith.addf %587, %589 : vector<2x32xf32>
    %c0_141 = arith.constant 0 : index
    %c0_142 = arith.constant 0 : index
    %591 = vector.load %arg10[%c0_141, %c0_142] : memref<1x32xf32, #tpu.memory_space<vmem>>, vector<1x32xf32>
    %592 = vector.broadcast %591 : vector<1x32xf32> to vector<2x32xf32>
    %593 = arith.addf %590, %592 : vector<2x32xf32>
    %c0_143 = arith.constant 0 : index
    %c0_144 = arith.constant 0 : index
    %594 = vector.load %arg16[%c0_143, %c0_144] : memref<2x32xf32, #tpu.memory_space<vmem>>, vector<2x32xf32>
    tpu.vector_store %arg16[%c0_143, %c0_144], %593 {strides = array<i32>} : memref<2x32xf32, #tpu.memory_space<vmem>>, vector<2x32xf32>,
    %c0_145 = arith.constant 0 : index
    %c0_146 = arith.constant 0 : index
    %595 = vector.load %arg11[%c0_145, %c0_146] : memref<32x32xf32, #tpu.memory_space<vmem>>, vector<32x32xf32>
    %cst_147 = arith.constant dense<0.000000e+00> : vector<2x32xf32>
    %596 = tpu.matmul %295, %595, %cst_147 {dimension_numbers = #tpu.dot_dimension_numbers<[1], [0], [0], [1], [0, 0, 1, 1], [], []>} : vector<2x32xf32>, vector<32x32xf32>, vector<2x32xf32> -> vector<2x32xf32>
    %c0_148 = arith.constant 0 : index
    %c0_149 = arith.constant 0 : index
    %597 = vector.load %arg12[%c0_148, %c0_149] : memref<32x32xf32, #tpu.memory_space<vmem>>, vector<32x32xf32>
    %cst_150 = arith.constant dense<0.000000e+00> : vector<2x32xf32>
    %598 = tpu.matmul %585, %597, %cst_150 {dimension_numbers = #tpu.dot_dimension_numbers<[1], [0], [0], [1], [0, 0, 1, 1], [], []>} : vector<2x32xf32>, vector<32x32xf32>, vector<2x32xf32> -> vector<2x32xf32>
    %599 = arith.addf %596, %598 : vector<2x32xf32>
    %c0_151 = arith.constant 0 : index
    %c0_152 = arith.constant 0 : index
    %600 = vector.load %arg13[%c0_151, %c0_152] : memref<1x32xf32, #tpu.memory_space<vmem>>, vector<1x32xf32>
    %601 = vector.broadcast %600 : vector<1x32xf32> to vector<2x32xf32>
    %602 = arith.addf %599, %601 : vector<2x32xf32>
    %c0_153 = arith.constant 0 : index
    %c0_154 = arith.constant 0 : index
    %603 = vector.load %arg17[%c0_153, %c0_154] : memref<2x32xf32, #tpu.memory_space<vmem>>, vector<2x32xf32>
    tpu.vector_store %arg17[%c0_153, %c0_154], %602 {strides = array<i32>} : memref<2x32xf32, #tpu.memory_space<vmem>>, vector<2x32xf32>,
    return
  }
}

</mosaic_0001>

<llo_original>
// kernel: tpu_custom_call.1
$region0: #{tpu_custom_call.1}
  #allocation0 [shape = 'u32[]', space=smem, size = 0x4, offset = 0x4, fixed_abs, tag = 'smem constant byte address 0x4 - core index']
  #allocation1 [shape = 'u32[144,128]{1,0:T(1,128)}', space=vmem, size = 0x12000, scoped, tag = 'internal scratch']
  #allocation2 [shape = 'f32[16,128]{1,0:T(8,128)}', space=vmem, size = 0x2000, scoped, tag = 'scratch operand']
  #allocation3 [shape = 'f32[16,128]{1,0:T(8,128)}', space=vmem, size = 0x2000, scoped, tag = 'scratch operand']
  %s0 = inlined_call_operand.hbm [shape: f32[16,32], index: 0, kind: input, shape index: {}]
  %s1 = inlined_call_operand.vmem [shape: s32[2,1], index: 1, kind: input, shape index: {}]
  %s2 = inlined_call_operand.hbm [shape: f32[32,128], index: 2, kind: input, shape index: {}]
  %s3 = inlined_call_operand.hbm [shape: f32[32,128], index: 3, kind: input, shape index: {}]
  %s4 = inlined_call_operand.vmem [shape: f32[1,128], index: 4, kind: input, shape index: {}]
  %s5 = inlined_call_operand.hbm [shape: f32[32,128], index: 5, kind: input, shape index: {}]
  %s6 = inlined_call_operand.hbm [shape: f32[32,128], index: 6, kind: input, shape index: {}]
  %s7 = inlined_call_operand.vmem [shape: f32[1,128], index: 7, kind: input, shape index: {}]
  %s8 = inlined_call_operand.vmem [shape: f32[32,32], index: 8, kind: input, shape index: {}]
  %s9 = inlined_call_operand.hbm [shape: f32[32,32], index: 9, kind: input, shape index: {}]
  %s10 = inlined_call_operand.vmem [shape: f32[1,32], index: 10, kind: input, shape index: {}]
  %s11 = inlined_call_operand.hbm [shape: f32[32,32], index: 11, kind: input, shape index: {}]
  %s12 = inlined_call_operand.hbm [shape: f32[32,32], index: 12, kind: input, shape index: {}]
  %s13 = inlined_call_operand.vmem [shape: f32[1,32], index: 13, kind: input, shape index: {}]
  %s14 = inlined_call_operand.hbm [shape: f32[16,32], index: 14, kind: output, shape index: {0}]
  %s15 = inlined_call_operand.hbm [shape: f32[16,32], index: 15, kind: output, shape index: {1}]
  %s16 = inlined_call_operand.hbm [shape: f32[2,32], index: 16, kind: output, shape index: {2}]
  %s17 = inlined_call_operand.hbm [shape: f32[2,32], index: 17, kind: output, shape index: {3}]
  %18 = xla_tuple %s14, %s15, %s16, %s17
  %s19 = sld [smem:[#allocation0]]
  $region122: #{tpu_custom_call.1} parent=0
    _
  %s21 = ssub.s32 1, %s19
  %s22 = scalar_select 0, %s21, %s19
  $region1: #{tpu_custom_call.1} parent=0
    #allocation4 [shape = 'u8[8192]{0}', space=vmem, size = 0x2000, scoped, tag = 'input window, operand 0, single buffered']
    #allocation5 [shape = 's32[1]{0}', space=sflag, size = 0x4, scoped, tag = 'scoped memory for tpu_custom_call.1']
    #allocation6 [shape = 's32[1]{0}', space=sflag, size = 0x4, scoped, tag = 'scoped memory for tpu_custom_call.1']
    #allocation7 [shape = 'u8[16384]{0}', space=vmem, size = 0x4000, scoped, tag = 'input window, operand 2, single buffered']
    #allocation8 [shape = 's32[1]{0}', space=sflag, size = 0x4, scoped, tag = 'scoped memory for tpu_custom_call.1']
    #allocation9 [shape = 'u8[16384]{0}', space=vmem, size = 0x4000, scoped, tag = 'input window, operand 3, single buffered']
    #allocation10 [shape = 'u8[16384]{0}', space=vmem, size = 0x4000, scoped, tag = 'input window, operand 5, single buffered']
    #allocation11 [shape = 's32[1]{0}', space=sflag, size = 0x4, scoped, tag = 'scoped memory for tpu_custom_call.1']
    #allocation12 [shape = 'u8[16384]{0}', space=vmem, size = 0x4000, scoped, tag = 'input window, operand 6, single buffered']
    #allocation13 [shape = 'u8[16384]{0}', space=vmem, size = 0x4000, scoped, tag = 'input window, operand 9, single buffered']
    #allocation14 [shape = 's32[1]{0}', space=sflag, size = 0x4, scoped, tag = 'scoped memory for tpu_custom_call.1']
    #allocation15 [shape = 'u8[16384]{0}', space=vmem, size = 0x4000, scoped, tag = 'input window, operand 11, single buffered']
    #allocation16 [shape = 'u8[16384]{0}', space=vmem, size = 0x4000, scoped, tag = 'input window, operand 12, single buffered']
    #allocation17 [shape = 's32[1]{0}', space=sflag, size = 0x4, scoped, tag = 'scoped memory for tpu_custom_call.1']
    #allocation18 [shape = 'u8[8192]{0}', space=vmem, size = 0x2000, scoped, tag = 'output window, operand 0, single buffered']
    #allocation19 [shape = 'u8[8192]{0}', space=vmem, size = 0x2000, scoped, tag = 'output window, operand 1, single buffered']
    #allocation20 [shape = 's32[1]{0}', space=sflag, size = 0x4, scoped, tag = 'scoped memory for tpu_custom_call.1']
    #allocation21 [shape = 'u8[1024]{0}', space=vmem, size = 0x400, scoped, tag = 'output window, operand 2, single buffered']
    #allocation22 [shape = 'u8[1024]{0}', space=vmem, size = 0x400, scoped, tag = 'output window, operand 3, single buffered']
    #allocation23 [shape = 's32[1]{0}', space=sflag, size = 0x4, scoped, tag = 'scoped memory for tpu_custom_call.1']
    %23 = vsyncpa [#allocation5], 0
    %24 = vsyncpa [#allocation8], 0
    %25 = vsyncpa [#allocation11], 0
    %26 = vsyncpa [#allocation14], 0
    %27 = vsyncpa [#allocation17], 0
    %28 = vsyncpa [#allocation6], 0
    %29 = vsyncpa [#allocation20], 0
    %30 = vsyncpa [#allocation23], 0
    // Predicated region
    $region2: #{tpu_custom_call.1} parent=1 // pred_check
      _
    $region3: #{tpu_custom_call.1} parent=1 // pred_check_branch
      %32 = sbr.rel (0) target = $region5
    $region4: #{tpu_custom_call.1} parent=1 // pred_region
      %s34 = ssub.s32 256, 256
      %35 = vsyncadd [#allocation5], %s34
      %s36 = sshll.u32 [#allocation4], 4
      %s37 = int_to_ptr.vmem [resolvable:$true] %s36
      %42 = dma.hbm_to_vmem [thread:$0]  %s0, 256, %s37, [#allocation5], 128, 128, 8
    $region5: #{tpu_custom_call.1} parent=1 // pred_fallthru
      _
    // Predicated region
    $region6: #{tpu_custom_call.1} parent=1 // pred_check
      _
    $region7: #{tpu_custom_call.1} parent=1 // pred_check_branch
      %44 = sbr.rel (0) target = $region9
    $region8: #{tpu_custom_call.1} parent=1 // pred_region
      _
    $region9: #{tpu_custom_call.1} parent=1 // pred_fallthru
      _
    // Predicated region
    $region10: #{tpu_custom_call.1} parent=1 // pred_check
      _
    $region11: #{tpu_custom_call.1} parent=1 // pred_check_branch
      %46 = sbr.rel (0) target = $region13
    $region12: #{tpu_custom_call.1} parent=1 // pred_region
      %s48 = ssub.s32 512, 512
      %49 = vsyncadd [#allocation8], %s48
      %s50 = sshll.u32 [#allocation7], 4
      %s51 = int_to_ptr.vmem [resolvable:$true] %s50
      %56 = dma.hbm_to_vmem [thread:$0]  %s2, 512, %s51, [#allocation8], 128, 128, 8
    $region13: #{tpu_custom_call.1} parent=1 // pred_fallthru
      _
    // Predicated region
    $region14: #{tpu_custom_call.1} parent=1 // pred_check
      _
    $region15: #{tpu_custom_call.1} parent=1 // pred_check_branch
      %58 = sbr.rel (0) target = $region17
    $region16: #{tpu_custom_call.1} parent=1 // pred_region
      %s60 = ssub.s32 512, 512
      %61 = vsyncadd [#allocation8], %s60
      %s62 = sshll.u32 [#allocation9], 4
      %s63 = int_to_ptr.vmem [resolvable:$true] %s62
      %68 = dma.hbm_to_vmem [thread:$0]  %s3, 512, %s63, [#allocation8], 128, 128, 8
    $region17: #{tpu_custom_call.1} parent=1 // pred_fallthru
      _
    // Predicated region
    $region18: #{tpu_custom_call.1} parent=1 // pred_check
      _
    $region19: #{tpu_custom_call.1} parent=1 // pred_check_branch
      %70 = sbr.rel (0) target = $region21
    $region20: #{tpu_custom_call.1} parent=1 // pred_region
      _
    $region21: #{tpu_custom_call.1} parent=1 // pred_fallthru
      _
    // Predicated region
    $region22: #{tpu_custom_call.1} parent=1 // pred_check
      _
    $region23: #{tpu_custom_call.1} parent=1 // pred_check_branch
      %72 = sbr.rel (0) target = $region25
    $region24: #{tpu_custom_call.1} parent=1 // pred_region
      %s74 = ssub.s32 512, 512
      %75 = vsyncadd [#allocation11], %s74
      %s76 = sshll.u32 [#allocation10], 4
      %s77 = int_to_ptr.vmem [resolvable:$true] %s76
      %82 = dma.hbm_to_vmem [thread:$0]  %s5, 512, %s77, [#allocation11], 128, 128, 8
    $region25: #{tpu_custom_call.1} parent=1 // pred_fallthru
      _
    // Predicated region
    $region26: #{tpu_custom_call.1} parent=1 // pred_check
      _
    $region27: #{tpu_custom_call.1} parent=1 // pred_check_branch
      %84 = sbr.rel (0) target = $region29
    $region28: #{tpu_custom_call.1} parent=1 // pred_region
      %s86 = ssub.s32 512, 512
      %87 = vsyncadd [#allocation11], %s86
      %s88 = sshll.u32 [#allocation12], 4
      %s89 = int_to_ptr.vmem [resolvable:$true] %s88
      %94 = dma.hbm_to_vmem [thread:$0]  %s6, 512, %s89, [#allocation11], 128, 128, 8
    $region29: #{tpu_custom_call.1} parent=1 // pred_fallthru
      _
    // Predicated region
    $region30: #{tpu_custom_call.1} parent=1 // pred_check
      _
    $region31: #{tpu_custom_call.1} parent=1 // pred_check_branch
      %96 = sbr.rel (0) target = $region33
    $region32: #{tpu_custom_call.1} parent=1 // pred_region
      _
    $region33: #{tpu_custom_call.1} parent=1 // pred_fallthru
      _
    // Predicated region
    $region34: #{tpu_custom_call.1} parent=1 // pred_check
      _
    $region35: #{tpu_custom_call.1} parent=1 // pred_check_branch
      %98 = sbr.rel (0) target = $region37
    $region36: #{tpu_custom_call.1} parent=1 // pred_region
      _
    $region37: #{tpu_custom_call.1} parent=1 // pred_fallthru
      _
    // Predicated region
    $region38: #{tpu_custom_call.1} parent=1 // pred_check
      _
    $region39: #{tpu_custom_call.1} parent=1 // pred_check_branch
      %100 = sbr.rel (0) target = $region41
    $region40: #{tpu_custom_call.1} parent=1 // pred_region
      %s102 = ssub.s32 512, 512
      %103 = vsyncadd [#allocation14], %s102
      %s104 = sshll.u32 [#allocation13], 4
      %s105 = int_to_ptr.vmem [resolvable:$true] %s104
      %110 = dma.hbm_to_vmem [thread:$0]  %s9, 512, %s105, [#allocation14], 128, 128, 8
    $region41: #{tpu_custom_call.1} parent=1 // pred_fallthru
      _
    // Predicated region
    $region42: #{tpu_custom_call.1} parent=1 // pred_check
      _
    $region43: #{tpu_custom_call.1} parent=1 // pred_check_branch
      %112 = sbr.rel (0) target = $region45
    $region44: #{tpu_custom_call.1} parent=1 // pred_region
      _
    $region45: #{tpu_custom_call.1} parent=1 // pred_fallthru
      _
    // Predicated region
    $region46: #{tpu_custom_call.1} parent=1 // pred_check
      _
    $region47: #{tpu_custom_call.1} parent=1 // pred_check_branch
      %114 = sbr.rel (0) target = $region49
    $region48: #{tpu_custom_call.1} parent=1 // pred_region
      %s116 = ssub.s32 512, 512
      %117 = vsyncadd [#allocation14], %s116
      %s118 = sshll.u32 [#allocation15], 4
      %s119 = int_to_ptr.vmem [resolvable:$true] %s118
      %124 = dma.hbm_to_vmem [thread:$0]  %s11, 512, %s119, [#allocation14], 128, 128, 8
    $region49: #{tpu_custom_call.1} parent=1 // pred_fallthru
      _
    // Predicated region
    $region50: #{tpu_custom_call.1} parent=1 // pred_check
      _
    $region51: #{tpu_custom_call.1} parent=1 // pred_check_branch
      %126 = sbr.rel (0) target = $region53
    $region52: #{tpu_custom_call.1} parent=1 // pred_region
      %s128 = ssub.s32 512, 512
      %129 = vsyncadd [#allocation17], %s128
      %s130 = sshll.u32 [#allocation16], 4
      %s131 = int_to_ptr.vmem [resolvable:$true] %s130
      %136 = dma.hbm_to_vmem [thread:$0]  %s12, 512, %s131, [#allocation17], 128, 128, 8
    $region53: #{tpu_custom_call.1} parent=1 // pred_fallthru
      _
    // Predicated region
    $region54: #{tpu_custom_call.1} parent=1 // pred_check
      _
    $region55: #{tpu_custom_call.1} parent=1 // pred_check_branch
      %138 = sbr.rel (0) target = $region57
    $region56: #{tpu_custom_call.1} parent=1 // pred_region
      _
    $region57: #{tpu_custom_call.1} parent=1 // pred_fallthru
      _
    // Predicated region
    $region58: #{tpu_custom_call.1} parent=1 // pred_check
      _
    $region59: #{tpu_custom_call.1} parent=1 // pred_check_branch
      %140 = sbr.rel (0) target = $region61
    $region60: #{tpu_custom_call.1} parent=1 // pred_region
      %141 = dma.done [#allocation5], 256
    $region61: #{tpu_custom_call.1} parent=1 // pred_fallthru
      _
    // Predicated region
    $region62: #{tpu_custom_call.1} parent=1 // pred_check
      _
    $region63: #{tpu_custom_call.1} parent=1 // pred_check_branch
      %143 = sbr.rel (0) target = $region65
    $region64: #{tpu_custom_call.1} parent=1 // pred_region
      %144 = dma.done [#allocation8], 512
    $region65: #{tpu_custom_call.1} parent=1 // pred_fallthru
      _
    // Predicated region
    $region66: #{tpu_custom_call.1} parent=1 // pred_check
      _
    $region67: #{tpu_custom_call.1} parent=1 // pred_check_branch
      %146 = sbr.rel (0) target = $region69
    $region68: #{tpu_custom_call.1} parent=1 // pred_region
      %147 = dma.done [#allocation8], 512
    $region69: #{tpu_custom_call.1} parent=1 // pred_fallthru
      _
    // Predicated region
    $region70: #{tpu_custom_call.1} parent=1 // pred_check
      _
    $region71: #{tpu_custom_call.1} parent=1 // pred_check_branch
      %149 = sbr.rel (0) target = $region73
    $region72: #{tpu_custom_call.1} parent=1 // pred_region
      %150 = dma.done [#allocation11], 512
    $region73: #{tpu_custom_call.1} parent=1 // pred_fallthru
      _
    // Predicated region
    $region74: #{tpu_custom_call.1} parent=1 // pred_check
      _
    $region75: #{tpu_custom_call.1} parent=1 // pred_check_branch
      %152 = sbr.rel (0) target = $region77
    $region76: #{tpu_custom_call.1} parent=1 // pred_region
      %153 = dma.done [#allocation11], 512
    $region77: #{tpu_custom_call.1} parent=1 // pred_fallthru
      _
    // Predicated region
    $region78: #{tpu_custom_call.1} parent=1 // pred_check
      _
    $region79: #{tpu_custom_call.1} parent=1 // pred_check_branch
      %155 = sbr.rel (0) target = $region81
    $region80: #{tpu_custom_call.1} parent=1 // pred_region
      %156 = dma.done [#allocation14], 512
    $region81: #{tpu_custom_call.1} parent=1 // pred_fallthru
      _
    // Predicated region
    $region82: #{tpu_custom_call.1} parent=1 // pred_check
      _
    $region83: #{tpu_custom_call.1} parent=1 // pred_check_branch
      %158 = sbr.rel (0) target = $region85
    $region84: #{tpu_custom_call.1} parent=1 // pred_region
      %159 = dma.done [#allocation14], 512
    $region85: #{tpu_custom_call.1} parent=1 // pred_fallthru
      _
    // Predicated region
    $region86: #{tpu_custom_call.1} parent=1 // pred_check
      _
    $region87: #{tpu_custom_call.1} parent=1 // pred_check_branch
      %161 = sbr.rel (0) target = $region89
    $region88: #{tpu_custom_call.1} parent=1 // pred_region
      %162 = dma.done [#allocation17], 512
    $region89: #{tpu_custom_call.1} parent=1 // pred_fallthru
      _
    %v163 = vld [vmem:[%s1] sm:$0x3]
    %v164 = vld [vmem:[#allocation4] sm:$0xff]
    %v165 = vld [vmem:[#allocation4 + $0x8] sm:$0xff]
    %v166 = vld [vmem:[#allocation7] sm:$0xff]
    %v167 = vld [vmem:[#allocation7 + $0x8] sm:$0xff]
    %v168 = vld [vmem:[#allocation7 + $0x10] sm:$0xff]
    %v169 = vld [vmem:[#allocation7 + $0x18] sm:$0xff]
    %v170 = vld [vmem:[%s4] sm:$0x1]
    %v172 = vlaneseq
    %v173 = vshrl.u32 %v172, 7
    %v174 = vsub.s32 0, %v173
    %v175 = vrot.slane %v170, %v174
    %vm177 = vcmask 261120
    %v179 = vsel %vm177, %v164, 0
    %v182 = vsel %vm177, %v165, 0
    %184 = vmatprep.subr.mxu0 0.0
    %185 = vmatpush1.msra.mxu0 %v166
    %186 = vmatprep.subr.mxu0 0.0
    %187 = vmatpush1.msra.mxu0 %v167
    %188 = vmatprep.subr.mxu0 0.0
    %189 = vmatpush1.msra.mxu0 %v168
    %190 = vmatprep.subr.mxu0 0.0
    %191 = vmatpush1.msra.mxu0 %v169
    %192 = vmatprep.subr.mxu0 0.0
    %193 = vmatpush1.msra.mxu0 0.0
    %194 = vmatprep.subr.mxu0 0.0
    %195 = vmatpush1.msra.mxu0 0.0
    %196 = vmatprep.subr.mxu0 0.0
    %197 = vmatpush1.msra.mxu0 0.0
    %198 = vmatprep.subr.mxu0 0.0
    %199 = vmatpush1.msra.mxu0 0.0
    %200 = vmatprep.subr.mxu0 0.0
    %201 = vmatpush1.msra.mxu0 0.0
    %202 = vmatprep.subr.mxu0 0.0
    %203 = vmatpush1.msra.mxu0 0.0
    %204 = vmatprep.subr.mxu0 0.0
    %205 = vmatpush1.msra.mxu0 0.0
    %206 = vmatprep.subr.mxu0 0.0
    %207 = vmatpush1.msra.mxu0 0.0
    %208 = vmatprep.subr.mxu0 0.0
    %209 = vmatpush1.msra.mxu0 0.0
    %210 = vmatprep.subr.mxu0 0.0
    %211 = vmatpush1.msra.mxu0 0.0
    %212 = vmatprep.subr.mxu0 0.0
    %213 = vmatpush1.msra.mxu0 0.0
    %214 = vmatprep.subr.mxu0 0.0
    %215 = vmatpush1.msra.mxu0 0.0
    %216 = vmatprep.subr.mxu0 0.0
    %217 = vmatpush1.msra.mxu0 0.0
    %218 = vmatprep.subr.mxu0 0.0
    %219 = vmatpush1.msra.mxu0 0.0
    %220 = vmatprep.subr.mxu0 0.0
    %221 = vmatpush1.msra.mxu0 0.0
    %222 = vmatprep.subr.mxu0 0.0
    %223 = vmatpush1.msra.mxu0 0.0
    %224 = vmatprep.subr.mxu0 0.0
    %225 = vmatpush1.msra.mxu0 0.0
    %226 = vmatprep.subr.mxu0 0.0
    %227 = vmatpush1.msra.mxu0 0.0
    %228 = vmatprep.subr.mxu0 0.0
    %229 = vmatpush1.msra.mxu0 0.0
    %230 = vmatprep.subr.mxu0 0.0
    %231 = vmatpush1.msra.mxu0 0.0
    %232 = vmatprep.subr.mxu0 0.0
    %233 = vmatpush1.msra.mxu0 0.0
    %234 = vmatprep.subr.mxu0 0.0
    %235 = vmatpush1.msra.mxu0 0.0
    %236 = vmatprep.subr.mxu0 0.0
    %237 = vmatpush1.msra.mxu0 0.0
    %238 = vmatprep.subr.mxu0 0.0
    %239 = vmatpush1.msra.mxu0 0.0
    %240 = vmatprep.subr.mxu0 0.0
    %241 = vmatpush1.msra.mxu0 0.0
    %242 = vmatprep.subr.mxu0 0.0
    %243 = vmatpush1.msra.mxu0 0.0
    %244 = vmatprep.subr.mxu0 0.0
    %245 = vmatpush1.msra.mxu0 0.0
    %246 = vmatprep.subr.mxu0 0.0
    %247 = vmatpush1.msra.mxu0 0.0
    %248 = vmatprep.mubr.f32.mxu0 0.0
    %249 = vmatmul.mubr.f32.gmra.mrb[0].mxu0 %v179
    %v250 = vpop.f32.mrb[0].mxu0
    %v251 = vadd.f32 %v175, %v250
    %v252 = vpop.f32.mrb[0].mxu0
    %253 = vmatprep.mubr.f32.mxu0 0.0
    %254 = vmatmul.mubr.f32.gmra.mrb[0].mxu0 %v182
    %v255 = vpop.f32.mrb[0].mxu0
    %v256 = vadd.f32 %v175, %v255
    %v257 = vpop.f32.mrb[0].mxu0
    %258 = vdwg.mxu0
    %259 = vst [vmem:[#allocation2] sm:$0xff] %v251
    %260 = vst [vmem:[#allocation2 + $0x8] sm:$0xff] %v256
    %v261 = vld [vmem:[#allocation10] sm:$0xff]
    %v262 = vld [vmem:[#allocation10 + $0x8] sm:$0xff]
    %v263 = vld [vmem:[#allocation10 + $0x10] sm:$0xff]
    %v264 = vld [vmem:[#allocation10 + $0x18] sm:$0xff]
    %v265 = vld [vmem:[%s7] sm:$0x1]
    %v267 = vlaneseq
    %v268 = vshrl.u32 %v267, 7
    %v269 = vsub.s32 0, %v268
    %v270 = vrot.slane %v265, %v269
    %272 = vmatprep.subr.mxu0 0.0
    %273 = vmatpush1.msra.mxu0 %v261
    %274 = vmatprep.subr.mxu0 0.0
    %275 = vmatpush1.msra.mxu0 %v262
    %276 = vmatprep.subr.mxu0 0.0
    %277 = vmatpush1.msra.mxu0 %v263
    %278 = vmatprep.subr.mxu0 0.0
    %279 = vmatpush1.msra.mxu0 %v264
    %280 = vmatprep.subr.mxu0 0.0
    %281 = vmatpush1.msra.mxu0 0.0
    %282 = vmatprep.subr.mxu0 0.0
    %283 = vmatpush1.msra.mxu0 0.0
    %284 = vmatprep.subr.mxu0 0.0
    %285 = vmatpush1.msra.mxu0 0.0
    %286 = vmatprep.subr.mxu0 0.0
    %287 = vmatpush1.msra.mxu0 0.0
    %288 = vmatprep.subr.mxu0 0.0
    %289 = vmatpush1.msra.mxu0 0.0
    %290 = vmatprep.subr.mxu0 0.0
    %291 = vmatpush1.msra.mxu0 0.0
    %292 = vmatprep.subr.mxu0 0.0
    %293 = vmatpush1.msra.mxu0 0.0
    %294 = vmatprep.subr.mxu0 0.0
    %295 = vmatpush1.msra.mxu0 0.0
    %296 = vmatprep.subr.mxu0 0.0
    %297 = vmatpush1.msra.mxu0 0.0
    %298 = vmatprep.subr.mxu0 0.0
    %299 = vmatpush1.msra.mxu0 0.0
    %300 = vmatprep.subr.mxu0 0.0
    %301 = vmatpush1.msra.mxu0 0.0
    %302 = vmatprep.subr.mxu0 0.0
    %303 = vmatpush1.msra.mxu0 0.0
    %304 = vmatprep.subr.mxu0 0.0
    %305 = vmatpush1.msra.mxu0 0.0
    %306 = vmatprep.subr.mxu0 0.0
    %307 = vmatpush1.msra.mxu0 0.0
    %308 = vmatprep.subr.mxu0 0.0
    %309 = vmatpush1.msra.mxu0 0.0
    %310 = vmatprep.subr.mxu0 0.0
    %311 = vmatpush1.msra.mxu0 0.0
    %312 = vmatprep.subr.mxu0 0.0
    %313 = vmatpush1.msra.mxu0 0.0
    %314 = vmatprep.subr.mxu0 0.0
    %315 = vmatpush1.msra.mxu0 0.0
    %316 = vmatprep.subr.mxu0 0.0
    %317 = vmatpush1.msra.mxu0 0.0
    %318 = vmatprep.subr.mxu0 0.0
    %319 = vmatpush1.msra.mxu0 0.0
    %320 = vmatprep.subr.mxu0 0.0
    %321 = vmatpush1.msra.mxu0 0.0
    %322 = vmatprep.subr.mxu0 0.0
    %323 = vmatpush1.msra.mxu0 0.0
    %324 = vmatprep.subr.mxu0 0.0
    %325 = vmatpush1.msra.mxu0 0.0
    %326 = vmatprep.subr.mxu0 0.0
    %327 = vmatpush1.msra.mxu0 0.0
    %328 = vmatprep.subr.mxu0 0.0
    %329 = vmatpush1.msra.mxu0 0.0
    %330 = vmatprep.subr.mxu0 0.0
    %331 = vmatpush1.msra.mxu0 0.0
    %332 = vmatprep.subr.mxu0 0.0
    %333 = vmatpush1.msra.mxu0 0.0
    %334 = vmatprep.subr.mxu0 0.0
    %335 = vmatpush1.msra.mxu0 0.0
    %336 = vmatprep.mubr.f32.mxu0 0.0
    %337 = vmatmul.mubr.f32.gmra.mrb[0].mxu0 %v179
    %v338 = vpop.f32.mrb[0].mxu0
    %v339 = vadd.f32 %v270, %v338
    %v340 = vpop.f32.mrb[0].mxu0
    %341 = vmatprep.mubr.f32.mxu0 0.0
    %342 = vmatmul.mubr.f32.gmra.mrb[0].mxu0 %v182
    %v343 = vpop.f32.mrb[0].mxu0
    %v344 = vadd.f32 %v270, %v343
    %v345 = vpop.f32.mrb[0].mxu0
    %346 = vdwg.mxu0
    %347 = vst [vmem:[#allocation3] sm:$0xff] %v339
    %348 = vst [vmem:[#allocation3 + $0x8] sm:$0xff] %v344
    %v349 = vld [vmem:[#allocation9] sm:$0xff]
    %v350 = vld [vmem:[#allocation9 + $0x8] sm:$0xff]
    %v351 = vld [vmem:[#allocation9 + $0x10] sm:$0xff]
    %v352 = vld [vmem:[#allocation9 + $0x18] sm:$0xff]
    %v353 = vld [vmem:[#allocation2] sm:$0x3]
    %v355 = vsel %vm177, 0.0, 0
    %357 = vmatprep.subr.mxu0 0.0
    %358 = vmatpush1.msra.mxu0 %v349
    %359 = vmatprep.subr.mxu0 0.0
    %360 = vmatpush1.msra.mxu0 %v350
    %361 = vmatprep.subr.mxu0 0.0
    %362 = vmatpush1.msra.mxu0 %v351
    %363 = vmatprep.subr.mxu0 0.0
    %364 = vmatpush1.msra.mxu0 %v352
    %365 = vmatprep.subr.mxu0 0.0
    %366 = vmatpush1.msra.mxu0 0.0
    %367 = vmatprep.subr.mxu0 0.0
    %368 = vmatpush1.msra.mxu0 0.0
    %369 = vmatprep.subr.mxu0 0.0
    %370 = vmatpush1.msra.mxu0 0.0
    %371 = vmatprep.subr.mxu0 0.0
    %372 = vmatpush1.msra.mxu0 0.0
    %373 = vmatprep.subr.mxu0 0.0
    %374 = vmatpush1.msra.mxu0 0.0
    %375 = vmatprep.subr.mxu0 0.0
    %376 = vmatpush1.msra.mxu0 0.0
    %377 = vmatprep.subr.mxu0 0.0
    %378 = vmatpush1.msra.mxu0 0.0
    %379 = vmatprep.subr.mxu0 0.0
    %380 = vmatpush1.msra.mxu0 0.0
    %381 = vmatprep.subr.mxu0 0.0
    %382 = vmatpush1.msra.mxu0 0.0
    %383 = vmatprep.subr.mxu0 0.0
    %384 = vmatpush1.msra.mxu0 0.0
    %385 = vmatprep.subr.mxu0 0.0
    %386 = vmatpush1.msra.mxu0 0.0
    %387 = vmatprep.subr.mxu0 0.0
    %388 = vmatpush1.msra.mxu0 0.0
    %389 = vmatprep.subr.mxu0 0.0
    %390 = vmatpush1.msra.mxu0 0.0
    %391 = vmatprep.subr.mxu0 0.0
    %392 = vmatpush1.msra.mxu0 0.0
    %393 = vmatprep.subr.mxu0 0.0
    %394 = vmatpush1.msra.mxu0 0.0
    %395 = vmatprep.subr.mxu0 0.0
    %396 = vmatpush1.msra.mxu0 0.0
    %397 = vmatprep.subr.mxu0 0.0
    %398 = vmatpush1.msra.mxu0 0.0
    %399 = vmatprep.subr.mxu0 0.0
    %400 = vmatpush1.msra.mxu0 0.0
    %401 = vmatprep.subr.mxu0 0.0
    %402 = vmatpush1.msra.mxu0 0.0
    %403 = vmatprep.subr.mxu0 0.0
    %404 = vmatpush1.msra.mxu0 0.0
    %405 = vmatprep.subr.mxu0 0.0
    %406 = vmatpush1.msra.mxu0 0.0
    %407 = vmatprep.subr.mxu0 0.0
    %408 = vmatpush1.msra.mxu0 0.0
    %409 = vmatprep.subr.mxu0 0.0
    %410 = vmatpush1.msra.mxu0 0.0
    %411 = vmatprep.subr.mxu0 0.0
    %412 = vmatpush1.msra.mxu0 0.0
    %413 = vmatprep.subr.mxu0 0.0
    %414 = vmatpush1.msra.mxu0 0.0
    %415 = vmatprep.subr.mxu0 0.0
    %416 = vmatpush1.msra.mxu0 0.0
    %417 = vmatprep.subr.mxu0 0.0
    %418 = vmatpush1.msra.mxu0 0.0
    %419 = vmatprep.subr.mxu0 0.0
    %420 = vmatpush1.msra.mxu0 0.0
    %421 = vmatprep.mubr.f32.mxu0 0.0
    %422 = vmatmul.mubr.f32.gmra.mrb[0].mxu0 %v355
    %v423 = vpop.f32.mrb[0].mxu0
    %v424 = vadd.f32 0.0, %v423
    %v425 = vpop.f32.mrb[0].mxu0
    %426 = vdwg.mxu0
    %v427 = vadd.f32 %v353, %v424
    %v428 = vxor.u32 %v427, 2147483648
    %v429 = vmul.f32 %v428, 1.442695
    %v430 = vpow.pop %v429
    %v431 = vadd.f32 %v430, 1.0
    %v432 = vrcp.pop %v431
    %v433 = vmul.f32 1.0, %v432
    %v434 = vtanh.pop %v427
    %v435 = vmul.f32 %v433, 0.0
    %437 = vrot.lane.b32.xlu0 %v434, 64
    %v438 = vpop.permute.xlu0 %437
    %v440 = vmul.f32 %v433, %v438
    %442 = vrot.lane.b32.xlu0 %v440, 32
    %v443 = vpop.permute.xlu0 %442
    %v445 = vadd.f32 %v435, %v443
    %v446 = vtanh.pop %v445
    %448 = vrot.lane.b32.xlu0 %v446, 64
    %v449 = vpop.permute.xlu0 %448
    %v451 = vmul.f32 %v433, %v449
    %vm452 = vcmp.gt.s32.totalorder %v163, 0
    %v453 = vsel %vm452, 1, 0
    %454 = vset.pattern.permute.xlu0 0
    %455 = vperm.xlu0 %454, %v453
    %v456 = vpop.permute.xlu0 %455
    %vm457 = vcmp.eq.s32.totalorder %v456, 1
    %v458 = vsel %vm457, %v451, 0.0
    %460 = vrot.lane.b32.xlu0 %v458, 32
    %v461 = vpop.permute.xlu0 %460
    %vm463 = vcmask 254976
    %464 = vst.msk [vmem:[#allocation18] sm:$0x3] %vm463, %v461
    %v465 = vsel %vm457, %v445, 0.0
    %s466 = scalar_lea.vmem [#allocation2], 2
    %v467 = vld [vmem:[%s466] sm:$0x3]
    %v468 = vsel %vm177, %v461, 0
    %470 = vmatprep.subr.mxu0 0.0
    %471 = vmatpush1.msra.mxu0 %v349
    %472 = vmatprep.subr.mxu0 0.0
    %473 = vmatpush1.msra.mxu0 %v350
    %474 = vmatprep.subr.mxu0 0.0
    %475 = vmatpush1.msra.mxu0 %v351
    %476 = vmatprep.subr.mxu0 0.0
    %477 = vmatpush1.msra.mxu0 %v352
    %478 = vmatprep.subr.mxu0 0.0
    %479 = vmatpush1.msra.mxu0 0.0
    %480 = vmatprep.subr.mxu0 0.0
    %481 = vmatpush1.msra.mxu0 0.0
    %482 = vmatprep.subr.mxu0 0.0
    %483 = vmatpush1.msra.mxu0 0.0
    %484 = vmatprep.subr.mxu0 0.0
    %485 = vmatpush1.msra.mxu0 0.0
    %486 = vmatprep.subr.mxu0 0.0
    %487 = vmatpush1.msra.mxu0 0.0
    %488 = vmatprep.subr.mxu0 0.0
    %489 = vmatpush1.msra.mxu0 0.0
    %490 = vmatprep.subr.mxu0 0.0
    %491 = vmatpush1.msra.mxu0 0.0
    %492 = vmatprep.subr.mxu0 0.0
    %493 = vmatpush1.msra.mxu0 0.0
    %494 = vmatprep.subr.mxu0 0.0
    %495 = vmatpush1.msra.mxu0 0.0
    %496 = vmatprep.subr.mxu0 0.0
    %497 = vmatpush1.msra.mxu0 0.0
    %498 = vmatprep.subr.mxu0 0.0
    %499 = vmatpush1.msra.mxu0 0.0
    %500 = vmatprep.subr.mxu0 0.0
    %501 = vmatpush1.msra.mxu0 0.0
    %502 = vmatprep.subr.mxu0 0.0
    %503 = vmatpush1.msra.mxu0 0.0
    %504 = vmatprep.subr.mxu0 0.0
    %505 = vmatpush1.msra.mxu0 0.0
    %506 = vmatprep.subr.mxu0 0.0
    %507 = vmatpush1.msra.mxu0 0.0
    %508 = vmatprep.subr.mxu0 0.0
    %509 = vmatpush1.msra.mxu0 0.0
    %510 = vmatprep.subr.mxu0 0.0
    %511 = vmatpush1.msra.mxu0 0.0
    %512 = vmatprep.subr.mxu0 0.0
    %513 = vmatpush1.msra.mxu0 0.0
    %514 = vmatprep.subr.mxu0 0.0
    %515 = vmatpush1.msra.mxu0 0.0
    %516 = vmatprep.subr.mxu0 0.0
    %517 = vmatpush1.msra.mxu0 0.0
    %518 = vmatprep.subr.mxu0 0.0
    %519 = vmatpush1.msra.mxu0 0.0
    %520 = vmatprep.subr.mxu0 0.0
    %521 = vmatpush1.msra.mxu0 0.0
    %522 = vmatprep.subr.mxu0 0.0
    %523 = vmatpush1.msra.mxu0 0.0
    %524 = vmatprep.subr.mxu0 0.0
    %525 = vmatpush1.msra.mxu0 0.0
    %526 = vmatprep.subr.mxu0 0.0
    %527 = vmatpush1.msra.mxu0 0.0
    %528 = vmatprep.subr.mxu0 0.0
    %529 = vmatpush1.msra.mxu0 0.0
    %530 = vmatprep.subr.mxu0 0.0
    %531 = vmatpush1.msra.mxu0 0.0
    %532 = vmatprep.subr.mxu0 0.0
    %533 = vmatpush1.msra.mxu0 0.0
    %534 = vmatprep.mubr.f32.mxu0 0.0
    %535 = vmatmul.mubr.f32.gmra.mrb[0].mxu0 %v468
    %v536 = vpop.f32.mrb[0].mxu0
    %v537 = vadd.f32 0.0, %v536
    %v538 = vpop.f32.mrb[0].mxu0
    %539 = vdwg.mxu0
    %v540 = vadd.f32 %v467, %v537
    %v541 = vxor.u32 %v540, 2147483648
    %v542 = vmul.f32 %v541, 1.442695
    %v543 = vpow.pop %v542
    %v544 = vadd.f32 %v543, 1.0
    %v545 = vrcp.pop %v544
    %v546 = vmul.f32 1.0, %v545
    %v547 = vtanh.pop %v540
    %v548 = vmul.f32 %v546, %v465
    %550 = vrot.lane.b32.xlu0 %v547, 64
    %v551 = vpop.permute.xlu0 %550
    %v553 = vmul.f32 %v546, %v551
    %555 = vrot.lane.b32.xlu0 %v553, 32
    %v556 = vpop.permute.xlu0 %555
    %v558 = vadd.f32 %v548, %v556
    %v559 = vtanh.pop %v558
    %561 = vrot.lane.b32.xlu0 %v559, 64
    %v562 = vpop.permute.xlu0 %561
    %v564 = vmul.f32 %v546, %v562
    %vm565 = vcmp.gt.s32.totalorder %v163, 1
    %v566 = vsel %vm565, 1, 0
    %567 = vset.pattern.permute.xlu0 0
    %568 = vperm.xlu0 %567, %v566
    %v569 = vpop.permute.xlu0 %568
    %vm570 = vcmp.eq.s32.totalorder %v569, 1
    %v571 = vsel %vm570, %v564, 0.0
    %573 = vrot.lane.b32.xlu0 %v571, 32
    %v574 = vpop.permute.xlu0 %573
    %s576 = scalar_lea.vmem [#allocation18], 2
    %577 = vst.msk [vmem:[%s576] sm:$0x3] %vm463, %v574
    %v578 = vsel %vm570, %v564, %v458
    %v579 = vsel %vm570, %v558, %v465
    %s580 = scalar_lea.vmem [#allocation2], 4
    %v581 = vld [vmem:[%s580] sm:$0x3]
    %583 = vrot.lane.b32.xlu0 %v578, 32
    %v584 = vpop.permute.xlu0 %583
    %v585 = vsel %vm177, %v584, 0
    %587 = vmatprep.subr.mxu0 0.0
    %588 = vmatpush1.msra.mxu0 %v349
    %589 = vmatprep.subr.mxu0 0.0
    %590 = vmatpush1.msra.mxu0 %v350
    %591 = vmatprep.subr.mxu0 0.0
    %592 = vmatpush1.msra.mxu0 %v351
    %593 = vmatprep.subr.mxu0 0.0
    %594 = vmatpush1.msra.mxu0 %v352
    %595 = vmatprep.subr.mxu0 0.0
    %596 = vmatpush1.msra.mxu0 0.0
    %597 = vmatprep.subr.mxu0 0.0
    %598 = vmatpush1.msra.mxu0 0.0
    %599 = vmatprep.subr.mxu0 0.0
    %600 = vmatpush1.msra.mxu0 0.0
    %601 = vmatprep.subr.mxu0 0.0
    %602 = vmatpush1.msra.mxu0 0.0
    %603 = vmatprep.subr.mxu0 0.0
    %604 = vmatpush1.msra.mxu0 0.0
    %605 = vmatprep.subr.mxu0 0.0
    %606 = vmatpush1.msra.mxu0 0.0
    %607 = vmatprep.subr.mxu0 0.0
    %608 = vmatpush1.msra.mxu0 0.0
    %609 = vmatprep.subr.mxu0 0.0
    %610 = vmatpush1.msra.mxu0 0.0
    %611 = vmatprep.subr.mxu0 0.0
    %612 = vmatpush1.msra.mxu0 0.0
    %613 = vmatprep.subr.mxu0 0.0
    %614 = vmatpush1.msra.mxu0 0.0
    %615 = vmatprep.subr.mxu0 0.0
    %616 = vmatpush1.msra.mxu0 0.0
    %617 = vmatprep.subr.mxu0 0.0
    %618 = vmatpush1.msra.mxu0 0.0
    %619 = vmatprep.subr.mxu0 0.0
    %620 = vmatpush1.msra.mxu0 0.0
    %621 = vmatprep.subr.mxu0 0.0
    %622 = vmatpush1.msra.mxu0 0.0
    %623 = vmatprep.subr.mxu0 0.0
    %624 = vmatpush1.msra.mxu0 0.0
    %625 = vmatprep.subr.mxu0 0.0
    %626 = vmatpush1.msra.mxu0 0.0
    %627 = vmatprep.subr.mxu0 0.0
    %628 = vmatpush1.msra.mxu0 0.0
    %629 = vmatprep.subr.mxu0 0.0
    %630 = vmatpush1.msra.mxu0 0.0
    %631 = vmatprep.subr.mxu0 0.0
    %632 = vmatpush1.msra.mxu0 0.0
    %633 = vmatprep.subr.mxu0 0.0
    %634 = vmatpush1.msra.mxu0 0.0
    %635 = vmatprep.subr.mxu0 0.0
    %636 = vmatpush1.msra.mxu0 0.0
    %637 = vmatprep.subr.mxu0 0.0
    %638 = vmatpush1.msra.mxu0 0.0
    %639 = vmatprep.subr.mxu0 0.0
    %640 = vmatpush1.msra.mxu0 0.0
    %641 = vmatprep.subr.mxu0 0.0
    %642 = vmatpush1.msra.mxu0 0.0
    %643 = vmatprep.subr.mxu0 0.0
    %644 = vmatpush1.msra.mxu0 0.0
    %645 = vmatprep.subr.mxu0 0.0
    %646 = vmatpush1.msra.mxu0 0.0
    %647 = vmatprep.subr.mxu0 0.0
    %648 = vmatpush1.msra.mxu0 0.0
    %649 = vmatprep.subr.mxu0 0.0
    %650 = vmatpush1.msra.mxu0 0.0
    %651 = vmatprep.mubr.f32.mxu0 0.0
    %652 = vmatmul.mubr.f32.gmra.mrb[0].mxu0 %v585
    %v653 = vpop.f32.mrb[0].mxu0
    %v654 = vadd.f32 0.0, %v653
    %v655 = vpop.f32.mrb[0].mxu0
    %656 = vdwg.mxu0
    %v657 = vadd.f32 %v581, %v654
    %v658 = vxor.u32 %v657, 2147483648
    %v659 = vmul.f32 %v658, 1.442695
    %v660 = vpow.pop %v659
    %v661 = vadd.f32 %v660, 1.0
    %v662 = vrcp.pop %v661
    %v663 = vmul.f32 1.0, %v662
    %v664 = vtanh.pop %v657
    %v665 = vmul.f32 %v663, %v579
    %667 = vrot.lane.b32.xlu0 %v664, 64
    %v668 = vpop.permute.xlu0 %667
    %v670 = vmul.f32 %v663, %v668
    %672 = vrot.lane.b32.xlu0 %v670, 32
    %v673 = vpop.permute.xlu0 %672
    %v675 = vadd.f32 %v665, %v673
    %v676 = vtanh.pop %v675
    %678 = vrot.lane.b32.xlu0 %v676, 64
    %v679 = vpop.permute.xlu0 %678
    %v681 = vmul.f32 %v663, %v679
    %vm682 = vcmp.gt.s32.totalorder %v163, 2
    %v683 = vsel %vm682, 1, 0
    %684 = vset.pattern.permute.xlu0 0
    %685 = vperm.xlu0 %684, %v683
    %v686 = vpop.permute.xlu0 %685
    %vm687 = vcmp.eq.s32.totalorder %v686, 1
    %v688 = vsel %vm687, %v681, 0.0
    %690 = vrot.lane.b32.xlu0 %v688, 32
    %v691 = vpop.permute.xlu0 %690
    %s693 = scalar_lea.vmem [#allocation18], 4
    %694 = vst.msk [vmem:[%s693] sm:$0x3] %vm463, %v691
    %v695 = vsel %vm687, %v681, %v578
    %v696 = vsel %vm687, %v675, %v579
    %s697 = scalar_lea.vmem [#allocation2], 6
    %v698 = vld [vmem:[%s697] sm:$0x3]
    %700 = vrot.lane.b32.xlu0 %v695, 32
    %v701 = vpop.permute.xlu0 %700
    %v702 = vsel %vm177, %v701, 0
    %704 = vmatprep.subr.mxu0 0.0
    %705 = vmatpush1.msra.mxu0 %v349
    %706 = vmatprep.subr.mxu0 0.0
    %707 = vmatpush1.msra.mxu0 %v350
    %708 = vmatprep.subr.mxu0 0.0
    %709 = vmatpush1.msra.mxu0 %v351
    %710 = vmatprep.subr.mxu0 0.0
    %711 = vmatpush1.msra.mxu0 %v352
    %712 = vmatprep.subr.mxu0 0.0
    %713 = vmatpush1.msra.mxu0 0.0
    %714 = vmatprep.subr.mxu0 0.0
    %715 = vmatpush1.msra.mxu0 0.0
    %716 = vmatprep.subr.mxu0 0.0
    %717 = vmatpush1.msra.mxu0 0.0
    %718 = vmatprep.subr.mxu0 0.0
    %719 = vmatpush1.msra.mxu0 0.0
    %720 = vmatprep.subr.mxu0 0.0
    %721 = vmatpush1.msra.mxu0 0.0
    %722 = vmatprep.subr.mxu0 0.0
    %723 = vmatpush1.msra.mxu0 0.0
    %724 = vmatprep.subr.mxu0 0.0
    %725 = vmatpush1.msra.mxu0 0.0
    %726 = vmatprep.subr.mxu0 0.0
    %727 = vmatpush1.msra.mxu0 0.0
    %728 = vmatprep.subr.mxu0 0.0
    %729 = vmatpush1.msra.mxu0 0.0
    %730 = vmatprep.subr.mxu0 0.0
    %731 = vmatpush1.msra.mxu0 0.0
    %732 = vmatprep.subr.mxu0 0.0
    %733 = vmatpush1.msra.mxu0 0.0
    %734 = vmatprep.subr.mxu0 0.0
    %735 = vmatpush1.msra.mxu0 0.0
    %736 = vmatprep.subr.mxu0 0.0
    %737 = vmatpush1.msra.mxu0 0.0
    %738 = vmatprep.subr.mxu0 0.0
    %739 = vmatpush1.msra.mxu0 0.0
    %740 = vmatprep.subr.mxu0 0.0
    %741 = vmatpush1.msra.mxu0 0.0
    %742 = vmatprep.subr.mxu0 0.0
    %743 = vmatpush1.msra.mxu0 0.0
    %744 = vmatprep.subr.mxu0 0.0
    %745 = vmatpush1.msra.mxu0 0.0
    %746 = vmatprep.subr.mxu0 0.0
    %747 = vmatpush1.msra.mxu0 0.0
    %748 = vmatprep.subr.mxu0 0.0
    %749 = vmatpush1.msra.mxu0 0.0
    %750 = vmatprep.subr.mxu0 0.0
    %751 = vmatpush1.msra.mxu0 0.0
    %752 = vmatprep.subr.mxu0 0.0
    %753 = vmatpush1.msra.mxu0 0.0
    %754 = vmatprep.subr.mxu0 0.0
    %755 = vmatpush1.msra.mxu0 0.0
    %756 = vmatprep.subr.mxu0 0.0
    %757 = vmatpush1.msra.mxu0 0.0
    %758 = vmatprep.subr.mxu0 0.0
    %759 = vmatpush1.msra.mxu0 0.0
    %760 = vmatprep.subr.mxu0 0.0
    %761 = vmatpush1.msra.mxu0 0.0
    %762 = vmatprep.subr.mxu0 0.0
    %763 = vmatpush1.msra.mxu0 0.0
    %764 = vmatprep.subr.mxu0 0.0
    %765 = vmatpush1.msra.mxu0 0.0
    %766 = vmatprep.subr.mxu0 0.0
    %767 = vmatpush1.msra.mxu0 0.0
    %768 = vmatprep.mubr.f32.mxu0 0.0
    %769 = vmatmul.mubr.f32.gmra.mrb[0].mxu0 %v702
    %v770 = vpop.f32.mrb[0].mxu0
    %v771 = vadd.f32 0.0, %v770
    %v772 = vpop.f32.mrb[0].mxu0
    %773 = vdwg.mxu0
    %v774 = vadd.f32 %v698, %v771
    %v775 = vxor.u32 %v774, 2147483648
    %v776 = vmul.f32 %v775, 1.442695
    %v777 = vpow.pop %v776
    %v778 = vadd.f32 %v777, 1.0
    %v779 = vrcp.pop %v778
    %v780 = vmul.f32 1.0, %v779
    %v781 = vtanh.pop %v774
    %v782 = vmul.f32 %v780, %v696
    %784 = vrot.lane.b32.xlu0 %v781, 64
    %v785 = vpop.permute.xlu0 %784
    %v787 = vmul.f32 %v780, %v785
    %789 = vrot.lane.b32.xlu0 %v787, 32
    %v790 = vpop.permute.xlu0 %789
    %v792 = vadd.f32 %v782, %v790
    %v793 = vtanh.pop %v792
    %795 = vrot.lane.b32.xlu0 %v793, 64
    %v796 = vpop.permute.xlu0 %795
    %v798 = vmul.f32 %v780, %v796
    %vm799 = vcmp.gt.s32.totalorder %v163, 3
    %v800 = vsel %vm799, 1, 0
    %801 = vset.pattern.permute.xlu0 0
    %802 = vperm.xlu0 %801, %v800
    %v803 = vpop.permute.xlu0 %802
    %vm804 = vcmp.eq.s32.totalorder %v803, 1
    %v805 = vsel %vm804, %v798, 0.0
    %807 = vrot.lane.b32.xlu0 %v805, 32
    %v808 = vpop.permute.xlu0 %807
    %s810 = scalar_lea.vmem [#allocation18], 6
    %811 = vst.msk [vmem:[%s810] sm:$0x3] %vm463, %v808
    %v812 = vsel %vm804, %v798, %v695
    %v813 = vsel %vm804, %v792, %v696
    %s814 = scalar_lea.vmem [#allocation2], 8
    %v815 = vld [vmem:[%s814] sm:$0x3]
    %817 = vrot.lane.b32.xlu0 %v812, 32
    %v818 = vpop.permute.xlu0 %817
    %v819 = vsel %vm177, %v818, 0
    %821 = vmatprep.subr.mxu0 0.0
    %822 = vmatpush1.msra.mxu0 %v349
    %823 = vmatprep.subr.mxu0 0.0
    %824 = vmatpush1.msra.mxu0 %v350
    %825 = vmatprep.subr.mxu0 0.0
    %826 = vmatpush1.msra.mxu0 %v351
    %827 = vmatprep.subr.mxu0 0.0
    %828 = vmatpush1.msra.mxu0 %v352
    %829 = vmatprep.subr.mxu0 0.0
    %830 = vmatpush1.msra.mxu0 0.0
    %831 = vmatprep.subr.mxu0 0.0
    %832 = vmatpush1.msra.mxu0 0.0
    %833 = vmatprep.subr.mxu0 0.0
    %834 = vmatpush1.msra.mxu0 0.0
    %835 = vmatprep.subr.mxu0 0.0
    %836 = vmatpush1.msra.mxu0 0.0
    %837 = vmatprep.subr.mxu0 0.0
    %838 = vmatpush1.msra.mxu0 0.0
    %839 = vmatprep.subr.mxu0 0.0
    %840 = vmatpush1.msra.mxu0 0.0
    %841 = vmatprep.subr.mxu0 0.0
    %842 = vmatpush1.msra.mxu0 0.0
    %843 = vmatprep.subr.mxu0 0.0
    %844 = vmatpush1.msra.mxu0 0.0
    %845 = vmatprep.subr.mxu0 0.0
    %846 = vmatpush1.msra.mxu0 0.0
    %847 = vmatprep.subr.mxu0 0.0
    %848 = vmatpush1.msra.mxu0 0.0
    %849 = vmatprep.subr.mxu0 0.0
    %850 = vmatpush1.msra.mxu0 0.0
    %851 = vmatprep.subr.mxu0 0.0
    %852 = vmatpush1.msra.mxu0 0.0
    %853 = vmatprep.subr.mxu0 0.0
    %854 = vmatpush1.msra.mxu0 0.0
    %855 = vmatprep.subr.mxu0 0.0
    %856 = vmatpush1.msra.mxu0 0.0
    %857 = vmatprep.subr.mxu0 0.0
    %858 = vmatpush1.msra.mxu0 0.0
    %859 = vmatprep.subr.mxu0 0.0
    %860 = vmatpush1.msra.mxu0 0.0
    %861 = vmatprep.subr.mxu0 0.0
    %862 = vmatpush1.msra.mxu0 0.0
    %863 = vmatprep.subr.mxu0 0.0
    %864 = vmatpush1.msra.mxu0 0.0
    %865 = vmatprep.subr.mxu0 0.0
    %866 = vmatpush1.msra.mxu0 0.0
    %867 = vmatprep.subr.mxu0 0.0
    %868 = vmatpush1.msra.mxu0 0.0
    %869 = vmatprep.subr.mxu0 0.0
    %870 = vmatpush1.msra.mxu0 0.0
    %871 = vmatprep.subr.mxu0 0.0
    %872 = vmatpush1.msra.mxu0 0.0
    %873 = vmatprep.subr.mxu0 0.0
    %874 = vmatpush1.msra.mxu0 0.0
    %875 = vmatprep.subr.mxu0 0.0
    %876 = vmatpush1.msra.mxu0 0.0
    %877 = vmatprep.subr.mxu0 0.0
    %878 = vmatpush1.msra.mxu0 0.0
    %879 = vmatprep.subr.mxu0 0.0
    %880 = vmatpush1.msra.mxu0 0.0
    %881 = vmatprep.subr.mxu0 0.0
    %882 = vmatpush1.msra.mxu0 0.0
    %883 = vmatprep.subr.mxu0 0.0
    %884 = vmatpush1.msra.mxu0 0.0
    %885 = vmatprep.mubr.f32.mxu0 0.0
    %886 = vmatmul.mubr.f32.gmra.mrb[0].mxu0 %v819
    %v887 = vpop.f32.mrb[0].mxu0
    %v888 = vadd.f32 0.0, %v887
    %v889 = vpop.f32.mrb[0].mxu0
    %890 = vdwg.mxu0
    %v891 = vadd.f32 %v815, %v888
    %v892 = vxor.u32 %v891, 2147483648
    %v893 = vmul.f32 %v892, 1.442695
    %v894 = vpow.pop %v893
    %v895 = vadd.f32 %v894, 1.0
    %v896 = vrcp.pop %v895
    %v897 = vmul.f32 1.0, %v896
    %v898 = vtanh.pop %v891
    %v899 = vmul.f32 %v897, %v813
    %901 = vrot.lane.b32.xlu0 %v898, 64
    %v902 = vpop.permute.xlu0 %901
    %v904 = vmul.f32 %v897, %v902
    %906 = vrot.lane.b32.xlu0 %v904, 32
    %v907 = vpop.permute.xlu0 %906
    %v909 = vadd.f32 %v899, %v907
    %v910 = vtanh.pop %v909
    %912 = vrot.lane.b32.xlu0 %v910, 64
    %v913 = vpop.permute.xlu0 %912
    %v915 = vmul.f32 %v897, %v913
    %vm916 = vcmp.gt.s32.totalorder %v163, 4
    %v917 = vsel %vm916, 1, 0
    %918 = vset.pattern.permute.xlu0 0
    %919 = vperm.xlu0 %918, %v917
    %v920 = vpop.permute.xlu0 %919
    %vm921 = vcmp.eq.s32.totalorder %v920, 1
    %v922 = vsel %vm921, %v915, 0.0
    %924 = vrot.lane.b32.xlu0 %v922, 32
    %v925 = vpop.permute.xlu0 %924
    %s927 = scalar_lea.vmem [#allocation18], 8
    %928 = vst.msk [vmem:[%s927] sm:$0x3] %vm463, %v925
    %v929 = vsel %vm921, %v915, %v812
    %v930 = vsel %vm921, %v909, %v813
    %s931 = scalar_lea.vmem [#allocation2], 10
    %v932 = vld [vmem:[%s931] sm:$0x3]
    %934 = vrot.lane.b32.xlu0 %v929, 32
    %v935 = vpop.permute.xlu0 %934
    %v936 = vsel %vm177, %v935, 0
    %938 = vmatprep.subr.mxu0 0.0
    %939 = vmatpush1.msra.mxu0 %v349
    %940 = vmatprep.subr.mxu0 0.0
    %941 = vmatpush1.msra.mxu0 %v350
    %942 = vmatprep.subr.mxu0 0.0
    %943 = vmatpush1.msra.mxu0 %v351
    %944 = vmatprep.subr.mxu0 0.0
    %945 = vmatpush1.msra.mxu0 %v352
    %946 = vmatprep.subr.mxu0 0.0
    %947 = vmatpush1.msra.mxu0 0.0
    %948 = vmatprep.subr.mxu0 0.0
    %949 = vmatpush1.msra.mxu0 0.0
    %950 = vmatprep.subr.mxu0 0.0
    %951 = vmatpush1.msra.mxu0 0.0
    %952 = vmatprep.subr.mxu0 0.0
    %953 = vmatpush1.msra.mxu0 0.0
    %954 = vmatprep.subr.mxu0 0.0
    %955 = vmatpush1.msra.mxu0 0.0
    %956 = vmatprep.subr.mxu0 0.0
    %957 = vmatpush1.msra.mxu0 0.0
    %958 = vmatprep.subr.mxu0 0.0
    %959 = vmatpush1.msra.mxu0 0.0
    %960 = vmatprep.subr.mxu0 0.0
    %961 = vmatpush1.msra.mxu0 0.0
    %962 = vmatprep.subr.mxu0 0.0
    %963 = vmatpush1.msra.mxu0 0.0
    %964 = vmatprep.subr.mxu0 0.0
    %965 = vmatpush1.msra.mxu0 0.0
    %966 = vmatprep.subr.mxu0 0.0
    %967 = vmatpush1.msra.mxu0 0.0
    %968 = vmatprep.subr.mxu0 0.0
    %969 = vmatpush1.msra.mxu0 0.0
    %970 = vmatprep.subr.mxu0 0.0
    %971 = vmatpush1.msra.mxu0 0.0
    %972 = vmatprep.subr.mxu0 0.0
    %973 = vmatpush1.msra.mxu0 0.0
    %974 = vmatprep.subr.mxu0 0.0
    %975 = vmatpush1.msra.mxu0 0.0
    %976 = vmatprep.subr.mxu0 0.0
    %977 = vmatpush1.msra.mxu0 0.0
    %978 = vmatprep.subr.mxu0 0.0
    %979 = vmatpush1.msra.mxu0 0.0
    %980 = vmatprep.subr.mxu0 0.0
    %981 = vmatpush1.msra.mxu0 0.0
    %982 = vmatprep.subr.mxu0 0.0
    %983 = vmatpush1.msra.mxu0 0.0
    %984 = vmatprep.subr.mxu0 0.0
    %985 = vmatpush1.msra.mxu0 0.0
    %986 = vmatprep.subr.mxu0 0.0
    %987 = vmatpush1.msra.mxu0 0.0
    %988 = vmatprep.subr.mxu0 0.0
    %989 = vmatpush1.msra.mxu0 0.0
    %990 = vmatprep.subr.mxu0 0.0
    %991 = vmatpush1.msra.mxu0 0.0
    %992 = vmatprep.subr.mxu0 0.0
    %993 = vmatpush1.msra.mxu0 0.0
    %994 = vmatprep.subr.mxu0 0.0
    %995 = vmatpush1.msra.mxu0 0.0
    %996 = vmatprep.subr.mxu0 0.0
    %997 = vmatpush1.msra.mxu0 0.0
    %998 = vmatprep.subr.mxu0 0.0
    %999 = vmatpush1.msra.mxu0 0.0
    %1000 = vmatprep.subr.mxu0 0.0
    %1001 = vmatpush1.msra.mxu0 0.0
    %1002 = vmatprep.mubr.f32.mxu0 0.0
    %1003 = vmatmul.mubr.f32.gmra.mrb[0].mxu0 %v936
    %v1004 = vpop.f32.mrb[0].mxu0
    %v1005 = vadd.f32 0.0, %v1004
    %v1006 = vpop.f32.mrb[0].mxu0
    %1007 = vdwg.mxu0
    %v1008 = vadd.f32 %v932, %v1005
    %v1009 = vxor.u32 %v1008, 2147483648
    %v1010 = vmul.f32 %v1009, 1.442695
    %v1011 = vpow.pop %v1010
    %v1012 = vadd.f32 %v1011, 1.0
    %v1013 = vrcp.pop %v1012
    %v1014 = vmul.f32 1.0, %v1013
    %v1015 = vtanh.pop %v1008
    %v1016 = vmul.f32 %v1014, %v930
    %1018 = vrot.lane.b32.xlu0 %v1015, 64
    %v1019 = vpop.permute.xlu0 %1018
    %v1021 = vmul.f32 %v1014, %v1019
    %1023 = vrot.lane.b32.xlu0 %v1021, 32
    %v1024 = vpop.permute.xlu0 %1023
    %v1026 = vadd.f32 %v1016, %v1024
    %v1027 = vtanh.pop %v1026
    %1029 = vrot.lane.b32.xlu0 %v1027, 64
    %v1030 = vpop.permute.xlu0 %1029
    %v1032 = vmul.f32 %v1014, %v1030
    %vm1033 = vcmp.gt.s32.totalorder %v163, 5
    %v1034 = vsel %vm1033, 1, 0
    %1035 = vset.pattern.permute.xlu0 0
    %1036 = vperm.xlu0 %1035, %v1034
    %v1037 = vpop.permute.xlu0 %1036
    %vm1038 = vcmp.eq.s32.totalorder %v1037, 1
    %v1039 = vsel %vm1038, %v1032, 0.0
    %1041 = vrot.lane.b32.xlu0 %v1039, 32
    %v1042 = vpop.permute.xlu0 %1041
    %s1044 = scalar_lea.vmem [#allocation18], 10
    %1045 = vst.msk [vmem:[%s1044] sm:$0x3] %vm463, %v1042
    %v1046 = vsel %vm1038, %v1032, %v929
    %v1047 = vsel %vm1038, %v1026, %v930
    %s1048 = scalar_lea.vmem [#allocation2], 12
    %v1049 = vld [vmem:[%s1048] sm:$0x3]
    %1051 = vrot.lane.b32.xlu0 %v1046, 32
    %v1052 = vpop.permute.xlu0 %1051
    %v1053 = vsel %vm177, %v1052, 0
    %1055 = vmatprep.subr.mxu0 0.0
    %1056 = vmatpush1.msra.mxu0 %v349
    %1057 = vmatprep.subr.mxu0 0.0
    %1058 = vmatpush1.msra.mxu0 %v350
    %1059 = vmatprep.subr.mxu0 0.0
    %1060 = vmatpush1.msra.mxu0 %v351
    %1061 = vmatprep.subr.mxu0 0.0
    %1062 = vmatpush1.msra.mxu0 %v352
    %1063 = vmatprep.subr.mxu0 0.0
    %1064 = vmatpush1.msra.mxu0 0.0
    %1065 = vmatprep.subr.mxu0 0.0
    %1066 = vmatpush1.msra.mxu0 0.0
    %1067 = vmatprep.subr.mxu0 0.0
    %1068 = vmatpush1.msra.mxu0 0.0
    %1069 = vmatprep.subr.mxu0 0.0
    %1070 = vmatpush1.msra.mxu0 0.0
    %1071 = vmatprep.subr.mxu0 0.0
    %1072 = vmatpush1.msra.mxu0 0.0
    %1073 = vmatprep.subr.mxu0 0.0
    %1074 = vmatpush1.msra.mxu0 0.0
    %1075 = vmatprep.subr.mxu0 0.0
    %1076 = vmatpush1.msra.mxu0 0.0
    %1077 = vmatprep.subr.mxu0 0.0
    %1078 = vmatpush1.msra.mxu0 0.0
    %1079 = vmatprep.subr.mxu0 0.0
    %1080 = vmatpush1.msra.mxu0 0.0
    %1081 = vmatprep.subr.mxu0 0.0
    %1082 = vmatpush1.msra.mxu0 0.0
    %1083 = vmatprep.subr.mxu0 0.0
    %1084 = vmatpush1.msra.mxu0 0.0
    %1085 = vmatprep.subr.mxu0 0.0
    %1086 = vmatpush1.msra.mxu0 0.0
    %1087 = vmatprep.subr.mxu0 0.0
    %1088 = vmatpush1.msra.mxu0 0.0
    %1089 = vmatprep.subr.mxu0 0.0
    %1090 = vmatpush1.msra.mxu0 0.0
    %1091 = vmatprep.subr.mxu0 0.0
    %1092 = vmatpush1.msra.mxu0 0.0
    %1093 = vmatprep.subr.mxu0 0.0
    %1094 = vmatpush1.msra.mxu0 0.0
    %1095 = vmatprep.subr.mxu0 0.0
    %1096 = vmatpush1.msra.mxu0 0.0
    %1097 = vmatprep.subr.mxu0 0.0
    %1098 = vmatpush1.msra.mxu0 0.0
    %1099 = vmatprep.subr.mxu0 0.0
    %1100 = vmatpush1.msra.mxu0 0.0
    %1101 = vmatprep.subr.mxu0 0.0
    %1102 = vmatpush1.msra.mxu0 0.0
    %1103 = vmatprep.subr.mxu0 0.0
    %1104 = vmatpush1.msra.mxu0 0.0
    %1105 = vmatprep.subr.mxu0 0.0
    %1106 = vmatpush1.msra.mxu0 0.0
    %1107 = vmatprep.subr.mxu0 0.0
    %1108 = vmatpush1.msra.mxu0 0.0
    %1109 = vmatprep.subr.mxu0 0.0
    %1110 = vmatpush1.msra.mxu0 0.0
    %1111 = vmatprep.subr.mxu0 0.0
    %1112 = vmatpush1.msra.mxu0 0.0
    %1113 = vmatprep.subr.mxu0 0.0
    %1114 = vmatpush1.msra.mxu0 0.0
    %1115 = vmatprep.subr.mxu0 0.0
    %1116 = vmatpush1.msra.mxu0 0.0
    %1117 = vmatprep.subr.mxu0 0.0
    %1118 = vmatpush1.msra.mxu0 0.0
    %1119 = vmatprep.mubr.f32.mxu0 0.0
    %1120 = vmatmul.mubr.f32.gmra.mrb[0].mxu0 %v1053
    %v1121 = vpop.f32.mrb[0].mxu0
    %v1122 = vadd.f32 0.0, %v1121
    %v1123 = vpop.f32.mrb[0].mxu0
    %1124 = vdwg.mxu0
    %v1125 = vadd.f32 %v1049, %v1122
    %v1126 = vxor.u32 %v1125, 2147483648
    %v1127 = vmul.f32 %v1126, 1.442695
    %v1128 = vpow.pop %v1127
    %v1129 = vadd.f32 %v1128, 1.0
    %v1130 = vrcp.pop %v1129
    %v1131 = vmul.f32 1.0, %v1130
    %v1132 = vtanh.pop %v1125
    %v1133 = vmul.f32 %v1131, %v1047
    %1135 = vrot.lane.b32.xlu0 %v1132, 64
    %v1136 = vpop.permute.xlu0 %1135
    %v1138 = vmul.f32 %v1131, %v1136
    %1140 = vrot.lane.b32.xlu0 %v1138, 32
    %v1141 = vpop.permute.xlu0 %1140
    %v1143 = vadd.f32 %v1133, %v1141
    %v1144 = vtanh.pop %v1143
    %1146 = vrot.lane.b32.xlu0 %v1144, 64
    %v1147 = vpop.permute.xlu0 %1146
    %v1149 = vmul.f32 %v1131, %v1147
    %vm1150 = vcmp.gt.s32.totalorder %v163, 6
    %v1151 = vsel %vm1150, 1, 0
    %1152 = vset.pattern.permute.xlu0 0
    %1153 = vperm.xlu0 %1152, %v1151
    %v1154 = vpop.permute.xlu0 %1153
    %vm1155 = vcmp.eq.s32.totalorder %v1154, 1
    %v1156 = vsel %vm1155, %v1149, 0.0
    %1158 = vrot.lane.b32.xlu0 %v1156, 32
    %v1159 = vpop.permute.xlu0 %1158
    %s1161 = scalar_lea.vmem [#allocation18], 12
    %1162 = vst.msk [vmem:[%s1161] sm:$0x3] %vm463, %v1159
    %v1163 = vsel %vm1155, %v1149, %v1046
    %v1164 = vsel %vm1155, %v1143, %v1047
    %s1165 = scalar_lea.vmem [#allocation2], 14
    %v1166 = vld [vmem:[%s1165] sm:$0x3]
    %1168 = vrot.lane.b32.xlu0 %v1163, 32
    %v1169 = vpop.permute.xlu0 %1168
    %v1170 = vsel %vm177, %v1169, 0
    %1172 = vmatprep.subr.mxu0 0.0
    %1173 = vmatpush1.msra.mxu0 %v349
    %1174 = vmatprep.subr.mxu0 0.0
    %1175 = vmatpush1.msra.mxu0 %v350
    %1176 = vmatprep.subr.mxu0 0.0
    %1177 = vmatpush1.msra.mxu0 %v351
    %1178 = vmatprep.subr.mxu0 0.0
    %1179 = vmatpush1.msra.mxu0 %v352
    %1180 = vmatprep.subr.mxu0 0.0
    %1181 = vmatpush1.msra.mxu0 0.0
    %1182 = vmatprep.subr.mxu0 0.0
    %1183 = vmatpush1.msra.mxu0 0.0
    %1184 = vmatprep.subr.mxu0 0.0
    %1185 = vmatpush1.msra.mxu0 0.0
    %1186 = vmatprep.subr.mxu0 0.0
    %1187 = vmatpush1.msra.mxu0 0.0
    %1188 = vmatprep.subr.mxu0 0.0
    %1189 = vmatpush1.msra.mxu0 0.0
    %1190 = vmatprep.subr.mxu0 0.0
    %1191 = vmatpush1.msra.mxu0 0.0
    %1192 = vmatprep.subr.mxu0 0.0
    %1193 = vmatpush1.msra.mxu0 0.0
    %1194 = vmatprep.subr.mxu0 0.0
    %1195 = vmatpush1.msra.mxu0 0.0
    %1196 = vmatprep.subr.mxu0 0.0
    %1197 = vmatpush1.msra.mxu0 0.0
    %1198 = vmatprep.subr.mxu0 0.0
    %1199 = vmatpush1.msra.mxu0 0.0
    %1200 = vmatprep.subr.mxu0 0.0
    %1201 = vmatpush1.msra.mxu0 0.0
    %1202 = vmatprep.subr.mxu0 0.0
    %1203 = vmatpush1.msra.mxu0 0.0
    %1204 = vmatprep.subr.mxu0 0.0
    %1205 = vmatpush1.msra.mxu0 0.0
    %1206 = vmatprep.subr.mxu0 0.0
    %1207 = vmatpush1.msra.mxu0 0.0
    %1208 = vmatprep.subr.mxu0 0.0
    %1209 = vmatpush1.msra.mxu0 0.0
    %1210 = vmatprep.subr.mxu0 0.0
    %1211 = vmatpush1.msra.mxu0 0.0
    %1212 = vmatprep.subr.mxu0 0.0
    %1213 = vmatpush1.msra.mxu0 0.0
    %1214 = vmatprep.subr.mxu0 0.0
    %1215 = vmatpush1.msra.mxu0 0.0
    %1216 = vmatprep.subr.mxu0 0.0
    %1217 = vmatpush1.msra.mxu0 0.0
    %1218 = vmatprep.subr.mxu0 0.0
    %1219 = vmatpush1.msra.mxu0 0.0
    %1220 = vmatprep.subr.mxu0 0.0
    %1221 = vmatpush1.msra.mxu0 0.0
    %1222 = vmatprep.subr.mxu0 0.0
    %1223 = vmatpush1.msra.mxu0 0.0
    %1224 = vmatprep.subr.mxu0 0.0
    %1225 = vmatpush1.msra.mxu0 0.0
    %1226 = vmatprep.subr.mxu0 0.0
    %1227 = vmatpush1.msra.mxu0 0.0
    %1228 = vmatprep.subr.mxu0 0.0
    %1229 = vmatpush1.msra.mxu0 0.0
    %1230 = vmatprep.subr.mxu0 0.0
    %1231 = vmatpush1.msra.mxu0 0.0
    %1232 = vmatprep.subr.mxu0 0.0
    %1233 = vmatpush1.msra.mxu0 0.0
    %1234 = vmatprep.subr.mxu0 0.0
    %1235 = vmatpush1.msra.mxu0 0.0
    %1236 = vmatprep.mubr.f32.mxu0 0.0
    %1237 = vmatmul.mubr.f32.gmra.mrb[0].mxu0 %v1170
    %v1238 = vpop.f32.mrb[0].mxu0
    %v1239 = vadd.f32 0.0, %v1238
    %v1240 = vpop.f32.mrb[0].mxu0
    %1241 = vdwg.mxu0
    %v1242 = vadd.f32 %v1166, %v1239
    %v1243 = vxor.u32 %v1242, 2147483648
    %v1244 = vmul.f32 %v1243, 1.442695
    %v1245 = vpow.pop %v1244
    %v1246 = vadd.f32 %v1245, 1.0
    %v1247 = vrcp.pop %v1246
    %v1248 = vmul.f32 1.0, %v1247
    %v1249 = vtanh.pop %v1242
    %v1250 = vmul.f32 %v1248, %v1164
    %1252 = vrot.lane.b32.xlu0 %v1249, 64
    %v1253 = vpop.permute.xlu0 %1252
    %v1255 = vmul.f32 %v1248, %v1253
    %1257 = vrot.lane.b32.xlu0 %v1255, 32
    %v1258 = vpop.permute.xlu0 %1257
    %v1260 = vadd.f32 %v1250, %v1258
    %v1261 = vtanh.pop %v1260
    %1263 = vrot.lane.b32.xlu0 %v1261, 64
    %v1264 = vpop.permute.xlu0 %1263
    %v1266 = vmul.f32 %v1248, %v1264
    %vm1267 = vcmp.gt.s32.totalorder %v163, 7
    %v1268 = vsel %vm1267, 1, 0
    %1269 = vset.pattern.permute.xlu0 0
    %1270 = vperm.xlu0 %1269, %v1268
    %v1271 = vpop.permute.xlu0 %1270
    %vm1272 = vcmp.eq.s32.totalorder %v1271, 1
    %v1273 = vsel %vm1272, %v1266, 0.0
    %1275 = vrot.lane.b32.xlu0 %v1273, 32
    %v1276 = vpop.permute.xlu0 %1275
    %s1278 = scalar_lea.vmem [#allocation18], 14
    %1279 = vst.msk [vmem:[%s1278] sm:$0x3] %vm463, %v1276
    %v1280 = vsel %vm1272, %v1266, %v1163
    %v1281 = vsel %vm1272, %v1260, %v1164
    %v1282 = vld [vmem:[#allocation12] sm:$0xff]
    %v1283 = vld [vmem:[#allocation12 + $0x8] sm:$0xff]
    %v1284 = vld [vmem:[#allocation12 + $0x10] sm:$0xff]
    %v1285 = vld [vmem:[#allocation12 + $0x18] sm:$0xff]
    %s1286 = scalar_lea.vmem [#allocation3], 14
    %v1287 = vld [vmem:[%s1286] sm:$0x3]
    %1288 = vmatprep.subr.mxu0 0.0
    %1289 = vmatpush1.msra.mxu0 %v1282
    %1290 = vmatprep.subr.mxu0 0.0
    %1291 = vmatpush1.msra.mxu0 %v1283
    %1292 = vmatprep.subr.mxu0 0.0
    %1293 = vmatpush1.msra.mxu0 %v1284
    %1294 = vmatprep.subr.mxu0 0.0
    %1295 = vmatpush1.msra.mxu0 %v1285
    %1296 = vmatprep.subr.mxu0 0.0
    %1297 = vmatpush1.msra.mxu0 0.0
    %1298 = vmatprep.subr.mxu0 0.0
    %1299 = vmatpush1.msra.mxu0 0.0
    %1300 = vmatprep.subr.mxu0 0.0
    %1301 = vmatpush1.msra.mxu0 0.0
    %1302 = vmatprep.subr.mxu0 0.0
    %1303 = vmatpush1.msra.mxu0 0.0
    %1304 = vmatprep.subr.mxu0 0.0
    %1305 = vmatpush1.msra.mxu0 0.0
    %1306 = vmatprep.subr.mxu0 0.0
    %1307 = vmatpush1.msra.mxu0 0.0
    %1308 = vmatprep.subr.mxu0 0.0
    %1309 = vmatpush1.msra.mxu0 0.0
    %1310 = vmatprep.subr.mxu0 0.0
    %1311 = vmatpush1.msra.mxu0 0.0
    %1312 = vmatprep.subr.mxu0 0.0
    %1313 = vmatpush1.msra.mxu0 0.0
    %1314 = vmatprep.subr.mxu0 0.0
    %1315 = vmatpush1.msra.mxu0 0.0
    %1316 = vmatprep.subr.mxu0 0.0
    %1317 = vmatpush1.msra.mxu0 0.0
    %1318 = vmatprep.subr.mxu0 0.0
    %1319 = vmatpush1.msra.mxu0 0.0
    %1320 = vmatprep.subr.mxu0 0.0
    %1321 = vmatpush1.msra.mxu0 0.0
    %1322 = vmatprep.subr.mxu0 0.0
    %1323 = vmatpush1.msra.mxu0 0.0
    %1324 = vmatprep.subr.mxu0 0.0
    %1325 = vmatpush1.msra.mxu0 0.0
    %1326 = vmatprep.subr.mxu0 0.0
    %1327 = vmatpush1.msra.mxu0 0.0
    %1328 = vmatprep.subr.mxu0 0.0
    %1329 = vmatpush1.msra.mxu0 0.0
    %1330 = vmatprep.subr.mxu0 0.0
    %1331 = vmatpush1.msra.mxu0 0.0
    %1332 = vmatprep.subr.mxu0 0.0
    %1333 = vmatpush1.msra.mxu0 0.0
    %1334 = vmatprep.subr.mxu0 0.0
    %1335 = vmatpush1.msra.mxu0 0.0
    %1336 = vmatprep.subr.mxu0 0.0
    %1337 = vmatpush1.msra.mxu0 0.0
    %1338 = vmatprep.subr.mxu0 0.0
    %1339 = vmatpush1.msra.mxu0 0.0
    %1340 = vmatprep.subr.mxu0 0.0
    %1341 = vmatpush1.msra.mxu0 0.0
    %1342 = vmatprep.subr.mxu0 0.0
    %1343 = vmatpush1.msra.mxu0 0.0
    %1344 = vmatprep.subr.mxu0 0.0
    %1345 = vmatpush1.msra.mxu0 0.0
    %1346 = vmatprep.subr.mxu0 0.0
    %1347 = vmatpush1.msra.mxu0 0.0
    %1348 = vmatprep.subr.mxu0 0.0
    %1349 = vmatpush1.msra.mxu0 0.0
    %1350 = vmatprep.subr.mxu0 0.0
    %1351 = vmatpush1.msra.mxu0 0.0
    %1352 = vmatprep.mubr.f32.mxu0 0.0
    %1353 = vmatmul.mubr.f32.gmra.mrb[0].mxu0 %v355
    %v1354 = vpop.f32.mrb[0].mxu0
    %v1355 = vadd.f32 0.0, %v1354
    %v1356 = vpop.f32.mrb[0].mxu0
    %1357 = vdwg.mxu0
    %v1358 = vadd.f32 %v1287, %v1355
    %v1359 = vxor.u32 %v1358, 2147483648
    %v1360 = vmul.f32 %v1359, 1.442695
    %v1361 = vpow.pop %v1360
    %v1362 = vadd.f32 %v1361, 1.0
    %v1363 = vrcp.pop %v1362
    %v1364 = vmul.f32 1.0, %v1363
    %v1365 = vtanh.pop %v1358
    %v1366 = vmul.f32 %v1364, 0.0
    %1368 = vrot.lane.b32.xlu0 %v1365, 64
    %v1369 = vpop.permute.xlu0 %1368
    %v1371 = vmul.f32 %v1364, %v1369
    %1373 = vrot.lane.b32.xlu0 %v1371, 32
    %v1374 = vpop.permute.xlu0 %1373
    %v1376 = vadd.f32 %v1366, %v1374
    %v1377 = vtanh.pop %v1376
    %1379 = vrot.lane.b32.xlu0 %v1377, 64
    %v1380 = vpop.permute.xlu0 %1379
    %v1382 = vmul.f32 %v1364, %v1380
    %v1383 = vsel %vm1272, %v1382, 0.0
    %1385 = vrot.lane.b32.xlu0 %v1383, 32
    %v1386 = vpop.permute.xlu0 %1385
    %s1388 = scalar_lea.vmem [#allocation19], 14
    %1389 = vst.msk [vmem:[%s1388] sm:$0x3] %vm463, %v1386
    %v1390 = vsel %vm1272, %v1376, 0.0
    %s1391 = scalar_lea.vmem [#allocation3], 12
    %v1392 = vld [vmem:[%s1391] sm:$0x3]
    %v1393 = vsel %vm177, %v1386, 0
    %1395 = vmatprep.subr.mxu0 0.0
    %1396 = vmatpush1.msra.mxu0 %v1282
    %1397 = vmatprep.subr.mxu0 0.0
    %1398 = vmatpush1.msra.mxu0 %v1283
    %1399 = vmatprep.subr.mxu0 0.0
    %1400 = vmatpush1.msra.mxu0 %v1284
    %1401 = vmatprep.subr.mxu0 0.0
    %1402 = vmatpush1.msra.mxu0 %v1285
    %1403 = vmatprep.subr.mxu0 0.0
    %1404 = vmatpush1.msra.mxu0 0.0
    %1405 = vmatprep.subr.mxu0 0.0
    %1406 = vmatpush1.msra.mxu0 0.0
    %1407 = vmatprep.subr.mxu0 0.0
    %1408 = vmatpush1.msra.mxu0 0.0
    %1409 = vmatprep.subr.mxu0 0.0
    %1410 = vmatpush1.msra.mxu0 0.0
    %1411 = vmatprep.subr.mxu0 0.0
    %1412 = vmatpush1.msra.mxu0 0.0
    %1413 = vmatprep.subr.mxu0 0.0
    %1414 = vmatpush1.msra.mxu0 0.0
    %1415 = vmatprep.subr.mxu0 0.0
    %1416 = vmatpush1.msra.mxu0 0.0
    %1417 = vmatprep.subr.mxu0 0.0
    %1418 = vmatpush1.msra.mxu0 0.0
    %1419 = vmatprep.subr.mxu0 0.0
    %1420 = vmatpush1.msra.mxu0 0.0
    %1421 = vmatprep.subr.mxu0 0.0
    %1422 = vmatpush1.msra.mxu0 0.0
    %1423 = vmatprep.subr.mxu0 0.0
    %1424 = vmatpush1.msra.mxu0 0.0
    %1425 = vmatprep.subr.mxu0 0.0
    %1426 = vmatpush1.msra.mxu0 0.0
    %1427 = vmatprep.subr.mxu0 0.0
    %1428 = vmatpush1.msra.mxu0 0.0
    %1429 = vmatprep.subr.mxu0 0.0
    %1430 = vmatpush1.msra.mxu0 0.0
    %1431 = vmatprep.subr.mxu0 0.0
    %1432 = vmatpush1.msra.mxu0 0.0
    %1433 = vmatprep.subr.mxu0 0.0
    %1434 = vmatpush1.msra.mxu0 0.0
    %1435 = vmatprep.subr.mxu0 0.0
    %1436 = vmatpush1.msra.mxu0 0.0
    %1437 = vmatprep.subr.mxu0 0.0
    %1438 = vmatpush1.msra.mxu0 0.0
    %1439 = vmatprep.subr.mxu0 0.0
    %1440 = vmatpush1.msra.mxu0 0.0
    %1441 = vmatprep.subr.mxu0 0.0
    %1442 = vmatpush1.msra.mxu0 0.0
    %1443 = vmatprep.subr.mxu0 0.0
    %1444 = vmatpush1.msra.mxu0 0.0
    %1445 = vmatprep.subr.mxu0 0.0
    %1446 = vmatpush1.msra.mxu0 0.0
    %1447 = vmatprep.subr.mxu0 0.0
    %1448 = vmatpush1.msra.mxu0 0.0
    %1449 = vmatprep.subr.mxu0 0.0
    %1450 = vmatpush1.msra.mxu0 0.0
    %1451 = vmatprep.subr.mxu0 0.0
    %1452 = vmatpush1.msra.mxu0 0.0
    %1453 = vmatprep.subr.mxu0 0.0
    %1454 = vmatpush1.msra.mxu0 0.0
    %1455 = vmatprep.subr.mxu0 0.0
    %1456 = vmatpush1.msra.mxu0 0.0
    %1457 = vmatprep.subr.mxu0 0.0
    %1458 = vmatpush1.msra.mxu0 0.0
    %1459 = vmatprep.mubr.f32.mxu0 0.0
    %1460 = vmatmul.mubr.f32.gmra.mrb[0].mxu0 %v1393
    %v1461 = vpop.f32.mrb[0].mxu0
    %v1462 = vadd.f32 0.0, %v1461
    %v1463 = vpop.f32.mrb[0].mxu0
    %1464 = vdwg.mxu0
    %v1465 = vadd.f32 %v1392, %v1462
    %v1466 = vxor.u32 %v1465, 2147483648
    %v1467 = vmul.f32 %v1466, 1.442695
    %v1468 = vpow.pop %v1467
    %v1469 = vadd.f32 %v1468, 1.0
    %v1470 = vrcp.pop %v1469
    %v1471 = vmul.f32 1.0, %v1470
    %v1472 = vtanh.pop %v1465
    %v1473 = vmul.f32 %v1471, %v1390
    %1475 = vrot.lane.b32.xlu0 %v1472, 64
    %v1476 = vpop.permute.xlu0 %1475
    %v1478 = vmul.f32 %v1471, %v1476
    %1480 = vrot.lane.b32.xlu0 %v1478, 32
    %v1481 = vpop.permute.xlu0 %1480
    %v1483 = vadd.f32 %v1473, %v1481
    %v1484 = vtanh.pop %v1483
    %1486 = vrot.lane.b32.xlu0 %v1484, 64
    %v1487 = vpop.permute.xlu0 %1486
    %v1489 = vmul.f32 %v1471, %v1487
    %v1490 = vsel %vm1155, %v1489, 0.0
    %1492 = vrot.lane.b32.xlu0 %v1490, 32
    %v1493 = vpop.permute.xlu0 %1492
    %s1495 = scalar_lea.vmem [#allocation19], 12
    %1496 = vst.msk [vmem:[%s1495] sm:$0x3] %vm463, %v1493
    %v1497 = vsel %vm1155, %v1489, %v1383
    %v1498 = vsel %vm1155, %v1483, %v1390
    %s1499 = scalar_lea.vmem [#allocation3], 10
    %v1500 = vld [vmem:[%s1499] sm:$0x3]
    %1502 = vrot.lane.b32.xlu0 %v1497, 32
    %v1503 = vpop.permute.xlu0 %1502
    %v1504 = vsel %vm177, %v1503, 0
    %1506 = vmatprep.subr.mxu0 0.0
    %1507 = vmatpush1.msra.mxu0 %v1282
    %1508 = vmatprep.subr.mxu0 0.0
    %1509 = vmatpush1.msra.mxu0 %v1283
    %1510 = vmatprep.subr.mxu0 0.0
    %1511 = vmatpush1.msra.mxu0 %v1284
    %1512 = vmatprep.subr.mxu0 0.0
    %1513 = vmatpush1.msra.mxu0 %v1285
    %1514 = vmatprep.subr.mxu0 0.0
    %1515 = vmatpush1.msra.mxu0 0.0
    %1516 = vmatprep.subr.mxu0 0.0
    %1517 = vmatpush1.msra.mxu0 0.0
    %1518 = vmatprep.subr.mxu0 0.0
    %1519 = vmatpush1.msra.mxu0 0.0
    %1520 = vmatprep.subr.mxu0 0.0
    %1521 = vmatpush1.msra.mxu0 0.0
    %1522 = vmatprep.subr.mxu0 0.0
    %1523 = vmatpush1.msra.mxu0 0.0
    %1524 = vmatprep.subr.mxu0 0.0
    %1525 = vmatpush1.msra.mxu0 0.0
    %1526 = vmatprep.subr.mxu0 0.0
    %1527 = vmatpush1.msra.mxu0 0.0
    %1528 = vmatprep.subr.mxu0 0.0
    %1529 = vmatpush1.msra.mxu0 0.0
    %1530 = vmatprep.subr.mxu0 0.0
    %1531 = vmatpush1.msra.mxu0 0.0
    %1532 = vmatprep.subr.mxu0 0.0
    %1533 = vmatpush1.msra.mxu0 0.0
    %1534 = vmatprep.subr.mxu0 0.0
    %1535 = vmatpush1.msra.mxu0 0.0
    %1536 = vmatprep.subr.mxu0 0.0
    %1537 = vmatpush1.msra.mxu0 0.0
    %1538 = vmatprep.subr.mxu0 0.0
    %1539 = vmatpush1.msra.mxu0 0.0
    %1540 = vmatprep.subr.mxu0 0.0
    %1541 = vmatpush1.msra.mxu0 0.0
    %1542 = vmatprep.subr.mxu0 0.0
    %1543 = vmatpush1.msra.mxu0 0.0
    %1544 = vmatprep.subr.mxu0 0.0
    %1545 = vmatpush1.msra.mxu0 0.0
    %1546 = vmatprep.subr.mxu0 0.0
    %1547 = vmatpush1.msra.mxu0 0.0
    %1548 = vmatprep.subr.mxu0 0.0
    %1549 = vmatpush1.msra.mxu0 0.0
    %1550 = vmatprep.subr.mxu0 0.0
    %1551 = vmatpush1.msra.mxu0 0.0
    %1552 = vmatprep.subr.mxu0 0.0
    %1553 = vmatpush1.msra.mxu0 0.0
    %1554 = vmatprep.subr.mxu0 0.0
    %1555 = vmatpush1.msra.mxu0 0.0
    %1556 = vmatprep.subr.mxu0 0.0
    %1557 = vmatpush1.msra.mxu0 0.0
    %1558 = vmatprep.subr.mxu0 0.0
    %1559 = vmatpush1.msra.mxu0 0.0
    %1560 = vmatprep.subr.mxu0 0.0
    %1561 = vmatpush1.msra.mxu0 0.0
    %1562 = vmatprep.subr.mxu0 0.0
    %1563 = vmatpush1.msra.mxu0 0.0
    %1564 = vmatprep.subr.mxu0 0.0
    %1565 = vmatpush1.msra.mxu0 0.0
    %1566 = vmatprep.subr.mxu0 0.0
    %1567 = vmatpush1.msra.mxu0 0.0
    %1568 = vmatprep.subr.mxu0 0.0
    %1569 = vmatpush1.msra.mxu0 0.0
    %1570 = vmatprep.mubr.f32.mxu0 0.0
    %1571 = vmatmul.mubr.f32.gmra.mrb[0].mxu0 %v1504
    %v1572 = vpop.f32.mrb[0].mxu0
    %v1573 = vadd.f32 0.0, %v1572
    %v1574 = vpop.f32.mrb[0].mxu0
    %1575 = vdwg.mxu0
    %v1576 = vadd.f32 %v1500, %v1573
    %v1577 = vxor.u32 %v1576, 2147483648
    %v1578 = vmul.f32 %v1577, 1.442695
    %v1579 = vpow.pop %v1578
    %v1580 = vadd.f32 %v1579, 1.0
    %v1581 = vrcp.pop %v1580
    %v1582 = vmul.f32 1.0, %v1581
    %v1583 = vtanh.pop %v1576
    %v1584 = vmul.f32 %v1582, %v1498
    %1586 = vrot.lane.b32.xlu0 %v1583, 64
    %v1587 = vpop.permute.xlu0 %1586
    %v1589 = vmul.f32 %v1582, %v1587
    %1591 = vrot.lane.b32.xlu0 %v1589, 32
    %v1592 = vpop.permute.xlu0 %1591
    %v1594 = vadd.f32 %v1584, %v1592
    %v1595 = vtanh.pop %v1594
    %1597 = vrot.lane.b32.xlu0 %v1595, 64
    %v1598 = vpop.permute.xlu0 %1597
    %v1600 = vmul.f32 %v1582, %v1598
    %v1601 = vsel %vm1038, %v1600, 0.0
    %1603 = vrot.lane.b32.xlu0 %v1601, 32
    %v1604 = vpop.permute.xlu0 %1603
    %s1606 = scalar_lea.vmem [#allocation19], 10
    %1607 = vst.msk [vmem:[%s1606] sm:$0x3] %vm463, %v1604
    %v1608 = vsel %vm1038, %v1600, %v1497
    %v1609 = vsel %vm1038, %v1594, %v1498
    %s1610 = scalar_lea.vmem [#allocation3], 8
    %v1611 = vld [vmem:[%s1610] sm:$0x3]
    %1613 = vrot.lane.b32.xlu0 %v1608, 32
    %v1614 = vpop.permute.xlu0 %1613
    %v1615 = vsel %vm177, %v1614, 0
    %1617 = vmatprep.subr.mxu0 0.0
    %1618 = vmatpush1.msra.mxu0 %v1282
    %1619 = vmatprep.subr.mxu0 0.0
    %1620 = vmatpush1.msra.mxu0 %v1283
    %1621 = vmatprep.subr.mxu0 0.0
    %1622 = vmatpush1.msra.mxu0 %v1284
    %1623 = vmatprep.subr.mxu0 0.0
    %1624 = vmatpush1.msra.mxu0 %v1285
    %1625 = vmatprep.subr.mxu0 0.0
    %1626 = vmatpush1.msra.mxu0 0.0
    %1627 = vmatprep.subr.mxu0 0.0
    %1628 = vmatpush1.msra.mxu0 0.0
    %1629 = vmatprep.subr.mxu0 0.0
    %1630 = vmatpush1.msra.mxu0 0.0
    %1631 = vmatprep.subr.mxu0 0.0
    %1632 = vmatpush1.msra.mxu0 0.0
    %1633 = vmatprep.subr.mxu0 0.0
    %1634 = vmatpush1.msra.mxu0 0.0
    %1635 = vmatprep.subr.mxu0 0.0
    %1636 = vmatpush1.msra.mxu0 0.0
    %1637 = vmatprep.subr.mxu0 0.0
    %1638 = vmatpush1.msra.mxu0 0.0
    %1639 = vmatprep.subr.mxu0 0.0
    %1640 = vmatpush1.msra.mxu0 0.0
    %1641 = vmatprep.subr.mxu0 0.0
    %1642 = vmatpush1.msra.mxu0 0.0
    %1643 = vmatprep.subr.mxu0 0.0
    %1644 = vmatpush1.msra.mxu0 0.0
    %1645 = vmatprep.subr.mxu0 0.0
    %1646 = vmatpush1.msra.mxu0 0.0
    %1647 = vmatprep.subr.mxu0 0.0
    %1648 = vmatpush1.msra.mxu0 0.0
    %1649 = vmatprep.subr.mxu0 0.0
    %1650 = vmatpush1.msra.mxu0 0.0
    %1651 = vmatprep.subr.mxu0 0.0
    %1652 = vmatpush1.msra.mxu0 0.0
    %1653 = vmatprep.subr.mxu0 0.0
    %1654 = vmatpush1.msra.mxu0 0.0
    %1655 = vmatprep.subr.mxu0 0.0
    %1656 = vmatpush1.msra.mxu0 0.0
    %1657 = vmatprep.subr.mxu0 0.0
    %1658 = vmatpush1.msra.mxu0 0.0
    %1659 = vmatprep.subr.mxu0 0.0
    %1660 = vmatpush1.msra.mxu0 0.0
    %1661 = vmatprep.subr.mxu0 0.0
    %1662 = vmatpush1.msra.mxu0 0.0
    %1663 = vmatprep.subr.mxu0 0.0
    %1664 = vmatpush1.msra.mxu0 0.0
    %1665 = vmatprep.subr.mxu0 0.0
    %1666 = vmatpush1.msra.mxu0 0.0
    %1667 = vmatprep.subr.mxu0 0.0
    %1668 = vmatpush1.msra.mxu0 0.0
    %1669 = vmatprep.subr.mxu0 0.0
    %1670 = vmatpush1.msra.mxu0 0.0
    %1671 = vmatprep.subr.mxu0 0.0
    %1672 = vmatpush1.msra.mxu0 0.0
    %1673 = vmatprep.subr.mxu0 0.0
    %1674 = vmatpush1.msra.mxu0 0.0
    %1675 = vmatprep.subr.mxu0 0.0
    %1676 = vmatpush1.msra.mxu0 0.0
    %1677 = vmatprep.subr.mxu0 0.0
    %1678 = vmatpush1.msra.mxu0 0.0
    %1679 = vmatprep.subr.mxu0 0.0
    %1680 = vmatpush1.msra.mxu0 0.0
    %1681 = vmatprep.mubr.f32.mxu0 0.0
    %1682 = vmatmul.mubr.f32.gmra.mrb[0].mxu0 %v1615
    %v1683 = vpop.f32.mrb[0].mxu0
    %v1684 = vadd.f32 0.0, %v1683
    %v1685 = vpop.f32.mrb[0].mxu0
    %1686 = vdwg.mxu0
    %v1687 = vadd.f32 %v1611, %v1684
    %v1688 = vxor.u32 %v1687, 2147483648
    %v1689 = vmul.f32 %v1688, 1.442695
    %v1690 = vpow.pop %v1689
    %v1691 = vadd.f32 %v1690, 1.0
    %v1692 = vrcp.pop %v1691
    %v1693 = vmul.f32 1.0, %v1692
    %v1694 = vtanh.pop %v1687
    %v1695 = vmul.f32 %v1693, %v1609
    %1697 = vrot.lane.b32.xlu0 %v1694, 64
    %v1698 = vpop.permute.xlu0 %1697
    %v1700 = vmul.f32 %v1693, %v1698
    %1702 = vrot.lane.b32.xlu0 %v1700, 32
    %v1703 = vpop.permute.xlu0 %1702
    %v1705 = vadd.f32 %v1695, %v1703
    %v1706 = vtanh.pop %v1705
    %1708 = vrot.lane.b32.xlu0 %v1706, 64
    %v1709 = vpop.permute.xlu0 %1708
    %v1711 = vmul.f32 %v1693, %v1709
    %v1712 = vsel %vm921, %v1711, 0.0
    %1714 = vrot.lane.b32.xlu0 %v1712, 32
    %v1715 = vpop.permute.xlu0 %1714
    %s1717 = scalar_lea.vmem [#allocation19], 8
    %1718 = vst.msk [vmem:[%s1717] sm:$0x3] %vm463, %v1715
    %v1719 = vsel %vm921, %v1711, %v1608
    %v1720 = vsel %vm921, %v1705, %v1609
    %s1721 = scalar_lea.vmem [#allocation3], 6
    %v1722 = vld [vmem:[%s1721] sm:$0x3]
    %1724 = vrot.lane.b32.xlu0 %v1719, 32
    %v1725 = vpop.permute.xlu0 %1724
    %v1726 = vsel %vm177, %v1725, 0
    %1728 = vmatprep.subr.mxu0 0.0
    %1729 = vmatpush1.msra.mxu0 %v1282
    %1730 = vmatprep.subr.mxu0 0.0
    %1731 = vmatpush1.msra.mxu0 %v1283
    %1732 = vmatprep.subr.mxu0 0.0
    %1733 = vmatpush1.msra.mxu0 %v1284
    %1734 = vmatprep.subr.mxu0 0.0
    %1735 = vmatpush1.msra.mxu0 %v1285
    %1736 = vmatprep.subr.mxu0 0.0
    %1737 = vmatpush1.msra.mxu0 0.0
    %1738 = vmatprep.subr.mxu0 0.0
    %1739 = vmatpush1.msra.mxu0 0.0
    %1740 = vmatprep.subr.mxu0 0.0
    %1741 = vmatpush1.msra.mxu0 0.0
    %1742 = vmatprep.subr.mxu0 0.0
    %1743 = vmatpush1.msra.mxu0 0.0
    %1744 = vmatprep.subr.mxu0 0.0
    %1745 = vmatpush1.msra.mxu0 0.0
    %1746 = vmatprep.subr.mxu0 0.0
    %1747 = vmatpush1.msra.mxu0 0.0
    %1748 = vmatprep.subr.mxu0 0.0
    %1749 = vmatpush1.msra.mxu0 0.0
    %1750 = vmatprep.subr.mxu0 0.0
    %1751 = vmatpush1.msra.mxu0 0.0
    %1752 = vmatprep.subr.mxu0 0.0
    %1753 = vmatpush1.msra.mxu0 0.0
    %1754 = vmatprep.subr.mxu0 0.0
    %1755 = vmatpush1.msra.mxu0 0.0
    %1756 = vmatprep.subr.mxu0 0.0
    %1757 = vmatpush1.msra.mxu0 0.0
    %1758 = vmatprep.subr.mxu0 0.0
    %1759 = vmatpush1.msra.mxu0 0.0
    %1760 = vmatprep.subr.mxu0 0.0
    %1761 = vmatpush1.msra.mxu0 0.0
    %1762 = vmatprep.subr.mxu0 0.0
    %1763 = vmatpush1.msra.mxu0 0.0
    %1764 = vmatprep.subr.mxu0 0.0
    %1765 = vmatpush1.msra.mxu0 0.0
    %1766 = vmatprep.subr.mxu0 0.0
    %1767 = vmatpush1.msra.mxu0 0.0
    %1768 = vmatprep.subr.mxu0 0.0
    %1769 = vmatpush1.msra.mxu0 0.0
    %1770 = vmatprep.subr.mxu0 0.0
    %1771 = vmatpush1.msra.mxu0 0.0
    %1772 = vmatprep.subr.mxu0 0.0
    %1773 = vmatpush1.msra.mxu0 0.0
    %1774 = vmatprep.subr.mxu0 0.0
    %1775 = vmatpush1.msra.mxu0 0.0
    %1776 = vmatprep.subr.mxu0 0.0
    %1777 = vmatpush1.msra.mxu0 0.0
    %1778 = vmatprep.subr.mxu0 0.0
    %1779 = vmatpush1.msra.mxu0 0.0
    %1780 = vmatprep.subr.mxu0 0.0
    %1781 = vmatpush1.msra.mxu0 0.0
    %1782 = vmatprep.subr.mxu0 0.0
    %1783 = vmatpush1.msra.mxu0 0.0
    %1784 = vmatprep.subr.mxu0 0.0
    %1785 = vmatpush1.msra.mxu0 0.0
    %1786 = vmatprep.subr.mxu0 0.0
    %1787 = vmatpush1.msra.mxu0 0.0
    %1788 = vmatprep.subr.mxu0 0.0
    %1789 = vmatpush1.msra.mxu0 0.0
    %1790 = vmatprep.subr.mxu0 0.0
    %1791 = vmatpush1.msra.mxu0 0.0
    %1792 = vmatprep.mubr.f32.mxu0 0.0
    %1793 = vmatmul.mubr.f32.gmra.mrb[0].mxu0 %v1726
    %v1794 = vpop.f32.mrb[0].mxu0
    %v1795 = vadd.f32 0.0, %v1794
    %v1796 = vpop.f32.mrb[0].mxu0
    %1797 = vdwg.mxu0
    %v1798 = vadd.f32 %v1722, %v1795
    %v1799 = vxor.u32 %v1798, 2147483648
    %v1800 = vmul.f32 %v1799, 1.442695
    %v1801 = vpow.pop %v1800
    %v1802 = vadd.f32 %v1801, 1.0
    %v1803 = vrcp.pop %v1802
    %v1804 = vmul.f32 1.0, %v1803
    %v1805 = vtanh.pop %v1798
    %v1806 = vmul.f32 %v1804, %v1720
    %1808 = vrot.lane.b32.xlu0 %v1805, 64
    %v1809 = vpop.permute.xlu0 %1808
    %v1811 = vmul.f32 %v1804, %v1809
    %1813 = vrot.lane.b32.xlu0 %v1811, 32
    %v1814 = vpop.permute.xlu0 %1813
    %v1816 = vadd.f32 %v1806, %v1814
    %v1817 = vtanh.pop %v1816
    %1819 = vrot.lane.b32.xlu0 %v1817, 64
    %v1820 = vpop.permute.xlu0 %1819
    %v1822 = vmul.f32 %v1804, %v1820
    %v1823 = vsel %vm804, %v1822, 0.0
    %1825 = vrot.lane.b32.xlu0 %v1823, 32
    %v1826 = vpop.permute.xlu0 %1825
    %s1828 = scalar_lea.vmem [#allocation19], 6
    %1829 = vst.msk [vmem:[%s1828] sm:$0x3] %vm463, %v1826
    %v1830 = vsel %vm804, %v1822, %v1719
    %v1831 = vsel %vm804, %v1816, %v1720
    %s1832 = scalar_lea.vmem [#allocation3], 4
    %v1833 = vld [vmem:[%s1832] sm:$0x3]
    %1835 = vrot.lane.b32.xlu0 %v1830, 32
    %v1836 = vpop.permute.xlu0 %1835
    %v1837 = vsel %vm177, %v1836, 0
    %1839 = vmatprep.subr.mxu0 0.0
    %1840 = vmatpush1.msra.mxu0 %v1282
    %1841 = vmatprep.subr.mxu0 0.0
    %1842 = vmatpush1.msra.mxu0 %v1283
    %1843 = vmatprep.subr.mxu0 0.0
    %1844 = vmatpush1.msra.mxu0 %v1284
    %1845 = vmatprep.subr.mxu0 0.0
    %1846 = vmatpush1.msra.mxu0 %v1285
    %1847 = vmatprep.subr.mxu0 0.0
    %1848 = vmatpush1.msra.mxu0 0.0
    %1849 = vmatprep.subr.mxu0 0.0
    %1850 = vmatpush1.msra.mxu0 0.0
    %1851 = vmatprep.subr.mxu0 0.0
    %1852 = vmatpush1.msra.mxu0 0.0
    %1853 = vmatprep.subr.mxu0 0.0
    %1854 = vmatpush1.msra.mxu0 0.0
    %1855 = vmatprep.subr.mxu0 0.0
    %1856 = vmatpush1.msra.mxu0 0.0
    %1857 = vmatprep.subr.mxu0 0.0
    %1858 = vmatpush1.msra.mxu0 0.0
    %1859 = vmatprep.subr.mxu0 0.0
    %1860 = vmatpush1.msra.mxu0 0.0
    %1861 = vmatprep.subr.mxu0 0.0
    %1862 = vmatpush1.msra.mxu0 0.0
    %1863 = vmatprep.subr.mxu0 0.0
    %1864 = vmatpush1.msra.mxu0 0.0
    %1865 = vmatprep.subr.mxu0 0.0
    %1866 = vmatpush1.msra.mxu0 0.0
    %1867 = vmatprep.subr.mxu0 0.0
    %1868 = vmatpush1.msra.mxu0 0.0
    %1869 = vmatprep.subr.mxu0 0.0
    %1870 = vmatpush1.msra.mxu0 0.0
    %1871 = vmatprep.subr.mxu0 0.0
    %1872 = vmatpush1.msra.mxu0 0.0
    %1873 = vmatprep.subr.mxu0 0.0
    %1874 = vmatpush1.msra.mxu0 0.0
    %1875 = vmatprep.subr.mxu0 0.0
    %1876 = vmatpush1.msra.mxu0 0.0
    %1877 = vmatprep.subr.mxu0 0.0
    %1878 = vmatpush1.msra.mxu0 0.0
    %1879 = vmatprep.subr.mxu0 0.0
    %1880 = vmatpush1.msra.mxu0 0.0
    %1881 = vmatprep.subr.mxu0 0.0
    %1882 = vmatpush1.msra.mxu0 0.0
    %1883 = vmatprep.subr.mxu0 0.0
    %1884 = vmatpush1.msra.mxu0 0.0
    %1885 = vmatprep.subr.mxu0 0.0
    %1886 = vmatpush1.msra.mxu0 0.0
    %1887 = vmatprep.subr.mxu0 0.0
    %1888 = vmatpush1.msra.mxu0 0.0
    %1889 = vmatprep.subr.mxu0 0.0
    %1890 = vmatpush1.msra.mxu0 0.0
    %1891 = vmatprep.subr.mxu0 0.0
    %1892 = vmatpush1.msra.mxu0 0.0
    %1893 = vmatprep.subr.mxu0 0.0
    %1894 = vmatpush1.msra.mxu0 0.0
    %1895 = vmatprep.subr.mxu0 0.0
    %1896 = vmatpush1.msra.mxu0 0.0
    %1897 = vmatprep.subr.mxu0 0.0
    %1898 = vmatpush1.msra.mxu0 0.0
    %1899 = vmatprep.subr.mxu0 0.0
    %1900 = vmatpush1.msra.mxu0 0.0
    %1901 = vmatprep.subr.mxu0 0.0
    %1902 = vmatpush1.msra.mxu0 0.0
    %1903 = vmatprep.mubr.f32.mxu0 0.0
    %1904 = vmatmul.mubr.f32.gmra.mrb[0].mxu0 %v1837
    %v1905 = vpop.f32.mrb[0].mxu0
    %v1906 = vadd.f32 0.0, %v1905
    %v1907 = vpop.f32.mrb[0].mxu0
    %1908 = vdwg.mxu0
    %v1909 = vadd.f32 %v1833, %v1906
    %v1910 = vxor.u32 %v1909, 2147483648
    %v1911 = vmul.f32 %v1910, 1.442695
    %v1912 = vpow.pop %v1911
    %v1913 = vadd.f32 %v1912, 1.0
    %v1914 = vrcp.pop %v1913
    %v1915 = vmul.f32 1.0, %v1914
    %v1916 = vtanh.pop %v1909
    %v1917 = vmul.f32 %v1915, %v1831
    %1919 = vrot.lane.b32.xlu0 %v1916, 64
    %v1920 = vpop.permute.xlu0 %1919
    %v1922 = vmul.f32 %v1915, %v1920
    %1924 = vrot.lane.b32.xlu0 %v1922, 32
    %v1925 = vpop.permute.xlu0 %1924
    %v1927 = vadd.f32 %v1917, %v1925
    %v1928 = vtanh.pop %v1927
    %1930 = vrot.lane.b32.xlu0 %v1928, 64
    %v1931 = vpop.permute.xlu0 %1930
    %v1933 = vmul.f32 %v1915, %v1931
    %v1934 = vsel %vm687, %v1933, 0.0
    %1936 = vrot.lane.b32.xlu0 %v1934, 32
    %v1937 = vpop.permute.xlu0 %1936
    %s1939 = scalar_lea.vmem [#allocation19], 4
    %1940 = vst.msk [vmem:[%s1939] sm:$0x3] %vm463, %v1937
    %v1941 = vsel %vm687, %v1933, %v1830
    %v1942 = vsel %vm687, %v1927, %v1831
    %s1943 = scalar_lea.vmem [#allocation3], 2
    %v1944 = vld [vmem:[%s1943] sm:$0x3]
    %1946 = vrot.lane.b32.xlu0 %v1941, 32
    %v1947 = vpop.permute.xlu0 %1946
    %v1948 = vsel %vm177, %v1947, 0
    %1950 = vmatprep.subr.mxu0 0.0
    %1951 = vmatpush1.msra.mxu0 %v1282
    %1952 = vmatprep.subr.mxu0 0.0
    %1953 = vmatpush1.msra.mxu0 %v1283
    %1954 = vmatprep.subr.mxu0 0.0
    %1955 = vmatpush1.msra.mxu0 %v1284
    %1956 = vmatprep.subr.mxu0 0.0
    %1957 = vmatpush1.msra.mxu0 %v1285
    %1958 = vmatprep.subr.mxu0 0.0
    %1959 = vmatpush1.msra.mxu0 0.0
    %1960 = vmatprep.subr.mxu0 0.0
    %1961 = vmatpush1.msra.mxu0 0.0
    %1962 = vmatprep.subr.mxu0 0.0
    %1963 = vmatpush1.msra.mxu0 0.0
    %1964 = vmatprep.subr.mxu0 0.0
    %1965 = vmatpush1.msra.mxu0 0.0
    %1966 = vmatprep.subr.mxu0 0.0
    %1967 = vmatpush1.msra.mxu0 0.0
    %1968 = vmatprep.subr.mxu0 0.0
    %1969 = vmatpush1.msra.mxu0 0.0
    %1970 = vmatprep.subr.mxu0 0.0
    %1971 = vmatpush1.msra.mxu0 0.0
    %1972 = vmatprep.subr.mxu0 0.0
    %1973 = vmatpush1.msra.mxu0 0.0
    %1974 = vmatprep.subr.mxu0 0.0
    %1975 = vmatpush1.msra.mxu0 0.0
    %1976 = vmatprep.subr.mxu0 0.0
    %1977 = vmatpush1.msra.mxu0 0.0
    %1978 = vmatprep.subr.mxu0 0.0
    %1979 = vmatpush1.msra.mxu0 0.0
    %1980 = vmatprep.subr.mxu0 0.0
    %1981 = vmatpush1.msra.mxu0 0.0
    %1982 = vmatprep.subr.mxu0 0.0
    %1983 = vmatpush1.msra.mxu0 0.0
    %1984 = vmatprep.subr.mxu0 0.0
    %1985 = vmatpush1.msra.mxu0 0.0
    %1986 = vmatprep.subr.mxu0 0.0
    %1987 = vmatpush1.msra.mxu0 0.0
    %1988 = vmatprep.subr.mxu0 0.0
    %1989 = vmatpush1.msra.mxu0 0.0
    %1990 = vmatprep.subr.mxu0 0.0
    %1991 = vmatpush1.msra.mxu0 0.0
    %1992 = vmatprep.subr.mxu0 0.0
    %1993 = vmatpush1.msra.mxu0 0.0
    %1994 = vmatprep.subr.mxu0 0.0
    %1995 = vmatpush1.msra.mxu0 0.0
    %1996 = vmatprep.subr.mxu0 0.0
    %1997 = vmatpush1.msra.mxu0 0.0
    %1998 = vmatprep.subr.mxu0 0.0
    %1999 = vmatpush1.msra.mxu0 0.0
    %2000 = vmatprep.subr.mxu0 0.0
    %2001 = vmatpush1.msra.mxu0 0.0
    %2002 = vmatprep.subr.mxu0 0.0
    %2003 = vmatpush1.msra.mxu0 0.0
    %2004 = vmatprep.subr.mxu0 0.0
    %2005 = vmatpush1.msra.mxu0 0.0
    %2006 = vmatprep.subr.mxu0 0.0
    %2007 = vmatpush1.msra.mxu0 0.0
    %2008 = vmatprep.subr.mxu0 0.0
    %2009 = vmatpush1.msra.mxu0 0.0
    %2010 = vmatprep.subr.mxu0 0.0
    %2011 = vmatpush1.msra.mxu0 0.0
    %2012 = vmatprep.subr.mxu0 0.0
    %2013 = vmatpush1.msra.mxu0 0.0
    %2014 = vmatprep.mubr.f32.mxu0 0.0
    %2015 = vmatmul.mubr.f32.gmra.mrb[0].mxu0 %v1948
    %v2016 = vpop.f32.mrb[0].mxu0
    %v2017 = vadd.f32 0.0, %v2016
    %v2018 = vpop.f32.mrb[0].mxu0
    %2019 = vdwg.mxu0
    %v2020 = vadd.f32 %v1944, %v2017
    %v2021 = vxor.u32 %v2020, 2147483648
    %v2022 = vmul.f32 %v2021, 1.442695
    %v2023 = vpow.pop %v2022
    %v2024 = vadd.f32 %v2023, 1.0
    %v2025 = vrcp.pop %v2024
    %v2026 = vmul.f32 1.0, %v2025
    %v2027 = vtanh.pop %v2020
    %v2028 = vmul.f32 %v2026, %v1942
    %2030 = vrot.lane.b32.xlu0 %v2027, 64
    %v2031 = vpop.permute.xlu0 %2030
    %v2033 = vmul.f32 %v2026, %v2031
    %2035 = vrot.lane.b32.xlu0 %v2033, 32
    %v2036 = vpop.permute.xlu0 %2035
    %v2038 = vadd.f32 %v2028, %v2036
    %v2039 = vtanh.pop %v2038
    %2041 = vrot.lane.b32.xlu0 %v2039, 64
    %v2042 = vpop.permute.xlu0 %2041
    %v2044 = vmul.f32 %v2026, %v2042
    %v2045 = vsel %vm570, %v2044, 0.0
    %2047 = vrot.lane.b32.xlu0 %v2045, 32
    %v2048 = vpop.permute.xlu0 %2047
    %s2050 = scalar_lea.vmem [#allocation19], 2
    %2051 = vst.msk [vmem:[%s2050] sm:$0x3] %vm463, %v2048
    %v2052 = vsel %vm570, %v2044, %v1941
    %v2053 = vsel %vm570, %v2038, %v1942
    %v2054 = vld [vmem:[#allocation3] sm:$0x3]
    %2056 = vrot.lane.b32.xlu0 %v2052, 32
    %v2057 = vpop.permute.xlu0 %2056
    %v2058 = vsel %vm177, %v2057, 0
    %2060 = vmatprep.subr.mxu0 0.0
    %2061 = vmatpush1.msra.mxu0 %v1282
    %2062 = vmatprep.subr.mxu0 0.0
    %2063 = vmatpush1.msra.mxu0 %v1283
    %2064 = vmatprep.subr.mxu0 0.0
    %2065 = vmatpush1.msra.mxu0 %v1284
    %2066 = vmatprep.subr.mxu0 0.0
    %2067 = vmatpush1.msra.mxu0 %v1285
    %2068 = vmatprep.subr.mxu0 0.0
    %2069 = vmatpush1.msra.mxu0 0.0
    %2070 = vmatprep.subr.mxu0 0.0
    %2071 = vmatpush1.msra.mxu0 0.0
    %2072 = vmatprep.subr.mxu0 0.0
    %2073 = vmatpush1.msra.mxu0 0.0
    %2074 = vmatprep.subr.mxu0 0.0
    %2075 = vmatpush1.msra.mxu0 0.0
    %2076 = vmatprep.subr.mxu0 0.0
    %2077 = vmatpush1.msra.mxu0 0.0
    %2078 = vmatprep.subr.mxu0 0.0
    %2079 = vmatpush1.msra.mxu0 0.0
    %2080 = vmatprep.subr.mxu0 0.0
    %2081 = vmatpush1.msra.mxu0 0.0
    %2082 = vmatprep.subr.mxu0 0.0
    %2083 = vmatpush1.msra.mxu0 0.0
    %2084 = vmatprep.subr.mxu0 0.0
    %2085 = vmatpush1.msra.mxu0 0.0
    %2086 = vmatprep.subr.mxu0 0.0
    %2087 = vmatpush1.msra.mxu0 0.0
    %2088 = vmatprep.subr.mxu0 0.0
    %2089 = vmatpush1.msra.mxu0 0.0
    %2090 = vmatprep.subr.mxu0 0.0
    %2091 = vmatpush1.msra.mxu0 0.0
    %2092 = vmatprep.subr.mxu0 0.0
    %2093 = vmatpush1.msra.mxu0 0.0
    %2094 = vmatprep.subr.mxu0 0.0
    %2095 = vmatpush1.msra.mxu0 0.0
    %2096 = vmatprep.subr.mxu0 0.0
    %2097 = vmatpush1.msra.mxu0 0.0
    %2098 = vmatprep.subr.mxu0 0.0
    %2099 = vmatpush1.msra.mxu0 0.0
    %2100 = vmatprep.subr.mxu0 0.0
    %2101 = vmatpush1.msra.mxu0 0.0
    %2102 = vmatprep.subr.mxu0 0.0
    %2103 = vmatpush1.msra.mxu0 0.0
    %2104 = vmatprep.subr.mxu0 0.0
    %2105 = vmatpush1.msra.mxu0 0.0
    %2106 = vmatprep.subr.mxu0 0.0
    %2107 = vmatpush1.msra.mxu0 0.0
    %2108 = vmatprep.subr.mxu0 0.0
    %2109 = vmatpush1.msra.mxu0 0.0
    %2110 = vmatprep.subr.mxu0 0.0
    %2111 = vmatpush1.msra.mxu0 0.0
    %2112 = vmatprep.subr.mxu0 0.0
    %2113 = vmatpush1.msra.mxu0 0.0
    %2114 = vmatprep.subr.mxu0 0.0
    %2115 = vmatpush1.msra.mxu0 0.0
    %2116 = vmatprep.subr.mxu0 0.0
    %2117 = vmatpush1.msra.mxu0 0.0
    %2118 = vmatprep.subr.mxu0 0.0
    %2119 = vmatpush1.msra.mxu0 0.0
    %2120 = vmatprep.subr.mxu0 0.0
    %2121 = vmatpush1.msra.mxu0 0.0
    %2122 = vmatprep.subr.mxu0 0.0
    %2123 = vmatpush1.msra.mxu0 0.0
    %2124 = vmatprep.mubr.f32.mxu0 0.0
    %2125 = vmatmul.mubr.f32.gmra.mrb[0].mxu0 %v2058
    %v2126 = vpop.f32.mrb[0].mxu0
    %v2127 = vadd.f32 0.0, %v2126
    %v2128 = vpop.f32.mrb[0].mxu0
    %2129 = vdwg.mxu0
    %v2130 = vadd.f32 %v2054, %v2127
    %v2131 = vxor.u32 %v2130, 2147483648
    %v2132 = vmul.f32 %v2131, 1.442695
    %v2133 = vpow.pop %v2132
    %v2134 = vadd.f32 %v2133, 1.0
    %v2135 = vrcp.pop %v2134
    %v2136 = vmul.f32 1.0, %v2135
    %v2137 = vtanh.pop %v2130
    %v2138 = vmul.f32 %v2136, %v2053
    %2140 = vrot.lane.b32.xlu0 %v2137, 64
    %v2141 = vpop.permute.xlu0 %2140
    %v2143 = vmul.f32 %v2136, %v2141
    %2145 = vrot.lane.b32.xlu0 %v2143, 32
    %v2146 = vpop.permute.xlu0 %2145
    %v2148 = vadd.f32 %v2138, %v2146
    %v2149 = vtanh.pop %v2148
    %2151 = vrot.lane.b32.xlu0 %v2149, 64
    %v2152 = vpop.permute.xlu0 %2151
    %v2154 = vmul.f32 %v2136, %v2152
    %v2155 = vsel %vm457, %v2154, 0.0
    %2157 = vrot.lane.b32.xlu0 %v2155, 32
    %v2158 = vpop.permute.xlu0 %2157
    %2160 = vst.msk [vmem:[#allocation19] sm:$0x3] %vm463, %v2158
    %v2161 = vsel %vm457, %v2154, %v2052
    %v2162 = vsel %vm457, %v2148, %v2053
    %v2163 = vld [vmem:[%s8] sm:$0xff]
    %v2164 = vld [vmem:[%s8 + $0x8] sm:$0xff]
    %v2165 = vld [vmem:[%s8 + $0x10] sm:$0xff]
    %v2166 = vld [vmem:[%s8 + $0x18] sm:$0xff]
    %v2167 = vld [vmem:[#allocation13] sm:$0xff]
    %v2168 = vld [vmem:[#allocation13 + $0x8] sm:$0xff]
    %v2169 = vld [vmem:[#allocation13 + $0x10] sm:$0xff]
    %v2170 = vld [vmem:[#allocation13 + $0x18] sm:$0xff]
    %2172 = vrot.lane.b32.xlu0 %v2161, 32
    %v2173 = vpop.permute.xlu0 %2172
    %v2174 = vsel %vm177, %v2173, 0
    %2176 = vmatprep.subr.mxu0 0.0
    %2177 = vmatpush1.msra.mxu0 %v2167
    %2178 = vmatprep.subr.mxu0 0.0
    %2179 = vmatpush1.msra.mxu0 %v2168
    %2180 = vmatprep.subr.mxu0 0.0
    %2181 = vmatpush1.msra.mxu0 %v2169
    %2182 = vmatprep.subr.mxu0 0.0
    %2183 = vmatpush1.msra.mxu0 %v2170
    %2184 = vmatprep.subr.mxu0 0.0
    %2185 = vmatpush1.msra.mxu0 0.0
    %2186 = vmatprep.subr.mxu0 0.0
    %2187 = vmatpush1.msra.mxu0 0.0
    %2188 = vmatprep.subr.mxu0 0.0
    %2189 = vmatpush1.msra.mxu0 0.0
    %2190 = vmatprep.subr.mxu0 0.0
    %2191 = vmatpush1.msra.mxu0 0.0
    %2192 = vmatprep.subr.mxu0 0.0
    %2193 = vmatpush1.msra.mxu0 0.0
    %2194 = vmatprep.subr.mxu0 0.0
    %2195 = vmatpush1.msra.mxu0 0.0
    %2196 = vmatprep.subr.mxu0 0.0
    %2197 = vmatpush1.msra.mxu0 0.0
    %2198 = vmatprep.subr.mxu0 0.0
    %2199 = vmatpush1.msra.mxu0 0.0
    %2200 = vmatprep.subr.mxu0 0.0
    %2201 = vmatpush1.msra.mxu0 0.0
    %2202 = vmatprep.subr.mxu0 0.0
    %2203 = vmatpush1.msra.mxu0 0.0
    %2204 = vmatprep.subr.mxu0 0.0
    %2205 = vmatpush1.msra.mxu0 0.0
    %2206 = vmatprep.subr.mxu0 0.0
    %2207 = vmatpush1.msra.mxu0 0.0
    %2208 = vmatprep.subr.mxu0 0.0
    %2209 = vmatpush1.msra.mxu0 0.0
    %2210 = vmatprep.subr.mxu0 0.0
    %2211 = vmatpush1.msra.mxu0 0.0
    %2212 = vmatprep.subr.mxu0 0.0
    %2213 = vmatpush1.msra.mxu0 0.0
    %2214 = vmatprep.subr.mxu0 0.0
    %2215 = vmatpush1.msra.mxu0 0.0
    %2216 = vmatprep.subr.mxu0 0.0
    %2217 = vmatpush1.msra.mxu0 0.0
    %2218 = vmatprep.subr.mxu0 0.0
    %2219 = vmatpush1.msra.mxu0 0.0
    %2220 = vmatprep.subr.mxu0 0.0
    %2221 = vmatpush1.msra.mxu0 0.0
    %2222 = vmatprep.subr.mxu0 0.0
    %2223 = vmatpush1.msra.mxu0 0.0
    %2224 = vmatprep.subr.mxu0 0.0
    %2225 = vmatpush1.msra.mxu0 0.0
    %2226 = vmatprep.subr.mxu0 0.0
    %2227 = vmatpush1.msra.mxu0 0.0
    %2228 = vmatprep.subr.mxu0 0.0
    %2229 = vmatpush1.msra.mxu0 0.0
    %2230 = vmatprep.subr.mxu0 0.0
    %2231 = vmatpush1.msra.mxu0 0.0
    %2232 = vmatprep.subr.mxu0 0.0
    %2233 = vmatpush1.msra.mxu0 0.0
    %2234 = vmatprep.subr.mxu0 0.0
    %2235 = vmatpush1.msra.mxu0 0.0
    %2236 = vmatprep.subr.mxu0 0.0
    %2237 = vmatpush1.msra.mxu0 0.0
    %2238 = vmatprep.subr.mxu0 0.0
    %2239 = vmatpush1.msra.mxu0 0.0
    %2240 = vmatprep.mubr.f32.mxu0 0.0
    %2241 = vmatmul.mubr.f32.gmra.mrb[0].mxu0 %v2174
    %v2242 = vpop.f32.mrb[0].mxu0
    %v2243 = vadd.f32 0.0, %v2242
    %v2244 = vpop.f32.mrb[0].mxu0
    %2245 = vdwg.mxu0
    %2247 = vrot.lane.b32.xlu0 %v1280, 32
    %v2248 = vpop.permute.xlu0 %2247
    %v2249 = vsel %vm177, %v2248, 0
    %2251 = vmatprep.subr.mxu0 0.0
    %2252 = vmatpush1.msra.mxu0 %v2163
    %2253 = vmatprep.subr.mxu0 0.0
    %2254 = vmatpush1.msra.mxu0 %v2164
    %2255 = vmatprep.subr.mxu0 0.0
    %2256 = vmatpush1.msra.mxu0 %v2165
    %2257 = vmatprep.subr.mxu0 0.0
    %2258 = vmatpush1.msra.mxu0 %v2166
    %2259 = vmatprep.subr.mxu0 0.0
    %2260 = vmatpush1.msra.mxu0 0.0
    %2261 = vmatprep.subr.mxu0 0.0
    %2262 = vmatpush1.msra.mxu0 0.0
    %2263 = vmatprep.subr.mxu0 0.0
    %2264 = vmatpush1.msra.mxu0 0.0
    %2265 = vmatprep.subr.mxu0 0.0
    %2266 = vmatpush1.msra.mxu0 0.0
    %2267 = vmatprep.subr.mxu0 0.0
    %2268 = vmatpush1.msra.mxu0 0.0
    %2269 = vmatprep.subr.mxu0 0.0
    %2270 = vmatpush1.msra.mxu0 0.0
    %2271 = vmatprep.subr.mxu0 0.0
    %2272 = vmatpush1.msra.mxu0 0.0
    %2273 = vmatprep.subr.mxu0 0.0
    %2274 = vmatpush1.msra.mxu0 0.0
    %2275 = vmatprep.subr.mxu0 0.0
    %2276 = vmatpush1.msra.mxu0 0.0
    %2277 = vmatprep.subr.mxu0 0.0
    %2278 = vmatpush1.msra.mxu0 0.0
    %2279 = vmatprep.subr.mxu0 0.0
    %2280 = vmatpush1.msra.mxu0 0.0
    %2281 = vmatprep.subr.mxu0 0.0
    %2282 = vmatpush1.msra.mxu0 0.0
    %2283 = vmatprep.subr.mxu0 0.0
    %2284 = vmatpush1.msra.mxu0 0.0
    %2285 = vmatprep.subr.mxu0 0.0
    %2286 = vmatpush1.msra.mxu0 0.0
    %2287 = vmatprep.subr.mxu0 0.0
    %2288 = vmatpush1.msra.mxu0 0.0
    %2289 = vmatprep.subr.mxu0 0.0
    %2290 = vmatpush1.msra.mxu0 0.0
    %2291 = vmatprep.subr.mxu0 0.0
    %2292 = vmatpush1.msra.mxu0 0.0
    %2293 = vmatprep.subr.mxu0 0.0
    %2294 = vmatpush1.msra.mxu0 0.0
    %2295 = vmatprep.subr.mxu0 0.0
    %2296 = vmatpush1.msra.mxu0 0.0
    %2297 = vmatprep.subr.mxu0 0.0
    %2298 = vmatpush1.msra.mxu0 0.0
    %2299 = vmatprep.subr.mxu0 0.0
    %2300 = vmatpush1.msra.mxu0 0.0
    %2301 = vmatprep.subr.mxu0 0.0
    %2302 = vmatpush1.msra.mxu0 0.0
    %2303 = vmatprep.subr.mxu0 0.0
    %2304 = vmatpush1.msra.mxu0 0.0
    %2305 = vmatprep.subr.mxu0 0.0
    %2306 = vmatpush1.msra.mxu0 0.0
    %2307 = vmatprep.subr.mxu0 0.0
    %2308 = vmatpush1.msra.mxu0 0.0
    %2309 = vmatprep.subr.mxu0 0.0
    %2310 = vmatpush1.msra.mxu0 0.0
    %2311 = vmatprep.subr.mxu0 0.0
    %2312 = vmatpush1.msra.mxu0 0.0
    %2313 = vmatprep.subr.mxu0 0.0
    %2314 = vmatpush1.msra.mxu0 0.0
    %2315 = vmatprep.mubr.f32.mxu0 0.0
    %2316 = vmatmul.mubr.f32.gmra.mrb[0].mxu0 %v2249
    %v2317 = vpop.f32.mrb[0].mxu0
    %v2318 = vadd.f32 %v2243, %v2317
    %v2319 = vpop.f32.mrb[0].mxu0
    %2320 = vdwg.mxu0
    %v2321 = vld [vmem:[%s10] sm:$0x1]
    %v2323 = vlaneseq
    %v2324 = vshrl.u32 %v2323, 7
    %v2325 = vsub.s32 0, %v2324
    %v2326 = vrot.slane %v2321, %v2325
    %v2328 = vadd.f32 %v2318, %v2326
    %2329 = vst.msk [vmem:[#allocation21] sm:$0x3] %vm463, %v2328
    %v2330 = vld [vmem:[#allocation15] sm:$0xff]
    %v2331 = vld [vmem:[#allocation15 + $0x8] sm:$0xff]
    %v2332 = vld [vmem:[#allocation15 + $0x10] sm:$0xff]
    %v2333 = vld [vmem:[#allocation15 + $0x18] sm:$0xff]
    %v2334 = vld [vmem:[#allocation16] sm:$0xff]
    %v2335 = vld [vmem:[#allocation16 + $0x8] sm:$0xff]
    %v2336 = vld [vmem:[#allocation16 + $0x10] sm:$0xff]
    %v2337 = vld [vmem:[#allocation16 + $0x18] sm:$0xff]
    %2339 = vrot.lane.b32.xlu0 %v2162, 96
    %v2340 = vpop.permute.xlu0 %2339
    %v2341 = vsel %vm177, %v2340, 0
    %2343 = vmatprep.subr.mxu0 0.0
    %2344 = vmatpush1.msra.mxu0 %v2334
    %2345 = vmatprep.subr.mxu0 0.0
    %2346 = vmatpush1.msra.mxu0 %v2335
    %2347 = vmatprep.subr.mxu0 0.0
    %2348 = vmatpush1.msra.mxu0 %v2336
    %2349 = vmatprep.subr.mxu0 0.0
    %2350 = vmatpush1.msra.mxu0 %v2337
    %2351 = vmatprep.subr.mxu0 0.0
    %2352 = vmatpush1.msra.mxu0 0.0
    %2353 = vmatprep.subr.mxu0 0.0
    %2354 = vmatpush1.msra.mxu0 0.0
    %2355 = vmatprep.subr.mxu0 0.0
    %2356 = vmatpush1.msra.mxu0 0.0
    %2357 = vmatprep.subr.mxu0 0.0
    %2358 = vmatpush1.msra.mxu0 0.0
    %2359 = vmatprep.subr.mxu0 0.0
    %2360 = vmatpush1.msra.mxu0 0.0
    %2361 = vmatprep.subr.mxu0 0.0
    %2362 = vmatpush1.msra.mxu0 0.0
    %2363 = vmatprep.subr.mxu0 0.0
    %2364 = vmatpush1.msra.mxu0 0.0
    %2365 = vmatprep.subr.mxu0 0.0
    %2366 = vmatpush1.msra.mxu0 0.0
    %2367 = vmatprep.subr.mxu0 0.0
    %2368 = vmatpush1.msra.mxu0 0.0
    %2369 = vmatprep.subr.mxu0 0.0
    %2370 = vmatpush1.msra.mxu0 0.0
    %2371 = vmatprep.subr.mxu0 0.0
    %2372 = vmatpush1.msra.mxu0 0.0
    %2373 = vmatprep.subr.mxu0 0.0
    %2374 = vmatpush1.msra.mxu0 0.0
    %2375 = vmatprep.subr.mxu0 0.0
    %2376 = vmatpush1.msra.mxu0 0.0
    %2377 = vmatprep.subr.mxu0 0.0
    %2378 = vmatpush1.msra.mxu0 0.0
    %2379 = vmatprep.subr.mxu0 0.0
    %2380 = vmatpush1.msra.mxu0 0.0
    %2381 = vmatprep.subr.mxu0 0.0
    %2382 = vmatpush1.msra.mxu0 0.0
    %2383 = vmatprep.subr.mxu0 0.0
    %2384 = vmatpush1.msra.mxu0 0.0
    %2385 = vmatprep.subr.mxu0 0.0
    %2386 = vmatpush1.msra.mxu0 0.0
    %2387 = vmatprep.subr.mxu0 0.0
    %2388 = vmatpush1.msra.mxu0 0.0
    %2389 = vmatprep.subr.mxu0 0.0
    %2390 = vmatpush1.msra.mxu0 0.0
    %2391 = vmatprep.subr.mxu0 0.0
    %2392 = vmatpush1.msra.mxu0 0.0
    %2393 = vmatprep.subr.mxu0 0.0
    %2394 = vmatpush1.msra.mxu0 0.0
    %2395 = vmatprep.subr.mxu0 0.0
    %2396 = vmatpush1.msra.mxu0 0.0
    %2397 = vmatprep.subr.mxu0 0.0
    %2398 = vmatpush1.msra.mxu0 0.0
    %2399 = vmatprep.subr.mxu0 0.0
    %2400 = vmatpush1.msra.mxu0 0.0
    %2401 = vmatprep.subr.mxu0 0.0
    %2402 = vmatpush1.msra.mxu0 0.0
    %2403 = vmatprep.subr.mxu0 0.0
    %2404 = vmatpush1.msra.mxu0 0.0
    %2405 = vmatprep.subr.mxu0 0.0
    %2406 = vmatpush1.msra.mxu0 0.0
    %2407 = vmatprep.mubr.f32.mxu0 0.0
    %2408 = vmatmul.mubr.f32.gmra.mrb[0].mxu0 %v2341
    %v2409 = vpop.f32.mrb[0].mxu0
    %v2410 = vadd.f32 0.0, %v2409
    %v2411 = vpop.f32.mrb[0].mxu0
    %2412 = vdwg.mxu0
    %2414 = vrot.lane.b32.xlu0 %v1281, 96
    %v2415 = vpop.permute.xlu0 %2414
    %v2416 = vsel %vm177, %v2415, 0
    %2418 = vmatprep.subr.mxu0 0.0
    %2419 = vmatpush1.msra.mxu0 %v2330
    %2420 = vmatprep.subr.mxu0 0.0
    %2421 = vmatpush1.msra.mxu0 %v2331
    %2422 = vmatprep.subr.mxu0 0.0
    %2423 = vmatpush1.msra.mxu0 %v2332
    %2424 = vmatprep.subr.mxu0 0.0
    %2425 = vmatpush1.msra.mxu0 %v2333
    %2426 = vmatprep.subr.mxu0 0.0
    %2427 = vmatpush1.msra.mxu0 0.0
    %2428 = vmatprep.subr.mxu0 0.0
    %2429 = vmatpush1.msra.mxu0 0.0
    %2430 = vmatprep.subr.mxu0 0.0
    %2431 = vmatpush1.msra.mxu0 0.0
    %2432 = vmatprep.subr.mxu0 0.0
    %2433 = vmatpush1.msra.mxu0 0.0
    %2434 = vmatprep.subr.mxu0 0.0
    %2435 = vmatpush1.msra.mxu0 0.0
    %2436 = vmatprep.subr.mxu0 0.0
    %2437 = vmatpush1.msra.mxu0 0.0
    %2438 = vmatprep.subr.mxu0 0.0
    %2439 = vmatpush1.msra.mxu0 0.0
    %2440 = vmatprep.subr.mxu0 0.0
    %2441 = vmatpush1.msra.mxu0 0.0
    %2442 = vmatprep.subr.mxu0 0.0
    %2443 = vmatpush1.msra.mxu0 0.0
    %2444 = vmatprep.subr.mxu0 0.0
    %2445 = vmatpush1.msra.mxu0 0.0
    %2446 = vmatprep.subr.mxu0 0.0
    %2447 = vmatpush1.msra.mxu0 0.0
    %2448 = vmatprep.subr.mxu0 0.0
    %2449 = vmatpush1.msra.mxu0 0.0
    %2450 = vmatprep.subr.mxu0 0.0
    %2451 = vmatpush1.msra.mxu0 0.0
    %2452 = vmatprep.subr.mxu0 0.0
    %2453 = vmatpush1.msra.mxu0 0.0
    %2454 = vmatprep.subr.mxu0 0.0
    %2455 = vmatpush1.msra.mxu0 0.0
    %2456 = vmatprep.subr.mxu0 0.0
    %2457 = vmatpush1.msra.mxu0 0.0
    %2458 = vmatprep.subr.mxu0 0.0
    %2459 = vmatpush1.msra.mxu0 0.0
    %2460 = vmatprep.subr.mxu0 0.0
    %2461 = vmatpush1.msra.mxu0 0.0
    %2462 = vmatprep.subr.mxu0 0.0
    %2463 = vmatpush1.msra.mxu0 0.0
    %2464 = vmatprep.subr.mxu0 0.0
    %2465 = vmatpush1.msra.mxu0 0.0
    %2466 = vmatprep.subr.mxu0 0.0
    %2467 = vmatpush1.msra.mxu0 0.0
    %2468 = vmatprep.subr.mxu0 0.0
    %2469 = vmatpush1.msra.mxu0 0.0
    %2470 = vmatprep.subr.mxu0 0.0
    %2471 = vmatpush1.msra.mxu0 0.0
    %2472 = vmatprep.subr.mxu0 0.0
    %2473 = vmatpush1.msra.mxu0 0.0
    %2474 = vmatprep.subr.mxu0 0.0
    %2475 = vmatpush1.msra.mxu0 0.0
    %2476 = vmatprep.subr.mxu0 0.0
    %2477 = vmatpush1.msra.mxu0 0.0
    %2478 = vmatprep.subr.mxu0 0.0
    %2479 = vmatpush1.msra.mxu0 0.0
    %2480 = vmatprep.subr.mxu0 0.0
    %2481 = vmatpush1.msra.mxu0 0.0
    %2482 = vmatprep.mubr.f32.mxu0 0.0
    %2483 = vmatmul.mubr.f32.gmra.mrb[0].mxu0 %v2416
    %v2484 = vpop.f32.mrb[0].mxu0
    %v2485 = vadd.f32 %v2410, %v2484
    %v2486 = vpop.f32.mrb[0].mxu0
    %2487 = vdwg.mxu0
    %v2488 = vld [vmem:[%s13] sm:$0x1]
    %v2490 = vlaneseq
    %v2491 = vshrl.u32 %v2490, 7
    %v2492 = vsub.s32 0, %v2491
    %v2493 = vrot.slane %v2488, %v2492
    %v2495 = vadd.f32 %v2485, %v2493
    %2496 = vst.msk [vmem:[#allocation22] sm:$0x3] %vm463, %v2495
    // Predicated region
    $region90: #{tpu_custom_call.1} parent=1 // pred_check
      _
    $region91: #{tpu_custom_call.1} parent=1 // pred_check_branch
      %2498 = sbr.rel (0) target = $region93
    $region92: #{tpu_custom_call.1} parent=1 // pred_region
      %s2500 = ssub.s32 256, 256
      %2501 = vsyncadd [#allocation6], %s2500
      %s2502 = sshll.u32 [#allocation18], 4
      %s2503 = int_to_ptr.vmem [resolvable:$true] %s2502
      %2508 = dma.vmem_to_hbm [thread:$0]  %s2503, 256, %s14, [#allocation6], 128, 128, 8
    $region93: #{tpu_custom_call.1} parent=1 // pred_fallthru
      _
    // Predicated region
    $region94: #{tpu_custom_call.1} parent=1 // pred_check
      _
    $region95: #{tpu_custom_call.1} parent=1 // pred_check_branch
      %2510 = sbr.rel (0) target = $region97
    $region96: #{tpu_custom_call.1} parent=1 // pred_region
      %s2512 = ssub.s32 256, 256
      %2513 = vsyncadd [#allocation20], %s2512
      %s2514 = sshll.u32 [#allocation19], 4
      %s2515 = int_to_ptr.vmem [resolvable:$true] %s2514
      %2520 = dma.vmem_to_hbm [thread:$0]  %s2515, 256, %s15, [#allocation20], 128, 128, 8
    $region97: #{tpu_custom_call.1} parent=1 // pred_fallthru
      _
    // Predicated region
    $region98: #{tpu_custom_call.1} parent=1 // pred_check
      _
    $region99: #{tpu_custom_call.1} parent=1 // pred_check_branch
      %2522 = sbr.rel (0) target = $region101
    $region100: #{tpu_custom_call.1} parent=1 // pred_region
      %s2524 = ssub.s32 32, 32
      %2525 = vsyncadd [#allocation20], %s2524
      %s2527 = sshll.u32 [#allocation21], 4
      %s2528 = int_to_ptr.vmem [resolvable:$true] %s2527
      %2530 = dma.vmem_to_hbm [thread:$0]  %s2528, 32, %s16, [#allocation20]
    $region101: #{tpu_custom_call.1} parent=1 // pred_fallthru
      _
    // Predicated region
    $region102: #{tpu_custom_call.1} parent=1 // pred_check
      _
    $region103: #{tpu_custom_call.1} parent=1 // pred_check_branch
      %2532 = sbr.rel (0) target = $region105
    $region104: #{tpu_custom_call.1} parent=1 // pred_region
      %s2534 = ssub.s32 32, 32
      %2535 = vsyncadd [#allocation23], %s2534
      %s2537 = sshll.u32 [#allocation22], 4
      %s2538 = int_to_ptr.vmem [resolvable:$true] %s2537
      %2540 = dma.vmem_to_hbm [thread:$0]  %s2538, 32, %s17, [#allocation23]
    $region105: #{tpu_custom_call.1} parent=1 // pred_fallthru
      _
    // Predicated region
    $region106: #{tpu_custom_call.1} parent=1 // pred_check
      _
    $region107: #{tpu_custom_call.1} parent=1 // pred_check_branch
      %2542 = sbr.rel (0) target = $region109
    $region108: #{tpu_custom_call.1} parent=1 // pred_region
      %2543 = dma.done [#allocation6], 256
    $region109: #{tpu_custom_call.1} parent=1 // pred_fallthru
      _
    // Predicated region
    $region110: #{tpu_custom_call.1} parent=1 // pred_check
      _
    $region111: #{tpu_custom_call.1} parent=1 // pred_check_branch
      %2545 = sbr.rel (0) target = $region113
    $region112: #{tpu_custom_call.1} parent=1 // pred_region
      %2546 = dma.done [#allocation20], 256
    $region113: #{tpu_custom_call.1} parent=1 // pred_fallthru
      _
    // Predicated region
    $region114: #{tpu_custom_call.1} parent=1 // pred_check
      _
    $region115: #{tpu_custom_call.1} parent=1 // pred_check_branch
      %2548 = sbr.rel (0) target = $region117
    $region116: #{tpu_custom_call.1} parent=1 // pred_region
      %2549 = dma.done [#allocation20], 32
    $region117: #{tpu_custom_call.1} parent=1 // pred_fallthru
      _
    // Predicated region
    $region118: #{tpu_custom_call.1} parent=1 // pred_check
      _
    $region119: #{tpu_custom_call.1} parent=1 // pred_check_branch
      %2551 = sbr.rel (0) target = $region121
    $region120: #{tpu_custom_call.1} parent=1 // pred_region
      %2552 = dma.done [#allocation23], 32
    $region121: #{tpu_custom_call.1} parent=1 // pred_fallthru
      _
    %2553 = vsyncpa [#allocation5], 1
    %2554 = vsyncpa [#allocation8], 1
    %2555 = vsyncpa [#allocation11], 1
    %2556 = vsyncpa [#allocation14], 1
    %2557 = vsyncpa [#allocation17], 1
    %2558 = vsyncpa [#allocation6], 1
    %2559 = vsyncpa [#allocation20], 1
    %2560 = vsyncpa [#allocation23], 1

</llo_original>
